<compile_context>
chip_gen: v6e
topology: v6e:2x2x1
jax: 0.10.0
libtpu: 0.0.40
codegen_flags: <defaults>
</compile_context>

<pallas_src>
import math

import jax
import jax.numpy as jnp
from jax.experimental import pallas as pl
from jax.experimental.pallas import tpu as pltpu

# ---- hyper-parameters (small but consistent with RFormer.__init__) ----
INPUT_DIM = 32
NUM_K = 8            # sequence length == num_k
D_MODEL = 128
N_HEAD = 4
DIM_FF = 2048        # PyTorch TransformerEncoderLayer default dim_feedforward
LN_EPS = 1e-5        # PyTorch LayerNorm default eps
BATCH = 2

FF_CHUNK = 512       # FFN tiled over DIM_FF in 512-lane chunks (4 chunks)
HEAD_DIM = D_MODEL // N_HEAD
SCALE = 1.0 / math.sqrt(HEAD_DIM)

# ---- rows of the packed small-parameter slab (all 128 lanes wide, f32) ----
ROW_POS = 0                       # rows 0..NUM_K-1 : position emb + input bias (pre-folded)
ROW_B_QKV = ROW_POS + NUM_K       # 3 rows: q bias, k bias, v bias
ROW_B_O = ROW_B_QKV + 3
ROW_LN1_G = ROW_B_O + 1
ROW_LN1_B = ROW_LN1_G + 1
ROW_B_FF2 = ROW_LN1_B + 1
ROW_LN2_G = ROW_B_FF2 + 1
ROW_LN2_B = ROW_LN2_G + 1
ROW_W_CLS = ROW_LN2_B + 1         # classifier weight as a lane row
ROW_B_CLS = ROW_W_CLS + 1         # classifier bias (broadcast across lanes)
PACK_ROWS = ROW_B_CLS + 1         # 19


def _layer_norm(x, g, b):
    mu = jnp.mean(x, axis=-1, keepdims=True)
    var = jnp.mean((x - mu) ** 2, axis=-1, keepdims=True)   # biased, like nn.LayerNorm
    return (x - mu) * jax.lax.rsqrt(var + LN_EPS) * g + b


def _make_kernel(prefetch_ffn):
    """Build the kernel body.

    prefetch_ffn=True: w_ff1/w_ff2 arrive as raw HBM refs (memory_space=pl.ANY) plus VMEM
    scratch + DMA semaphores; their fetch is overlapped with the attention section
    (single-grid-step / small-batch path).  prefetch_ffn=False: they are ordinary
    auto-pipelined full-array VMEM blocks (fetched once for the whole grid).
    """

    def kernel(x_ref, pk_ref, w_in_ref, w_qkv_ref, w_o_ref, b_ff1_ref,
               w_ff1_ref, w_ff2_ref, x_out_ref, y_out_ref, *scratch):
        M = x_ref.shape[0]               # = block_b * NUM_K (batch-fused row count)
        D = D_MODEL
        K = NUM_K
        bb = M // K
        Dh = HEAD_DIM

        if prefetch_ffn:
            ff1_buf, ff2_buf, dma_sem = scratch
            cp1 = pltpu.make_async_copy(w_ff1_ref, ff1_buf, dma_sem.at[0])
            cp2 = pltpu.make_async_copy(w_ff2_ref, ff2_buf, dma_sem.at[1])
            cp1.start()
            cp2.start()
            w1, w2 = ff1_buf, ff2_buf    # waited on right before the FFN below
        else:
            w1, w2 = w_ff1_ref, w_ff2_ref

        pk = pk_ref[...]                                   # (PACK_ROWS, D) small params
        pos_bias = pk[ROW_POS:ROW_POS + K, :]              # (K, D): pos emb + b_in
        b_q = pk[ROW_B_QKV + 0:ROW_B_QKV + 1, :]
        b_k = pk[ROW_B_QKV + 1:ROW_B_QKV + 2, :]
        b_v = pk[ROW_B_QKV + 2:ROW_B_QKV + 3, :]
        b_o = pk[ROW_B_O:ROW_B_O + 1, :]
        ln1_g = pk[ROW_LN1_G:ROW_LN1_G + 1, :]
        ln1_b = pk[ROW_LN1_B:ROW_LN1_B + 1, :]
        b_ff2 = pk[ROW_B_FF2:ROW_B_FF2 + 1, :]
        ln2_g = pk[ROW_LN2_G:ROW_LN2_G + 1, :]
        ln2_b = pk[ROW_LN2_B:ROW_LN2_B + 1, :]
        w_cls = pk[ROW_W_CLS:ROW_W_CLS + 1, :]             # (1, D)
        b_cls = pk[ROW_B_CLS:ROW_B_CLS + 1, 0:1]           # (1, 1)

        # input_layer + position embeddings (batch-fused: M = bb*K rows per MXU call)
        x_bf = x_ref[...].astype(jnp.bfloat16)
        h = jnp.dot(x_bf, w_in_ref[...], preferred_element_type=jnp.float32)
        h = (h.reshape(bb, K, D) + pos_bias[None]).reshape(M, D)   # f32 residual stream

        # --- multi-head self-attention (dropout is identity in eval) ---
        qkv = jnp.dot(h.astype(jnp.bfloat16), w_qkv_ref[...],
                      preferred_element_type=jnp.float32)          # (M, 3D), f32 acc
        q = (qkv[:, 0 * D:1 * D] + b_q).reshape(bb, K, D).astype(jnp.bfloat16)
        k = (qkv[:, 1 * D:2 * D] + b_k).reshape(bb, K, D).astype(jnp.bfloat16)
        v = (qkv[:, 2 * D:3 * D] + b_v).reshape(bb, K, D).astype(jnp.bfloat16)

        ctx_heads = []
        for hh in range(N_HEAD):
            lo, hi = hh * Dh, (hh + 1) * Dh
            s = jnp.einsum('bqd,bkd->bqk', q[:, :, lo:hi], k[:, :, lo:hi],
                           preferred_element_type=jnp.float32) * SCALE   # (bb, K, K)
            s = s - jnp.max(s, axis=-1, keepdims=True)
            p = jnp.exp(s)
            p = p * pl.reciprocal(jnp.sum(p, axis=-1, keepdims=True), approx=True)
            ctx_heads.append(jnp.einsum('bqk,bkd->bqd', p.astype(jnp.bfloat16),
                                        v[:, :, lo:hi],
                                        preferred_element_type=jnp.float32))
        # one 128-deep output projection instead of four 32-deep folded matmuls
        ctx = jnp.concatenate(ctx_heads, axis=-1).reshape(M, D)
        attn = jnp.dot(ctx.astype(jnp.bfloat16), w_o_ref[...],
                       preferred_element_type=jnp.float32) + b_o

        # post-norm encoder layer: residual -> norm1 -> FFN -> residual -> norm2
        h = _layer_norm(h + attn, ln1_g, ln1_b)

        # FFN tiled over DIM_FF: live intermediate capped at (M, FF_CHUNK)
        if prefetch_ffn:
            cp1.wait()
            cp2.wait()
        h_bf = h.astype(jnp.bfloat16)
        ff = jnp.zeros((M, D), jnp.float32)
        for c in range(0, DIM_FF, FF_CHUNK):               # static slices, lane multiples
            t = jnp.dot(h_bf, w1[:, c:c + FF_CHUNK],
                        preferred_element_type=jnp.float32)
            t = jnp.maximum(t + b_ff1_ref[:, c:c + FF_CHUNK], 0.0)   # ReLU
            ff = ff + jnp.dot(t.astype(jnp.bfloat16), w2[c:c + FF_CHUNK, :],
                              preferred_element_type=jnp.float32)
        ff = ff + b_ff2

        h = _layer_norm(h + ff, ln2_g, ln2_b)
        x_out_ref[...] = h.astype(x_out_ref.dtype)

        # classifier_layer: VPU lane reduction, stored as one lane-dense (1, 1, M) row
        y = jnp.sum(h * w_cls, axis=-1)[None, None, :] + b_cls
        y_out_ref[...] = y.astype(y_out_ref.dtype)
        # TODO(synk): BCEWithLogitsLoss / dropout are training-only; inference returns (x, None).

    return kernel


def _pack_small_params(params):
    """All 128-lane-wide small parameters in one (PACK_ROWS, 128) f32 slab (one DMA)."""
    return jnp.concatenate([
        params["pos"] + params["b_in"],                    # b_in pre-folded into pos emb
        params["b_qkv"].reshape(3, D_MODEL),
        params["b_o"],
        params["ln1_g"], params["ln1_b"],
        params["b_ff2"],
        params["ln2_g"], params["ln2_b"],
        params["w_cls"].T,                                 # (1, D_MODEL)
        jnp.broadcast_to(params["b_cls"], (1, D_MODEL)),
    ], axis=0).astype(jnp.float32)


def rformer_forward(x, params, block_b=None, row_cap=256):
    """Pallas forward.  `row_cap` = max fused rows per grid step (256 fills the 2x256x256
    MXU of v6e/v7x; pass 128 on v5e)."""
    B, K, Din = x.shape
    assert K == NUM_K and Din == INPUT_DIM

    if block_b is None:
        block_b = max(1, min(B, row_cap // K))
    nb = -(-B // block_b)                 # number of batch blocks (grid steps)
    Bp = nb * block_b
    if Bp != B:                           # pad batch with zeros; sliced off below
        x = jnp.concatenate([x, jnp.zeros((Bp - B, K, Din), x.dtype)], axis=0)
    x_flat = x.reshape(Bp * K, Din).astype(jnp.float32)
    Mb = block_b * K

    packed = _pack_small_params(params)
    # bf16 for the large weights (kernel accumulates in f32).
    w_in = params["w_in"].astype(jnp.bfloat16)
    w_qkv = params["w_qkv"].astype(jnp.bfloat16)
    w_o = params["w_o"].astype(jnp.bfloat16)
    b_ff1 = params["b_ff1"].astype(jnp.float32)
    w_ff1 = params["w_ff1"].astype(jnp.bfloat16)
    w_ff2 = params["w_ff2"].astype(jnp.bfloat16)

    def full(a):
        # constant index map: fetched once, stays VMEM-resident across grid steps
        return pl.BlockSpec(a.shape, lambda i: (0, 0))

    # Single-step calls overlap the ~1 MiB FFN-weight DMA with attention compute (manual
    # copy into scratch); multi-step grids keep auto pipelining so the weights are fetched
    # only once for the whole grid and the batch axis can shard across v7x TensorCores.
    prefetch_ffn = (nb == 1)
    if prefetch_ffn:
        ffn_specs = [pl.BlockSpec(memory_space=pl.ANY),
                     pl.BlockSpec(memory_space=pl.ANY)]
        scratch_shapes = [pltpu.VMEM((D_MODEL, DIM_FF), jnp.bfloat16),
                          pltpu.VMEM((DIM_FF, D_MODEL), jnp.bfloat16),
                          pltpu.SemaphoreType.DMA((2,))]
        semantics = ("arbitrary",)
    else:
        ffn_specs = [full(w_ff1), full(w_ff2)]
        scratch_shapes = []
        semantics = ("parallel",)

    in_specs = [
        pl.BlockSpec((Mb, Din), lambda i: (i, 0)),          # rows of this batch block
        full(packed), full(w_in), full(w_qkv), full(w_o), full(b_ff1),
    ] + ffn_specs
    out_specs = [
        pl.BlockSpec((Mb, D_MODEL), lambda i: (i, 0)),      # lane-dense hidden states
        pl.BlockSpec((1, 1, Mb), lambda i: (i, 0, 0)),      # lane-dense logits row
    ]
    out_shape = (
        jax.ShapeDtypeStruct((Bp * K, D_MODEL), jnp.float32),
        jax.ShapeDtypeStruct((nb, 1, Mb), jnp.float32),
    )

    rows = Bp * K
    flops_per_row = 2 * (INPUT_DIM * D_MODEL + 3 * D_MODEL * D_MODEL
                         + 2 * NUM_K * D_MODEL + D_MODEL * D_MODEL
                         + 2 * D_MODEL * DIM_FF + D_MODEL)
    bytes_accessed = (x_flat.size * 4 + packed.size * 4 + b_ff1.size * 4
                      + 2 * (w_in.size + w_qkv.size + w_o.size + w_ff1.size + w_ff2.size)
                      + rows * D_MODEL * 4 + nb * Mb * 4)
    cost = pl.CostEstimate(flops=int(rows * flops_per_row),
                           transcendentals=int(rows * (NUM_K * N_HEAD + N_HEAD + 2)),
                           bytes_accessed=int(bytes_accessed))

    x_out, y_out = pl.pallas_call(
        _make_kernel(prefetch_ffn),
        grid=(nb,),
        in_specs=in_specs,
        out_specs=out_specs,
        out_shape=out_shape,
        scratch_shapes=scratch_shapes,
        cost_estimate=cost,
        compiler_params=pltpu.CompilerParams(dimension_semantics=semantics),
    )(x_flat, packed, w_in, w_qkv, w_o, b_ff1, w_ff1, w_ff2)

    x_out = x_out.reshape(Bp, K, D_MODEL)[:B]
    y_out = y_out.reshape(Bp, K, 1)[:B]
    return x_out, y_out


def init_params(key):
    ks = jax.random.split(key, 13)

    def nrm(k, shape, scale=0.02):
        return scale * jax.random.normal(k, shape, dtype=jnp.float32)

    return {
        "w_in":  nrm(ks[0], (INPUT_DIM, D_MODEL)),
        "b_in":  nrm(ks[1], (1, D_MODEL)),
        "pos":   nrm(ks[2], (NUM_K, D_MODEL)),
        "w_qkv": nrm(ks[3], (D_MODEL, 3 * D_MODEL)),
        "b_qkv": nrm(ks[4], (1, 3 * D_MODEL)),
        "w_o":   nrm(ks[5], (D_MODEL, D_MODEL)),
        "b_o":   nrm(ks[6], (1, D_MODEL)),
        "ln1_g": jnp.ones((1, D_MODEL), jnp.float32),
        "ln1_b": jnp.zeros((1, D_MODEL), jnp.float32),
        "w_ff1": nrm(ks[7], (D_MODEL, DIM_FF)),
        "b_ff1": nrm(ks[8], (1, DIM_FF)),
        "w_ff2": nrm(ks[9], (DIM_FF, D_MODEL)),
        "b_ff2": nrm(ks[10], (1, D_MODEL)),
        "ln2_g": jnp.ones((1, D_MODEL), jnp.float32),
        "ln2_b": jnp.zeros((1, D_MODEL), jnp.float32),
        "w_cls": nrm(ks[11], (D_MODEL, 1)),
        "b_cls": nrm(ks[12], (1, 1)),
    }


def reference_forward(x, P, quantized=False):
    """Pure-JAX reference of the PyTorch forward (eval mode).

    quantized=True mirrors the kernel's bf16 MXU operands with f32 accumulation (tight
    check); quantized=False is the pure-f32 module semantics (loose check).
    """
    def cast(a):
        return a.astype(jnp.bfloat16) if quantized else a

    def mm(a, w):
        return jnp.dot(cast(a), cast(w), preferred_element_type=jnp.float32)

    def one(xb):
        h = mm(xb, P["w_in"]) + P["b_in"] + P["pos"]
        qkv = mm(h, P["w_qkv"]) + P["b_qkv"]
        q, k, v = (qkv[:, :D_MODEL], qkv[:, D_MODEL:2 * D_MODEL], qkv[:, 2 * D_MODEL:])
        parts = []
        for hh in range(N_HEAD):
            sl = slice(hh * HEAD_DIM, (hh + 1) * HEAD_DIM)
            s = jnp.dot(cast(q[:, sl]), cast(k[:, sl]).T,
                        preferred_element_type=jnp.float32) * SCALE
            parts.append(jnp.dot(cast(jax.nn.softmax(s, axis=-1)), cast(v[:, sl]),
                                 preferred_element_type=jnp.float32))
        ctx = jnp.concatenate(parts, axis=-1)
        h = _layer_norm(h + mm(ctx, P["w_o"]) + P["b_o"], P["ln1_g"], P["ln1_b"])
        ff = mm(jax.nn.relu(mm(h, P["w_ff1"]) + P["b_ff1"]), P["w_ff2"]) + P["b_ff2"]
        h = _layer_norm(h + ff, P["ln2_g"], P["ln2_b"])
        y = h @ P["w_cls"] + P["b_cls"]
        return h, y

    return jax.vmap(one)(x)


if __name__ == "__main__":
    key = jax.random.PRNGKey(0)
    kx, kp = jax.random.split(key)
    x = jax.random.normal(kx, (BATCH, NUM_K, INPUT_DIM), dtype=jnp.float32)
    params = init_params(kp)

    # Batch-fused, single grid step -> FFN-weight prefetch path.
    x_out, y_out = rformer_forward(x, params)
    jax.block_until_ready((x_out, y_out))
    assert x_out.shape == (BATCH, NUM_K, D_MODEL)
    assert y_out.shape == (BATCH, NUM_K, 1)

    # Tight check vs. a reference that replicates the kernel's bf16 operand quantization.
    x_q, y_q = reference_forward(x, params, quantized=True)
    assert jnp.allclose(x_out, x_q, atol=5e-3, rtol=5e-3)
    assert jnp.allclose(y_out, y_q, atol=5e-3, rtol=5e-3)

    # Looser check vs. pure-f32 module semantics (covers bf16 quantization error).
    x_f, y_f = reference_forward(x, params, quantized=False)
    assert jnp.allclose(x_out, x_f, atol=3e-2, rtol=3e-2)
    assert jnp.allclose(y_out, y_f, atol=3e-2, rtol=3e-2)

    # Multi-grid-step path (auto-pipelined weights, "parallel" batch axis) must agree.
    x_b1, y_b1 = rformer_forward(x, params, block_b=1)
    assert jnp.allclose(x_out, x_b1, atol=1e-5, rtol=1e-5)
    assert jnp.allclose(y_out, y_b1, atol=1e-5, rtol=1e-5)

    print("KERNEL_OK")
</pallas_src>

<mosaic_0001>
module attributes {stable_mosaic.version = 11 : i64} {
  func.func @kernel(%arg0: i32, %arg1: memref<16x32xf32, #tpu.memory_space<vmem>>, %arg2: memref<19x128xf32, #tpu.memory_space<vmem>>, %arg3: memref<32x128xbf16, #tpu.memory_space<vmem>>, %arg4: memref<128x384xbf16, #tpu.memory_space<vmem>>, %arg5: memref<128x128xbf16, #tpu.memory_space<vmem>>, %arg6: memref<1x2048xf32, #tpu.memory_space<vmem>>, %arg7: memref<128x2048xbf16, #tpu.memory_space<any>>, %arg8: memref<2048x128xbf16, #tpu.memory_space<any>>, %arg9: memref<16x128xf32, #tpu.memory_space<vmem>>, %arg10: memref<1x1x16xf32, #tpu.memory_space<vmem>>, %arg11: memref<128x2048xbf16, #tpu.memory_space<vmem>>, %arg12: memref<2048x128xbf16, #tpu.memory_space<vmem>>, %arg13: memref<2x!tpu.dma_semaphore, #tpu.memory_space<semaphore_mem>>) attributes {dimension_semantics = [#tpu.dimension_semantics<arbitrary>], iteration_bounds = array<i64: 1>, scalar_prefetch = 0 : i64, scratch_operands = 3 : i64, tpu.core_type = #tpu.core_type<tc>, window_params = [{transform_indices = @transform_0, window_bounds = array<i64: 16, 32>}, {pipeline_mode = #tpu.pipeline_mode<synchronous>, transform_indices = @transform_1, window_bounds = array<i64: 19, 128>}, {pipeline_mode = #tpu.pipeline_mode<synchronous>, transform_indices = @transform_2, window_bounds = array<i64: 32, 128>}, {pipeline_mode = #tpu.pipeline_mode<synchronous>, transform_indices = @transform_3, window_bounds = array<i64: 128, 384>}, {pipeline_mode = #tpu.pipeline_mode<synchronous>, transform_indices = @transform_4, window_bounds = array<i64: 128, 128>}, {pipeline_mode = #tpu.pipeline_mode<synchronous>, transform_indices = @transform_5, window_bounds = array<i64: 1, 2048>}, {}, {}, {transform_indices = @transform_8, window_bounds = array<i64: 16, 128>}, {transform_indices = @transform_9, window_bounds = array<i64: 1, 1, 16>}]} {
    %c0_i32 = arith.constant 0 : i32
    %0 = tpu.memref_slice %arg13[%c0_i32] : memref<2x!tpu.dma_semaphore, #tpu.memory_space<semaphore_mem>> -> memref<1x!tpu.dma_semaphore, #tpu.memory_space<semaphore_mem>>
    %1 = tpu.memref_squeeze %0 : memref<1x!tpu.dma_semaphore, #tpu.memory_space<semaphore_mem>> -> memref<!tpu.dma_semaphore, #tpu.memory_space<semaphore_mem>>
    tpu.enqueue_dma source(%arg7 : memref<128x2048xbf16, #tpu.memory_space<any>>) target(%arg11 : memref<128x2048xbf16, #tpu.memory_space<vmem>>) target_semaphore(%1 : memref<!tpu.dma_semaphore, #tpu.memory_space<semaphore_mem>>)
    %c1_i32 = arith.constant 1 : i32
    %2 = tpu.memref_slice %arg13[%c1_i32] : memref<2x!tpu.dma_semaphore, #tpu.memory_space<semaphore_mem>> -> memref<1x!tpu.dma_semaphore, #tpu.memory_space<semaphore_mem>>
    %3 = tpu.memref_squeeze %2 : memref<1x!tpu.dma_semaphore, #tpu.memory_space<semaphore_mem>> -> memref<!tpu.dma_semaphore, #tpu.memory_space<semaphore_mem>>
    tpu.enqueue_dma source(%arg8 : memref<2048x128xbf16, #tpu.memory_space<any>>) target(%arg12 : memref<2048x128xbf16, #tpu.memory_space<vmem>>) target_semaphore(%3 : memref<!tpu.dma_semaphore, #tpu.memory_space<semaphore_mem>>)
    %c0 = arith.constant 0 : index
    %c0_0 = arith.constant 0 : index
    %4 = vector.load %arg2[%c0, %c0_0] : memref<19x128xf32, #tpu.memory_space<vmem>>, vector<19x128xf32>
    %5 = vector.extract_strided_slice %4 {offsets = [0, 0], sizes = [8, 128], strides = [1, 1]} : vector<19x128xf32> to vector<8x128xf32>
    %6 = vector.extract_strided_slice %4 {offsets = [8, 0], sizes = [1, 128], strides = [1, 1]} : vector<19x128xf32> to vector<1x128xf32>
    %7 = vector.extract_strided_slice %4 {offsets = [9, 0], sizes = [1, 128], strides = [1, 1]} : vector<19x128xf32> to vector<1x128xf32>
    %8 = vector.extract_strided_slice %4 {offsets = [10, 0], sizes = [1, 128], strides = [1, 1]} : vector<19x128xf32> to vector<1x128xf32>
    %9 = vector.extract_strided_slice %4 {offsets = [11, 0], sizes = [1, 128], strides = [1, 1]} : vector<19x128xf32> to vector<1x128xf32>
    %10 = vector.extract_strided_slice %4 {offsets = [12, 0], sizes = [1, 128], strides = [1, 1]} : vector<19x128xf32> to vector<1x128xf32>
    %11 = vector.extract_strided_slice %4 {offsets = [13, 0], sizes = [1, 128], strides = [1, 1]} : vector<19x128xf32> to vector<1x128xf32>
    %12 = vector.extract_strided_slice %4 {offsets = [14, 0], sizes = [1, 128], strides = [1, 1]} : vector<19x128xf32> to vector<1x128xf32>
    %13 = vector.extract_strided_slice %4 {offsets = [15, 0], sizes = [1, 128], strides = [1, 1]} : vector<19x128xf32> to vector<1x128xf32>
    %14 = vector.extract_strided_slice %4 {offsets = [16, 0], sizes = [1, 128], strides = [1, 1]} : vector<19x128xf32> to vector<1x128xf32>
    %15 = vector.extract_strided_slice %4 {offsets = [17, 0], sizes = [1, 128], strides = [1, 1]} : vector<19x128xf32> to vector<1x128xf32>
    %16 = vector.extract_strided_slice %4 {offsets = [18, 0], sizes = [1, 1], strides = [1, 1]} : vector<19x128xf32> to vector<1x1xf32>
    %c0_1 = arith.constant 0 : index
    %c0_2 = arith.constant 0 : index
    %17 = vector.load %arg1[%c0_1, %c0_2] : memref<16x32xf32, #tpu.memory_space<vmem>>, vector<16x32xf32>
    %18 = arith.truncf %17 : vector<16x32xf32> to vector<16x32xbf16>
    %c0_3 = arith.constant 0 : index
    %c0_4 = arith.constant 0 : index
    %19 = vector.load %arg3[%c0_3, %c0_4] : memref<32x128xbf16, #tpu.memory_space<vmem>>, vector<32x128xbf16>
    %cst = arith.constant dense<0.000000e+00> : vector<16x128xf32>
    %20 = tpu.matmul %18, %19, %cst {dimension_numbers = #tpu.dot_dimension_numbers<[1], [0], [0], [1], [0, 0, 1, 1], [], []>} : vector<16x32xbf16>, vector<32x128xbf16>, vector<16x128xf32> -> vector<16x128xf32>
    %21 = vector.shape_cast %20 : vector<16x128xf32> to vector<2x8x128xf32>
    %22 = vector.shape_cast %5 : vector<8x128xf32> to vector<1x8x128xf32>
    %23 = vector.broadcast %22 : vector<1x8x128xf32> to vector<2x8x128xf32>
    %24 = arith.addf %21, %23 : vector<2x8x128xf32>
    %25 = vector.shape_cast %24 : vector<2x8x128xf32> to vector<16x128xf32>
    %26 = arith.truncf %25 : vector<16x128xf32> to vector<16x128xbf16>
    %c0_5 = arith.constant 0 : index
    %c0_6 = arith.constant 0 : index
    %27 = vector.load %arg4[%c0_5, %c0_6] : memref<128x384xbf16, #tpu.memory_space<vmem>>, vector<128x384xbf16>
    %cst_7 = arith.constant dense<0.000000e+00> : vector<16x384xf32>
    %28 = tpu.matmul %26, %27, %cst_7 {dimension_numbers = #tpu.dot_dimension_numbers<[1], [0], [0], [1], [0, 0, 1, 1], [], []>} : vector<16x128xbf16>, vector<128x384xbf16>, vector<16x384xf32> -> vector<16x384xf32>
    %29 = vector.extract_strided_slice %28 {offsets = [0, 0], sizes = [16, 128], strides = [1, 1]} : vector<16x384xf32> to vector<16x128xf32>
    %30 = vector.broadcast %6 : vector<1x128xf32> to vector<16x128xf32>
    %31 = arith.addf %29, %30 : vector<16x128xf32>
    %32 = vector.shape_cast %31 : vector<16x128xf32> to vector<2x8x128xf32>
    %33 = arith.truncf %32 : vector<2x8x128xf32> to vector<2x8x128xbf16>
    %34 = vector.extract_strided_slice %28 {offsets = [0, 128], sizes = [16, 128], strides = [1, 1]} : vector<16x384xf32> to vector<16x128xf32>
    %35 = vector.broadcast %7 : vector<1x128xf32> to vector<16x128xf32>
    %36 = arith.addf %34, %35 : vector<16x128xf32>
    %37 = vector.shape_cast %36 : vector<16x128xf32> to vector<2x8x128xf32>
    %38 = arith.truncf %37 : vector<2x8x128xf32> to vector<2x8x128xbf16>
    %39 = vector.extract_strided_slice %28 {offsets = [0, 256], sizes = [16, 128], strides = [1, 1]} : vector<16x384xf32> to vector<16x128xf32>
    %40 = vector.broadcast %8 : vector<1x128xf32> to vector<16x128xf32>
    %41 = arith.addf %39, %40 : vector<16x128xf32>
    %42 = vector.shape_cast %41 : vector<16x128xf32> to vector<2x8x128xf32>
    %43 = arith.truncf %42 : vector<2x8x128xf32> to vector<2x8x128xbf16>
    %44 = vector.extract_strided_slice %33 {offsets = [0, 0, 0], sizes = [2, 8, 32], strides = [1, 1, 1]} : vector<2x8x128xbf16> to vector<2x8x32xbf16>
    %45 = vector.extract_strided_slice %38 {offsets = [0, 0, 0], sizes = [2, 8, 32], strides = [1, 1, 1]} : vector<2x8x128xbf16> to vector<2x8x32xbf16>
    "tpu.trace_start"() <{level = 10 : i32, message = "bqd,bkd->bqk"}> : () -> ()
    %cst_8 = arith.constant dense<0.000000e+00> : vector<2x8x8xf32>
    %46 = tpu.matmul %44, %45, %cst_8 {dimension_numbers = #tpu.dot_dimension_numbers<[2], [2], [1], [1], [0, 0, 0, 1, 1, 1], [0], [0]>} : vector<2x8x32xbf16>, vector<2x8x32xbf16>, vector<2x8x8xf32> -> vector<2x8x8xf32>
    "tpu.trace_stop"() : () -> ()
    %cst_9 = arith.constant 0.176776692 : f32
    %47 = vector.broadcast %cst_9 : f32 to vector<2x8x8xf32>
    %48 = arith.mulf %46, %47 : vector<2x8x8xf32>
    %cst_10 = arith.constant dense<0xFF800000> : vector<2x8xf32>
    %49 = vector.multi_reduction <maximumf>, %48, %cst_10 [2] : vector<2x8x8xf32> to vector<2x8xf32>
    %50 = vector.shape_cast %49 : vector<2x8xf32> to vector<2x8x1xf32>
    %51 = vector.broadcast %50 : vector<2x8x1xf32> to vector<2x8x8xf32>
    %52 = arith.subf %48, %51 : vector<2x8x8xf32>
    %53 = math.exp %52 : vector<2x8x8xf32>
    %cst_11 = arith.constant dense<0.000000e+00> : vector<2x8xf32>
    %54 = vector.multi_reduction <add>, %53, %cst_11 [2] : vector<2x8x8xf32> to vector<2x8xf32>
    %55 = vector.shape_cast %54 : vector<2x8xf32> to vector<2x8x1xf32>
    %56 = tpu.reciprocal %55 {approx = true} : vector<2x8x1xf32> -> vector<2x8x1xf32>
    %57 = vector.broadcast %56 : vector<2x8x1xf32> to vector<2x8x8xf32>
    %58 = arith.mulf %53, %57 : vector<2x8x8xf32>
    %59 = arith.truncf %58 : vector<2x8x8xf32> to vector<2x8x8xbf16>
    %60 = vector.extract_strided_slice %43 {offsets = [0, 0, 0], sizes = [2, 8, 32], strides = [1, 1, 1]} : vector<2x8x128xbf16> to vector<2x8x32xbf16>
    "tpu.trace_start"() <{level = 10 : i32, message = "bqk,bkd->bqd"}> : () -> ()
    %cst_12 = arith.constant dense<0.000000e+00> : vector<2x8x32xf32>
    %61 = tpu.matmul %59, %60, %cst_12 {dimension_numbers = #tpu.dot_dimension_numbers<[2], [1], [1], [2], [0, 0, 0, 1, 1, 2], [0], [0]>} : vector<2x8x8xbf16>, vector<2x8x32xbf16>, vector<2x8x32xf32> -> vector<2x8x32xf32>
    "tpu.trace_stop"() : () -> ()
    %62 = vector.extract_strided_slice %33 {offsets = [0, 0, 32], sizes = [2, 8, 32], strides = [1, 1, 1]} : vector<2x8x128xbf16> to vector<2x8x32xbf16>
    %63 = vector.extract_strided_slice %38 {offsets = [0, 0, 32], sizes = [2, 8, 32], strides = [1, 1, 1]} : vector<2x8x128xbf16> to vector<2x8x32xbf16>
    "tpu.trace_start"() <{level = 10 : i32, message = "bqd,bkd->bqk"}> : () -> ()
    %cst_13 = arith.constant dense<0.000000e+00> : vector<2x8x8xf32>
    %64 = tpu.matmul %62, %63, %cst_13 {dimension_numbers = #tpu.dot_dimension_numbers<[2], [2], [1], [1], [0, 0, 0, 1, 1, 1], [0], [0]>} : vector<2x8x32xbf16>, vector<2x8x32xbf16>, vector<2x8x8xf32> -> vector<2x8x8xf32>
    "tpu.trace_stop"() : () -> ()
    %cst_14 = arith.constant 0.176776692 : f32
    %65 = vector.broadcast %cst_14 : f32 to vector<2x8x8xf32>
    %66 = arith.mulf %64, %65 : vector<2x8x8xf32>
    %cst_15 = arith.constant dense<0xFF800000> : vector<2x8xf32>
    %67 = vector.multi_reduction <maximumf>, %66, %cst_15 [2] : vector<2x8x8xf32> to vector<2x8xf32>
    %68 = vector.shape_cast %67 : vector<2x8xf32> to vector<2x8x1xf32>
    %69 = vector.broadcast %68 : vector<2x8x1xf32> to vector<2x8x8xf32>
    %70 = arith.subf %66, %69 : vector<2x8x8xf32>
    %71 = math.exp %70 : vector<2x8x8xf32>
    %cst_16 = arith.constant dense<0.000000e+00> : vector<2x8xf32>
    %72 = vector.multi_reduction <add>, %71, %cst_16 [2] : vector<2x8x8xf32> to vector<2x8xf32>
    %73 = vector.shape_cast %72 : vector<2x8xf32> to vector<2x8x1xf32>
    %74 = tpu.reciprocal %73 {approx = true} : vector<2x8x1xf32> -> vector<2x8x1xf32>
    %75 = vector.broadcast %74 : vector<2x8x1xf32> to vector<2x8x8xf32>
    %76 = arith.mulf %71, %75 : vector<2x8x8xf32>
    %77 = arith.truncf %76 : vector<2x8x8xf32> to vector<2x8x8xbf16>
    %78 = vector.extract_strided_slice %43 {offsets = [0, 0, 32], sizes = [2, 8, 32], strides = [1, 1, 1]} : vector<2x8x128xbf16> to vector<2x8x32xbf16>
    "tpu.trace_start"() <{level = 10 : i32, message = "bqk,bkd->bqd"}> : () -> ()
    %cst_17 = arith.constant dense<0.000000e+00> : vector<2x8x32xf32>
    %79 = tpu.matmul %77, %78, %cst_17 {dimension_numbers = #tpu.dot_dimension_numbers<[2], [1], [1], [2], [0, 0, 0, 1, 1, 2], [0], [0]>} : vector<2x8x8xbf16>, vector<2x8x32xbf16>, vector<2x8x32xf32> -> vector<2x8x32xf32>
    "tpu.trace_stop"() : () -> ()
    %80 = vector.extract_strided_slice %33 {offsets = [0, 0, 64], sizes = [2, 8, 32], strides = [1, 1, 1]} : vector<2x8x128xbf16> to vector<2x8x32xbf16>
    %81 = vector.extract_strided_slice %38 {offsets = [0, 0, 64], sizes = [2, 8, 32], strides = [1, 1, 1]} : vector<2x8x128xbf16> to vector<2x8x32xbf16>
    "tpu.trace_start"() <{level = 10 : i32, message = "bqd,bkd->bqk"}> : () -> ()
    %cst_18 = arith.constant dense<0.000000e+00> : vector<2x8x8xf32>
    %82 = tpu.matmul %80, %81, %cst_18 {dimension_numbers = #tpu.dot_dimension_numbers<[2], [2], [1], [1], [0, 0, 0, 1, 1, 1], [0], [0]>} : vector<2x8x32xbf16>, vector<2x8x32xbf16>, vector<2x8x8xf32> -> vector<2x8x8xf32>
    "tpu.trace_stop"() : () -> ()
    %cst_19 = arith.constant 0.176776692 : f32
    %83 = vector.broadcast %cst_19 : f32 to vector<2x8x8xf32>
    %84 = arith.mulf %82, %83 : vector<2x8x8xf32>
    %cst_20 = arith.constant dense<0xFF800000> : vector<2x8xf32>
    %85 = vector.multi_reduction <maximumf>, %84, %cst_20 [2] : vector<2x8x8xf32> to vector<2x8xf32>
    %86 = vector.shape_cast %85 : vector<2x8xf32> to vector<2x8x1xf32>
    %87 = vector.broadcast %86 : vector<2x8x1xf32> to vector<2x8x8xf32>
    %88 = arith.subf %84, %87 : vector<2x8x8xf32>
    %89 = math.exp %88 : vector<2x8x8xf32>
    %cst_21 = arith.constant dense<0.000000e+00> : vector<2x8xf32>
    %90 = vector.multi_reduction <add>, %89, %cst_21 [2] : vector<2x8x8xf32> to vector<2x8xf32>
    %91 = vector.shape_cast %90 : vector<2x8xf32> to vector<2x8x1xf32>
    %92 = tpu.reciprocal %91 {approx = true} : vector<2x8x1xf32> -> vector<2x8x1xf32>
    %93 = vector.broadcast %92 : vector<2x8x1xf32> to vector<2x8x8xf32>
    %94 = arith.mulf %89, %93 : vector<2x8x8xf32>
    %95 = arith.truncf %94 : vector<2x8x8xf32> to vector<2x8x8xbf16>
    %96 = vector.extract_strided_slice %43 {offsets = [0, 0, 64], sizes = [2, 8, 32], strides = [1, 1, 1]} : vector<2x8x128xbf16> to vector<2x8x32xbf16>
    "tpu.trace_start"() <{level = 10 : i32, message = "bqk,bkd->bqd"}> : () -> ()
    %cst_22 = arith.constant dense<0.000000e+00> : vector<2x8x32xf32>
    %97 = tpu.matmul %95, %96, %cst_22 {dimension_numbers = #tpu.dot_dimension_numbers<[2], [1], [1], [2], [0, 0, 0, 1, 1, 2], [0], [0]>} : vector<2x8x8xbf16>, vector<2x8x32xbf16>, vector<2x8x32xf32> -> vector<2x8x32xf32>
    "tpu.trace_stop"() : () -> ()
    %98 = vector.extract_strided_slice %33 {offsets = [0, 0, 96], sizes = [2, 8, 32], strides = [1, 1, 1]} : vector<2x8x128xbf16> to vector<2x8x32xbf16>
    %99 = vector.extract_strided_slice %38 {offsets = [0, 0, 96], sizes = [2, 8, 32], strides = [1, 1, 1]} : vector<2x8x128xbf16> to vector<2x8x32xbf16>
    "tpu.trace_start"() <{level = 10 : i32, message = "bqd,bkd->bqk"}> : () -> ()
    %cst_23 = arith.constant dense<0.000000e+00> : vector<2x8x8xf32>
    %100 = tpu.matmul %98, %99, %cst_23 {dimension_numbers = #tpu.dot_dimension_numbers<[2], [2], [1], [1], [0, 0, 0, 1, 1, 1], [0], [0]>} : vector<2x8x32xbf16>, vector<2x8x32xbf16>, vector<2x8x8xf32> -> vector<2x8x8xf32>
    "tpu.trace_stop"() : () -> ()
    %cst_24 = arith.constant 0.176776692 : f32
    %101 = vector.broadcast %cst_24 : f32 to vector<2x8x8xf32>
    %102 = arith.mulf %100, %101 : vector<2x8x8xf32>
    %cst_25 = arith.constant dense<0xFF800000> : vector<2x8xf32>
    %103 = vector.multi_reduction <maximumf>, %102, %cst_25 [2] : vector<2x8x8xf32> to vector<2x8xf32>
    %104 = vector.shape_cast %103 : vector<2x8xf32> to vector<2x8x1xf32>
    %105 = vector.broadcast %104 : vector<2x8x1xf32> to vector<2x8x8xf32>
    %106 = arith.subf %102, %105 : vector<2x8x8xf32>
    %107 = math.exp %106 : vector<2x8x8xf32>
    %cst_26 = arith.constant dense<0.000000e+00> : vector<2x8xf32>
    %108 = vector.multi_reduction <add>, %107, %cst_26 [2] : vector<2x8x8xf32> to vector<2x8xf32>
    %109 = vector.shape_cast %108 : vector<2x8xf32> to vector<2x8x1xf32>
    %110 = tpu.reciprocal %109 {approx = true} : vector<2x8x1xf32> -> vector<2x8x1xf32>
    %111 = vector.broadcast %110 : vector<2x8x1xf32> to vector<2x8x8xf32>
    %112 = arith.mulf %107, %111 : vector<2x8x8xf32>
    %113 = arith.truncf %112 : vector<2x8x8xf32> to vector<2x8x8xbf16>
    %114 = vector.extract_strided_slice %43 {offsets = [0, 0, 96], sizes = [2, 8, 32], strides = [1, 1, 1]} : vector<2x8x128xbf16> to vector<2x8x32xbf16>
    "tpu.trace_start"() <{level = 10 : i32, message = "bqk,bkd->bqd"}> : () -> ()
    %cst_27 = arith.constant dense<0.000000e+00> : vector<2x8x32xf32>
    %115 = tpu.matmul %113, %114, %cst_27 {dimension_numbers = #tpu.dot_dimension_numbers<[2], [1], [1], [2], [0, 0, 0, 1, 1, 2], [0], [0]>} : vector<2x8x8xbf16>, vector<2x8x32xbf16>, vector<2x8x32xf32> -> vector<2x8x32xf32>
    "tpu.trace_stop"() : () -> ()
    %116 = tpu.concatenate %61, %79, %97, %115 in 2 : vector<2x8x32xf32>, vector<2x8x32xf32>, vector<2x8x32xf32>, vector<2x8x32xf32> -> vector<2x8x128xf32>
    %117 = vector.shape_cast %116 : vector<2x8x128xf32> to vector<16x128xf32>
    %118 = arith.truncf %117 : vector<16x128xf32> to vector<16x128xbf16>
    %c0_28 = arith.constant 0 : index
    %c0_29 = arith.constant 0 : index
    %119 = vector.load %arg5[%c0_28, %c0_29] : memref<128x128xbf16, #tpu.memory_space<vmem>>, vector<128x128xbf16>
    %cst_30 = arith.constant dense<0.000000e+00> : vector<16x128xf32>
    %120 = tpu.matmul %118, %119, %cst_30 {dimension_numbers = #tpu.dot_dimension_numbers<[1], [0], [0], [1], [0, 0, 1, 1], [], []>} : vector<16x128xbf16>, vector<128x128xbf16>, vector<16x128xf32> -> vector<16x128xf32>
    %121 = vector.broadcast %9 : vector<1x128xf32> to vector<16x128xf32>
    %122 = arith.addf %120, %121 : vector<16x128xf32>
    %123 = arith.addf %25, %122 : vector<16x128xf32>
    %cst_31 = arith.constant dense<0.000000e+00> : vector<16xf32>
    %124 = vector.multi_reduction <add>, %123, %cst_31 [1] : vector<16x128xf32> to vector<16xf32>
    %125 = vector.shape_cast %124 : vector<16xf32> to vector<16x1xf32>
    %cst_32 = arith.constant 1.280000e+02 : f32
    %126 = vector.broadcast %cst_32 : f32 to vector<16x1xf32>
    %127 = arith.divf %125, %126 : vector<16x1xf32>
    %128 = vector.broadcast %127 : vector<16x1xf32> to vector<16x128xf32>
    %129 = arith.subf %123, %128 : vector<16x128xf32>
    %130 = arith.mulf %129, %129 : vector<16x128xf32>
    %cst_33 = arith.constant dense<0.000000e+00> : vector<16xf32>
    %131 = vector.multi_reduction <add>, %130, %cst_33 [1] : vector<16x128xf32> to vector<16xf32>
    %132 = vector.shape_cast %131 : vector<16xf32> to vector<16x1xf32>
    %cst_34 = arith.constant 1.280000e+02 : f32
    %133 = vector.broadcast %cst_34 : f32 to vector<16x1xf32>
    %134 = arith.divf %132, %133 : vector<16x1xf32>
    %135 = vector.broadcast %127 : vector<16x1xf32> to vector<16x128xf32>
    %136 = arith.subf %123, %135 : vector<16x128xf32>
    %cst_35 = arith.constant 9.99999974E-6 : f32
    %137 = vector.broadcast %cst_35 : f32 to vector<16x1xf32>
    %138 = arith.addf %134, %137 : vector<16x1xf32>
    %139 = math.rsqrt %138 : vector<16x1xf32>
    %140 = vector.broadcast %139 : vector<16x1xf32> to vector<16x128xf32>
    %141 = arith.mulf %136, %140 : vector<16x128xf32>
    %142 = vector.broadcast %10 : vector<1x128xf32> to vector<16x128xf32>
    %143 = arith.mulf %141, %142 : vector<16x128xf32>
    %144 = vector.broadcast %11 : vector<1x128xf32> to vector<16x128xf32>
    %145 = arith.addf %143, %144 : vector<16x128xf32>
    %c0_i32_36 = arith.constant 0 : i32
    %146 = tpu.memref_slice %arg13[%c0_i32_36] : memref<2x!tpu.dma_semaphore, #tpu.memory_space<semaphore_mem>> -> memref<1x!tpu.dma_semaphore, #tpu.memory_space<semaphore_mem>>
    %147 = tpu.memref_squeeze %146 : memref<1x!tpu.dma_semaphore, #tpu.memory_space<semaphore_mem>> -> memref<!tpu.dma_semaphore, #tpu.memory_space<semaphore_mem>>
    tpu.wait_dma2 semaphore(%147 : memref<!tpu.dma_semaphore, #tpu.memory_space<semaphore_mem>>) src(%arg7 : memref<128x2048xbf16, #tpu.memory_space<any>>) dst(%arg11 : memref<128x2048xbf16, #tpu.memory_space<vmem>>)
    %c1_i32_37 = arith.constant 1 : i32
    %148 = tpu.memref_slice %arg13[%c1_i32_37] : memref<2x!tpu.dma_semaphore, #tpu.memory_space<semaphore_mem>> -> memref<1x!tpu.dma_semaphore, #tpu.memory_space<semaphore_mem>>
    %149 = tpu.memref_squeeze %148 : memref<1x!tpu.dma_semaphore, #tpu.memory_space<semaphore_mem>> -> memref<!tpu.dma_semaphore, #tpu.memory_space<semaphore_mem>>
    tpu.wait_dma2 semaphore(%149 : memref<!tpu.dma_semaphore, #tpu.memory_space<semaphore_mem>>) src(%arg8 : memref<2048x128xbf16, #tpu.memory_space<any>>) dst(%arg12 : memref<2048x128xbf16, #tpu.memory_space<vmem>>)
    %150 = arith.truncf %145 : vector<16x128xf32> to vector<16x128xbf16>
    %cst_38 = arith.constant 0.000000e+00 : f32
    %151 = vector.broadcast %cst_38 : f32 to vector<16x128xf32>
    %c0_39 = arith.constant 0 : index
    %c0_40 = arith.constant 0 : index
    %152 = vector.load %arg11[%c0_39, %c0_40] : memref<128x2048xbf16, #tpu.memory_space<vmem>>, vector<128x512xbf16>
    %cst_41 = arith.constant dense<0.000000e+00> : vector<16x512xf32>
    %153 = tpu.matmul %150, %152, %cst_41 {dimension_numbers = #tpu.dot_dimension_numbers<[1], [0], [0], [1], [0, 0, 1, 1], [], []>} : vector<16x128xbf16>, vector<128x512xbf16>, vector<16x512xf32> -> vector<16x512xf32>
    %c0_42 = arith.constant 0 : index
    %c0_43 = arith.constant 0 : index
    %154 = vector.load %arg6[%c0_42, %c0_43] : memref<1x2048xf32, #tpu.memory_space<vmem>>, vector<1x512xf32>
    %155 = vector.broadcast %154 : vector<1x512xf32> to vector<16x512xf32>
    %156 = arith.addf %153, %155 : vector<16x512xf32>
    %cst_44 = arith.constant 0.000000e+00 : f32
    %157 = vector.broadcast %cst_44 : f32 to vector<16x512xf32>
    %158 = arith.maximumf %156, %157 : vector<16x512xf32>
    %159 = arith.truncf %158 : vector<16x512xf32> to vector<16x512xbf16>
    %c0_45 = arith.constant 0 : index
    %c0_46 = arith.constant 0 : index
    %160 = vector.load %arg12[%c0_45, %c0_46] : memref<2048x128xbf16, #tpu.memory_space<vmem>>, vector<512x128xbf16>
    %cst_47 = arith.constant dense<0.000000e+00> : vector<16x128xf32>
    %161 = tpu.matmul %159, %160, %cst_47 {dimension_numbers = #tpu.dot_dimension_numbers<[1], [0], [0], [1], [0, 0, 1, 1], [], []>} : vector<16x512xbf16>, vector<512x128xbf16>, vector<16x128xf32> -> vector<16x128xf32>
    %162 = arith.addf %151, %161 : vector<16x128xf32>
    %c0_48 = arith.constant 0 : index
    %c512 = arith.constant 512 : index
    %163 = vector.load %arg11[%c0_48, %c512] : memref<128x2048xbf16, #tpu.memory_space<vmem>>, vector<128x512xbf16>
    %cst_49 = arith.constant dense<0.000000e+00> : vector<16x512xf32>
    %164 = tpu.matmul %150, %163, %cst_49 {dimension_numbers = #tpu.dot_dimension_numbers<[1], [0], [0], [1], [0, 0, 1, 1], [], []>} : vector<16x128xbf16>, vector<128x512xbf16>, vector<16x512xf32> -> vector<16x512xf32>
    %c0_50 = arith.constant 0 : index
    %c512_51 = arith.constant 512 : index
    %165 = vector.load %arg6[%c0_50, %c512_51] : memref<1x2048xf32, #tpu.memory_space<vmem>>, vector<1x512xf32>
    %166 = vector.broadcast %165 : vector<1x512xf32> to vector<16x512xf32>
    %167 = arith.addf %164, %166 : vector<16x512xf32>
    %cst_52 = arith.constant 0.000000e+00 : f32
    %168 = vector.broadcast %cst_52 : f32 to vector<16x512xf32>
    %169 = arith.maximumf %167, %168 : vector<16x512xf32>
    %170 = arith.truncf %169 : vector<16x512xf32> to vector<16x512xbf16>
    %c512_53 = arith.constant 512 : index
    %c0_54 = arith.constant 0 : index
    %171 = vector.load %arg12[%c512_53, %c0_54] : memref<2048x128xbf16, #tpu.memory_space<vmem>>, vector<512x128xbf16>
    %cst_55 = arith.constant dense<0.000000e+00> : vector<16x128xf32>
    %172 = tpu.matmul %170, %171, %cst_55 {dimension_numbers = #tpu.dot_dimension_numbers<[1], [0], [0], [1], [0, 0, 1, 1], [], []>} : vector<16x512xbf16>, vector<512x128xbf16>, vector<16x128xf32> -> vector<16x128xf32>
    %173 = arith.addf %162, %172 : vector<16x128xf32>
    %c0_56 = arith.constant 0 : index
    %c1024 = arith.constant 1024 : index
    %174 = vector.load %arg11[%c0_56, %c1024] : memref<128x2048xbf16, #tpu.memory_space<vmem>>, vector<128x512xbf16>
    %cst_57 = arith.constant dense<0.000000e+00> : vector<16x512xf32>
    %175 = tpu.matmul %150, %174, %cst_57 {dimension_numbers = #tpu.dot_dimension_numbers<[1], [0], [0], [1], [0, 0, 1, 1], [], []>} : vector<16x128xbf16>, vector<128x512xbf16>, vector<16x512xf32> -> vector<16x512xf32>
    %c0_58 = arith.constant 0 : index
    %c1024_59 = arith.constant 1024 : index
    %176 = vector.load %arg6[%c0_58, %c1024_59] : memref<1x2048xf32, #tpu.memory_space<vmem>>, vector<1x512xf32>
    %177 = vector.broadcast %176 : vector<1x512xf32> to vector<16x512xf32>
    %178 = arith.addf %175, %177 : vector<16x512xf32>
    %cst_60 = arith.constant 0.000000e+00 : f32
    %179 = vector.broadcast %cst_60 : f32 to vector<16x512xf32>
    %180 = arith.maximumf %178, %179 : vector<16x512xf32>
    %181 = arith.truncf %180 : vector<16x512xf32> to vector<16x512xbf16>
    %c1024_61 = arith.constant 1024 : index
    %c0_62 = arith.constant 0 : index
    %182 = vector.load %arg12[%c1024_61, %c0_62] : memref<2048x128xbf16, #tpu.memory_space<vmem>>, vector<512x128xbf16>
    %cst_63 = arith.constant dense<0.000000e+00> : vector<16x128xf32>
    %183 = tpu.matmul %181, %182, %cst_63 {dimension_numbers = #tpu.dot_dimension_numbers<[1], [0], [0], [1], [0, 0, 1, 1], [], []>} : vector<16x512xbf16>, vector<512x128xbf16>, vector<16x128xf32> -> vector<16x128xf32>
    %184 = arith.addf %173, %183 : vector<16x128xf32>
    %c0_64 = arith.constant 0 : index
    %c1536 = arith.constant 1536 : index
    %185 = vector.load %arg11[%c0_64, %c1536] : memref<128x2048xbf16, #tpu.memory_space<vmem>>, vector<128x512xbf16>
    %cst_65 = arith.constant dense<0.000000e+00> : vector<16x512xf32>
    %186 = tpu.matmul %150, %185, %cst_65 {dimension_numbers = #tpu.dot_dimension_numbers<[1], [0], [0], [1], [0, 0, 1, 1], [], []>} : vector<16x128xbf16>, vector<128x512xbf16>, vector<16x512xf32> -> vector<16x512xf32>
    %c0_66 = arith.constant 0 : index
    %c1536_67 = arith.constant 1536 : index
    %187 = vector.load %arg6[%c0_66, %c1536_67] : memref<1x2048xf32, #tpu.memory_space<vmem>>, vector<1x512xf32>
    %188 = vector.broadcast %187 : vector<1x512xf32> to vector<16x512xf32>
    %189 = arith.addf %186, %188 : vector<16x512xf32>
    %cst_68 = arith.constant 0.000000e+00 : f32
    %190 = vector.broadcast %cst_68 : f32 to vector<16x512xf32>
    %191 = arith.maximumf %189, %190 : vector<16x512xf32>
    %192 = arith.truncf %191 : vector<16x512xf32> to vector<16x512xbf16>
    %c1536_69 = arith.constant 1536 : index
    %c0_70 = arith.constant 0 : index
    %193 = vector.load %arg12[%c1536_69, %c0_70] : memref<2048x128xbf16, #tpu.memory_space<vmem>>, vector<512x128xbf16>
    %cst_71 = arith.constant dense<0.000000e+00> : vector<16x128xf32>
    %194 = tpu.matmul %192, %193, %cst_71 {dimension_numbers = #tpu.dot_dimension_numbers<[1], [0], [0], [1], [0, 0, 1, 1], [], []>} : vector<16x512xbf16>, vector<512x128xbf16>, vector<16x128xf32> -> vector<16x128xf32>
    %195 = arith.addf %184, %194 : vector<16x128xf32>
    %196 = vector.broadcast %12 : vector<1x128xf32> to vector<16x128xf32>
    %197 = arith.addf %195, %196 : vector<16x128xf32>
    %198 = arith.addf %145, %197 : vector<16x128xf32>
    %cst_72 = arith.constant dense<0.000000e+00> : vector<16xf32>
    %199 = vector.multi_reduction <add>, %198, %cst_72 [1] : vector<16x128xf32> to vector<16xf32>
    %200 = vector.shape_cast %199 : vector<16xf32> to vector<16x1xf32>
    %cst_73 = arith.constant 1.280000e+02 : f32
    %201 = vector.broadcast %cst_73 : f32 to vector<16x1xf32>
    %202 = arith.divf %200, %201 : vector<16x1xf32>
    %203 = vector.broadcast %202 : vector<16x1xf32> to vector<16x128xf32>
    %204 = arith.subf %198, %203 : vector<16x128xf32>
    %205 = arith.mulf %204, %204 : vector<16x128xf32>
    %cst_74 = arith.constant dense<0.000000e+00> : vector<16xf32>
    %206 = vector.multi_reduction <add>, %205, %cst_74 [1] : vector<16x128xf32> to vector<16xf32>
    %207 = vector.shape_cast %206 : vector<16xf32> to vector<16x1xf32>
    %cst_75 = arith.constant 1.280000e+02 : f32
    %208 = vector.broadcast %cst_75 : f32 to vector<16x1xf32>
    %209 = arith.divf %207, %208 : vector<16x1xf32>
    %210 = vector.broadcast %202 : vector<16x1xf32> to vector<16x128xf32>
    %211 = arith.subf %198, %210 : vector<16x128xf32>
    %cst_76 = arith.constant 9.99999974E-6 : f32
    %212 = vector.broadcast %cst_76 : f32 to vector<16x1xf32>
    %213 = arith.addf %209, %212 : vector<16x1xf32>
    %214 = math.rsqrt %213 : vector<16x1xf32>
    %215 = vector.broadcast %214 : vector<16x1xf32> to vector<16x128xf32>
    %216 = arith.mulf %211, %215 : vector<16x128xf32>
    %217 = vector.broadcast %13 : vector<1x128xf32> to vector<16x128xf32>
    %218 = arith.mulf %216, %217 : vector<16x128xf32>
    %219 = vector.broadcast %14 : vector<1x128xf32> to vector<16x128xf32>
    %220 = arith.addf %218, %219 : vector<16x128xf32>
    %c0_77 = arith.constant 0 : index
    %c0_78 = arith.constant 0 : index
    %221 = vector.load %arg9[%c0_77, %c0_78] : memref<16x128xf32, #tpu.memory_space<vmem>>, vector<16x128xf32>
    tpu.vector_store %arg9[%c0_77, %c0_78], %220 {strides = array<i32>} : memref<16x128xf32, #tpu.memory_space<vmem>>, vector<16x128xf32>,
    %222 = vector.broadcast %15 : vector<1x128xf32> to vector<16x128xf32>
    %223 = arith.mulf %220, %222 : vector<16x128xf32>
    %cst_79 = arith.constant dense<0.000000e+00> : vector<16xf32>
    %224 = vector.multi_reduction <add>, %223, %cst_79 [1] : vector<16x128xf32> to vector<16xf32>
    %225 = vector.shape_cast %224 : vector<16xf32> to vector<1x1x16xf32>
    %226 = vector.shape_cast %16 : vector<1x1xf32> to vector<1x1x1xf32>
    %227 = vector.broadcast %226 : vector<1x1x1xf32> to vector<1x1x16xf32>
    %228 = arith.addf %225, %227 : vector<1x1x16xf32>
    %c0_80 = arith.constant 0 : index
    %c0_81 = arith.constant 0 : index
    %c0_82 = arith.constant 0 : index
    %229 = vector.load %arg10[%c0_80, %c0_81, %c0_82] : memref<1x1x16xf32, #tpu.memory_space<vmem>>, vector<1x1x16xf32>
    tpu.vector_store %arg10[%c0_80, %c0_81, %c0_82], %228 {strides = array<i32>} : memref<1x1x16xf32, #tpu.memory_space<vmem>>, vector<1x1x16xf32>,
    return
  }
  func.func @transform_0(%arg0: i32) -> (i32, i32) {
    %c0_i32 = arith.constant 0 : i32
    %c0_i32_0 = arith.constant 0 : i32
    return %arg0, %c0_i32 : i32, i32
  }
  func.func @transform_1(%arg0: i32) -> (i32, i32) {
    %c0_i32 = arith.constant 0 : i32
    %c0_i32_0 = arith.constant 0 : i32
    %c0_i32_1 = arith.constant 0 : i32
    return %c0_i32, %c0_i32_0 : i32, i32
  }
  func.func @transform_2(%arg0: i32) -> (i32, i32) {
    %c0_i32 = arith.constant 0 : i32
    %c0_i32_0 = arith.constant 0 : i32
    %c0_i32_1 = arith.constant 0 : i32
    return %c0_i32, %c0_i32_0 : i32, i32
  }
  func.func @transform_3(%arg0: i32) -> (i32, i32) {
    %c0_i32 = arith.constant 0 : i32
    %c0_i32_0 = arith.constant 0 : i32
    %c0_i32_1 = arith.constant 0 : i32
    return %c0_i32, %c0_i32_0 : i32, i32
  }
  func.func @transform_4(%arg0: i32) -> (i32, i32) {
    %c0_i32 = arith.constant 0 : i32
    %c0_i32_0 = arith.constant 0 : i32
    %c0_i32_1 = arith.constant 0 : i32
    return %c0_i32, %c0_i32_0 : i32, i32
  }
  func.func @transform_5(%arg0: i32) -> (i32, i32) {
    %c0_i32 = arith.constant 0 : i32
    %c0_i32_0 = arith.constant 0 : i32
    %c0_i32_1 = arith.constant 0 : i32
    return %c0_i32, %c0_i32_0 : i32, i32
  }
  func.func @transform_8(%arg0: i32) -> (i32, i32) {
    %c0_i32 = arith.constant 0 : i32
    %c0_i32_0 = arith.constant 0 : i32
    return %arg0, %c0_i32 : i32, i32
  }
  func.func @transform_9(%arg0: i32) -> (i32, i32, i32) {
    %c0_i32 = arith.constant 0 : i32
    %c0_i32_0 = arith.constant 0 : i32
    %c0_i32_1 = arith.constant 0 : i32
    return %arg0, %c0_i32, %c0_i32_0 : i32, i32, i32
  }
}

</mosaic_0001>

<llo_original>
// kernel: tpu_custom_call.1
$region0: #{tpu_custom_call.1}
  #allocation0 [shape = 'u32[]', space=smem, size = 0x4, offset = 0x4, fixed_abs, tag = 'smem constant byte address 0x4 - core index']
  #allocation1 [shape = 'u32[144,128]{1,0:T(1,128)}', space=vmem, size = 0x12000, scoped, tag = 'internal scratch']
  #allocation2 [shape = 'bf16[128,2048]{1,0:T(8,128)(2,1)}', space=vmem, size = 0x80000, scoped, tag = 'scratch operand']
  #allocation3 [shape = 'bf16[2048,128]{1,0:T(8,128)(2,1)}', space=vmem, size = 0x80000, scoped, tag = 'scratch operand']
  #allocation4 [shape = 's32[2]{0}', space=sflag, size = 0x8, scoped, tag = 'scratch operand']
  #allocation19 [shape = 's32[]', space=sflag, size = 0x4, offset = 0, fixed_abs, tag = 'sflag constant byte address 0x0 - dummy sync flag']
  #allocation20 [shape = 's32[]', space=sflag, size = 0x4, offset = 0, fixed_abs, tag = 'sflag constant byte address 0x0 - dummy sync flag']
  #allocation21 [shape = 'u32[]', space=smem, size = 0x4, offset = 0x44, fixed_abs, tag = 'smem constant byte address 0x44 - assertion arg 0']
  #allocation22 [shape = 'u32[]', space=smem, size = 0x4, offset = 0x48, fixed_abs, tag = 'smem constant byte address 0x48 - assertion arg 1']
  #allocation23 [shape = 's32[]', space=sflag, size = 0x4, offset = 0, fixed_abs, tag = 'sflag constant byte address 0x0 - dummy sync flag']
  #allocation24 [shape = 's32[]', space=sflag, size = 0x4, offset = 0, fixed_abs, tag = 'sflag constant byte address 0x0 - dummy sync flag']
  %s0 = inlined_call_operand.hbm [shape: f32[16,32], index: 0, kind: input, shape index: {}]
  %s1 = inlined_call_operand.hbm [shape: f32[19,128], index: 1, kind: input, shape index: {}]
  %s2 = inlined_call_operand.hbm [shape: bf16[32,128], index: 2, kind: input, shape index: {}]
  %s3 = inlined_call_operand.hbm [shape: bf16[128,384], index: 3, kind: input, shape index: {}]
  %s4 = inlined_call_operand.hbm [shape: bf16[128,128], index: 4, kind: input, shape index: {}]
  %s5 = inlined_call_operand.hbm [shape: f32[1,2048], index: 5, kind: input, shape index: {}]
  %s6 = inlined_call_operand.hbm [shape: bf16[128,2048], index: 6, kind: input, shape index: {}]
  %s7 = inlined_call_operand.hbm [shape: bf16[2048,128], index: 7, kind: input, shape index: {}]
  %s8 = inlined_call_operand.hbm [shape: f32[16,128], index: 8, kind: output, shape index: {0}]
  %s9 = inlined_call_operand.hbm [shape: f32[1,1,16], index: 9, kind: output, shape index: {1}]
  %10 = xla_tuple %s8, %s9
  %s11 = sld [smem:[#allocation0]]
  $region74: #{tpu_custom_call.1} parent=0
    _
  %s13 = ssub.s32 1, %s11
  %s14 = scalar_select 0, %s13, %s11
  $region1: #{tpu_custom_call.1} parent=0
    #allocation5 [shape = 'u8[8192]{0}', space=vmem, size = 0x2000, scoped, tag = 'input window, operand 0, single buffered']
    #allocation6 [shape = 's32[1]{0}', space=sflag, size = 0x4, scoped, tag = 'scoped memory for tpu_custom_call.1']
    #allocation7 [shape = 's32[1]{0}', space=sflag, size = 0x4, scoped, tag = 'scoped memory for tpu_custom_call.1']
    #allocation8 [shape = 'u8[12288]{0}', space=vmem, size = 0x3000, scoped, tag = 'input window, operand 1, single buffered']
    #allocation9 [shape = 's32[1]{0}', space=sflag, size = 0x4, scoped, tag = 'scoped memory for tpu_custom_call.1']
    #allocation10 [shape = 'u8[8192]{0}', space=vmem, size = 0x2000, scoped, tag = 'input window, operand 2, single buffered']
    #allocation11 [shape = 'u8[98304]{0}', space=vmem, size = 0x18000, scoped, tag = 'input window, operand 3, single buffered']
    #allocation12 [shape = 's32[1]{0}', space=sflag, size = 0x4, scoped, tag = 'scoped memory for tpu_custom_call.1']
    #allocation13 [shape = 'u8[32768]{0}', space=vmem, size = 0x8000, scoped, tag = 'input window, operand 4, single buffered']
    #allocation14 [shape = 'u8[8192]{0}', space=vmem, size = 0x2000, scoped, tag = 'input window, operand 5, single buffered']
    #allocation15 [shape = 's32[1]{0}', space=sflag, size = 0x4, scoped, tag = 'scoped memory for tpu_custom_call.1']
    #allocation16 [shape = 'u8[8192]{0}', space=vmem, size = 0x2000, scoped, tag = 'output window, operand 0, single buffered']
    #allocation17 [shape = 'u8[512]{0}', space=vmem, size = 0x400, scoped, tag = 'output window, operand 1, single buffered']
    #allocation18 [shape = 's32[1]{0}', space=sflag, size = 0x4, scoped, tag = 'scoped memory for tpu_custom_call.1']
    %15 = vsyncpa [#allocation6], 0
    %16 = vsyncpa [#allocation9], 0
    %17 = vsyncpa [#allocation12], 0
    %18 = vsyncpa [#allocation15], 0
    %19 = vsyncpa [#allocation7], 0
    %20 = vsyncpa [#allocation18], 0
    // Predicated region
    $region2: #{tpu_custom_call.1} parent=1 // pred_check
      _
    $region3: #{tpu_custom_call.1} parent=1 // pred_check_branch
      %22 = sbr.rel (0) target = $region5
    $region4: #{tpu_custom_call.1} parent=1 // pred_region
      %s24 = ssub.s32 256, 256
      %25 = vsyncadd [#allocation6], %s24
      %s26 = sshll.u32 [#allocation5], 4
      %s27 = int_to_ptr.vmem [resolvable:$true] %s26
      %32 = dma.hbm_to_vmem [thread:$0]  %s0, 256, %s27, [#allocation6], 128, 128, 8
    $region5: #{tpu_custom_call.1} parent=1 // pred_fallthru
      _
    // Predicated region
    $region6: #{tpu_custom_call.1} parent=1 // pred_check
      _
    $region7: #{tpu_custom_call.1} parent=1 // pred_check_branch
      %34 = sbr.rel (0) target = $region9
    $region8: #{tpu_custom_call.1} parent=1 // pred_region
      %s36 = ssub.s32 384, 384
      %37 = vsyncadd [#allocation9], %s36
      %s38 = sshll.u32 [#allocation8], 4
      %s39 = int_to_ptr.vmem [resolvable:$true] %s38
      %44 = dma.hbm_to_vmem [thread:$0]  %s1, 384, %s39, [#allocation9], 128, 128, 8
    $region9: #{tpu_custom_call.1} parent=1 // pred_fallthru
      _
    // Predicated region
    $region10: #{tpu_custom_call.1} parent=1 // pred_check
      _
    $region11: #{tpu_custom_call.1} parent=1 // pred_check_branch
      %46 = sbr.rel (0) target = $region13
    $region12: #{tpu_custom_call.1} parent=1 // pred_region
      %s48 = ssub.s32 256, 256
      %49 = vsyncadd [#allocation9], %s48
      %s50 = sshll.u32 [#allocation10], 4
      %s51 = int_to_ptr.vmem [resolvable:$true] %s50
      %56 = dma.hbm_to_vmem [thread:$0]  %s2, 256, %s51, [#allocation9], 64, 64, 4
    $region13: #{tpu_custom_call.1} parent=1 // pred_fallthru
      _
    // Predicated region
    $region14: #{tpu_custom_call.1} parent=1 // pred_check
      _
    $region15: #{tpu_custom_call.1} parent=1 // pred_check_branch
      %58 = sbr.rel (0) target = $region17
    $region16: #{tpu_custom_call.1} parent=1 // pred_region
      %s60 = ssub.s32 3072, 3072
      %61 = vsyncadd [#allocation12], %s60
      %s62 = sshll.u32 [#allocation11], 4
      %s63 = int_to_ptr.vmem [resolvable:$true] %s62
      %68 = dma.hbm_to_vmem [thread:$0]  %s3, 3072, %s63, [#allocation12], 192, 192, 12
    $region17: #{tpu_custom_call.1} parent=1 // pred_fallthru
      _
    // Predicated region
    $region18: #{tpu_custom_call.1} parent=1 // pred_check
      _
    $region19: #{tpu_custom_call.1} parent=1 // pred_check_branch
      %70 = sbr.rel (0) target = $region21
    $region20: #{tpu_custom_call.1} parent=1 // pred_region
      %s72 = ssub.s32 1024, 1024
      %73 = vsyncadd [#allocation12], %s72
      %s74 = sshll.u32 [#allocation13], 4
      %s75 = int_to_ptr.vmem [resolvable:$true] %s74
      %80 = dma.hbm_to_vmem [thread:$0]  %s4, 1024, %s75, [#allocation12], 64, 64, 4
    $region21: #{tpu_custom_call.1} parent=1 // pred_fallthru
      _
    // Predicated region
    $region22: #{tpu_custom_call.1} parent=1 // pred_check
      _
    $region23: #{tpu_custom_call.1} parent=1 // pred_check_branch
      %82 = sbr.rel (0) target = $region25
    $region24: #{tpu_custom_call.1} parent=1 // pred_region
      %s84 = ssub.s32 256, 256
      %85 = vsyncadd [#allocation15], %s84
      %s87 = sshll.u32 [#allocation14], 4
      %s88 = int_to_ptr.vmem [resolvable:$true] %s87
      %90 = dma.hbm_to_vmem [thread:$0]  %s5, 256, %s88, [#allocation15]
    $region25: #{tpu_custom_call.1} parent=1 // pred_fallthru
      _
    // Predicated region
    $region26: #{tpu_custom_call.1} parent=1 // pred_check
      _
    $region27: #{tpu_custom_call.1} parent=1 // pred_check_branch
      %92 = sbr.rel (0) target = $region29
    $region28: #{tpu_custom_call.1} parent=1 // pred_region
      %93 = dma.done [#allocation6], 256
    $region29: #{tpu_custom_call.1} parent=1 // pred_fallthru
      _
    // Predicated region
    $region30: #{tpu_custom_call.1} parent=1 // pred_check
      _
    $region31: #{tpu_custom_call.1} parent=1 // pred_check_branch
      %95 = sbr.rel (0) target = $region33
    $region32: #{tpu_custom_call.1} parent=1 // pred_region
      %96 = dma.done [#allocation9], 384
    $region33: #{tpu_custom_call.1} parent=1 // pred_fallthru
      _
    // Predicated region
    $region34: #{tpu_custom_call.1} parent=1 // pred_check
      _
    $region35: #{tpu_custom_call.1} parent=1 // pred_check_branch
      %98 = sbr.rel (0) target = $region37
    $region36: #{tpu_custom_call.1} parent=1 // pred_region
      %99 = dma.done [#allocation9], 256
    $region37: #{tpu_custom_call.1} parent=1 // pred_fallthru
      _
    // Predicated region
    $region38: #{tpu_custom_call.1} parent=1 // pred_check
      _
    $region39: #{tpu_custom_call.1} parent=1 // pred_check_branch
      %101 = sbr.rel (0) target = $region41
    $region40: #{tpu_custom_call.1} parent=1 // pred_region
      %102 = dma.done [#allocation12], 3072
    $region41: #{tpu_custom_call.1} parent=1 // pred_fallthru
      _
    // Predicated region
    $region42: #{tpu_custom_call.1} parent=1 // pred_check
      _
    $region43: #{tpu_custom_call.1} parent=1 // pred_check_branch
      %104 = sbr.rel (0) target = $region45
    $region44: #{tpu_custom_call.1} parent=1 // pred_region
      %105 = dma.done [#allocation12], 1024
    $region45: #{tpu_custom_call.1} parent=1 // pred_fallthru
      _
    // Predicated region
    $region46: #{tpu_custom_call.1} parent=1 // pred_check
      _
    $region47: #{tpu_custom_call.1} parent=1 // pred_check_branch
      %107 = sbr.rel (0) target = $region49
    $region48: #{tpu_custom_call.1} parent=1 // pred_region
      %108 = dma.done [#allocation15], 256
    $region49: #{tpu_custom_call.1} parent=1 // pred_fallthru
      _
    // Predicated region
    $region50: #{tpu_custom_call.1} parent=1 // pred_check
      _
    $region51: #{tpu_custom_call.1} parent=1 // pred_check_branch
      %111 = sbr.rel target = $region53
    $region52: #{tpu_custom_call.1} parent=1 // pred_region
      %112 = sst [smem:[#allocation21]] [#allocation20]
      %113 = sst [smem:[#allocation22]] [#allocation19]
    $region53: #{tpu_custom_call.1} parent=1 // pred_fallthru
      _
    %115 = shalt.err (0)
    %s117 = sshll.u32 [#allocation2], 4
    %s118 = int_to_ptr.vmem [resolvable:$true] %s117
    %120 = dma.hbm_to_vmem [thread:$0]  %s6, 16384, %s118, [#allocation4]
    %s121 = scalar_lea.sflag [#allocation4], 1
    // Predicated region
    $region54: #{tpu_custom_call.1} parent=1 // pred_check
      _
    $region55: #{tpu_custom_call.1} parent=1 // pred_check_branch
      %123 = sbr.rel target = $region57
    $region56: #{tpu_custom_call.1} parent=1 // pred_region
      %124 = sst [smem:[#allocation21]] [#allocation24]
      %125 = sst [smem:[#allocation22]] [#allocation23]
    $region57: #{tpu_custom_call.1} parent=1 // pred_fallthru
      _
    %127 = shalt.err (0)
    %s129 = sshll.u32 [#allocation3], 4
    %s130 = int_to_ptr.vmem [resolvable:$true] %s129
    %132 = dma.hbm_to_vmem [thread:$0]  %s7, 16384, %s130, %s121
    %v133 = vld [vmem:[#allocation8] sm:$0xff]
    %v134 = vld [vmem:[#allocation8 + $0x8] sm:$0xff]
    %v135 = vld [vmem:[#allocation8 + $0x10] sm:$0x7]
    %v136 = vld [vmem:[#allocation5] sm:$0xff]
    %v137 = vld [vmem:[#allocation5 + $0x8] sm:$0xff]
    %v138 = vpack.c.bf16 %v137, %v136
    %v139 = vld [vmem:[#allocation10] sm:$0xf]
    %v140 = vld [vmem:[#allocation10 + $0x4] sm:$0xf]
    %v141 = vld [vmem:[#allocation10 + $0x8] sm:$0xf]
    %v142 = vld [vmem:[#allocation10 + $0xc] sm:$0xf]
    %v147 = vunpack.c.l.b16 %v139
    %v148 = vunpack.c.l.b16 %v140
    %v149 = vunpack.c.l.b16 %v141
    %v150 = vunpack.c.l.b16 %v142
    %v151 = vpack.c.b16 %v148, %v147
    %v152 = vpack.c.b16 %v150, %v149
    %vm155 = vcmask 261120
    %v157 = vsel %vm155, %v138, 0
    %159 = vmatprep.subr.bf16.mxu0 0
    %160 = vmatpush1.bf16.msra.mxu0 0
    %161 = vmatprep.subr.bf16.mxu0 0
    %162 = vmatpush1.bf16.msra.mxu0 0
    %163 = vmatprep.subr.bf16.mxu0 0
    %164 = vmatpush1.bf16.msra.mxu0 0
    %165 = vmatprep.subr.bf16.mxu0 0
    %166 = vmatpush1.bf16.msra.mxu0 0
    %167 = vmatprep.subr.bf16.mxu0 0
    %168 = vmatpush1.bf16.msra.mxu0 0
    %169 = vmatprep.subr.bf16.mxu0 0
    %170 = vmatpush1.bf16.msra.mxu0 0
    %171 = vmatprep.subr.bf16.mxu0 0
    %172 = vmatpush1.bf16.msra.mxu0 %v152
    %173 = vmatprep.subr.bf16.mxu0 0
    %174 = vmatpush1.bf16.msra.mxu0 %v151
    %175 = vmatprep.subr.bf16.mxu0 0
    %176 = vmatpush2.bf16.msra.mxu0 0
    %177 = vmatprep.subr.bf16.mxu0 0
    %178 = vmatpush2.bf16.msra.mxu0 0
    %179 = vmatprep.subr.bf16.mxu0 0
    %180 = vmatpush2.bf16.msra.mxu0 0
    %181 = vmatprep.subr.bf16.mxu0 0
    %182 = vmatpush2.bf16.msra.mxu0 0
    %183 = vmatprep.subr.bf16.mxu0 0
    %184 = vmatpush2.bf16.msra.mxu0 0
    %185 = vmatprep.subr.bf16.mxu0 0
    %186 = vmatpush2.bf16.msra.mxu0 0
    %187 = vmatprep.subr.bf16.mxu0 0
    %188 = vmatpush2.bf16.msra.mxu0 0
    %189 = vmatprep.subr.bf16.mxu0 0
    %190 = vmatpush2.bf16.msra.mxu0 0
    %191 = vmatprep.mubr.bf16.mxu0 0
    %192 = vmatmul.mubr.bf16.gmra.mxu0 %v157
    %v193 = vpop.f32.mrf.mxu0
    %v194 = vadd.f32 0.0, %v193
    %v195 = vpop.f32.mrf.mxu0
    %v196 = vpop.f32.mrf.mxu0
    %v197 = vadd.f32 0.0, %v196
    %v198 = vpop.f32.mrf.mxu0
    %199 = vdwg.mxu0
    %v200 = vadd.f32 %v194, %v133
    %v201 = vadd.f32 %v197, %v133
    %v202 = vpack.c.bf16 %v201, %v200
    %v203 = vld [vmem:[#allocation11] sm:$0xff]
    %v204 = vld [vmem:[#allocation11 + $0x8] sm:$0xf]
    %v205 = vld [vmem:[#allocation11 + $0xc] sm:$0xff]
    %v206 = vld [vmem:[#allocation11 + $0x14] sm:$0xf]
    %v207 = vld [vmem:[#allocation11 + $0x18] sm:$0xff]
    %v208 = vld [vmem:[#allocation11 + $0x20] sm:$0xf]
    %v209 = vld [vmem:[#allocation11 + $0x24] sm:$0xff]
    %v210 = vld [vmem:[#allocation11 + $0x2c] sm:$0xf]
    %v211 = vld [vmem:[#allocation11 + $0x30] sm:$0xff]
    %v212 = vld [vmem:[#allocation11 + $0x38] sm:$0xf]
    %v213 = vld [vmem:[#allocation11 + $0x3c] sm:$0xff]
    %v214 = vld [vmem:[#allocation11 + $0x44] sm:$0xf]
    %v215 = vld [vmem:[#allocation11 + $0x48] sm:$0xff]
    %v216 = vld [vmem:[#allocation11 + $0x50] sm:$0xf]
    %v217 = vld [vmem:[#allocation11 + $0x54] sm:$0xff]
    %v218 = vld [vmem:[#allocation11 + $0x5c] sm:$0xf]
    %v219 = vld [vmem:[#allocation11 + $0x60] sm:$0xff]
    %v220 = vld [vmem:[#allocation11 + $0x68] sm:$0xf]
    %v221 = vld [vmem:[#allocation11 + $0x6c] sm:$0xff]
    %v222 = vld [vmem:[#allocation11 + $0x74] sm:$0xf]
    %v223 = vld [vmem:[#allocation11 + $0x78] sm:$0xff]
    %v224 = vld [vmem:[#allocation11 + $0x80] sm:$0xf]
    %v225 = vld [vmem:[#allocation11 + $0x84] sm:$0xff]
    %v226 = vld [vmem:[#allocation11 + $0x8c] sm:$0xf]
    %v227 = vld [vmem:[#allocation11 + $0x90] sm:$0xff]
    %v228 = vld [vmem:[#allocation11 + $0x98] sm:$0xf]
    %v229 = vld [vmem:[#allocation11 + $0x9c] sm:$0xff]
    %v230 = vld [vmem:[#allocation11 + $0xa4] sm:$0xf]
    %v231 = vld [vmem:[#allocation11 + $0xa8] sm:$0xff]
    %v232 = vld [vmem:[#allocation11 + $0xb0] sm:$0xf]
    %v233 = vld [vmem:[#allocation11 + $0xb4] sm:$0xff]
    %v234 = vld [vmem:[#allocation11 + $0xbc] sm:$0xf]
    %v267 = vunpack.c.l.b16 %v203
    %v268 = vunpack.c.h.b16 %v203
    %v269 = vunpack.c.l.b16 %v204
    %v270 = vunpack.c.l.b16 %v205
    %v271 = vunpack.c.h.b16 %v205
    %v272 = vunpack.c.l.b16 %v206
    %v273 = vunpack.c.l.b16 %v207
    %v274 = vunpack.c.h.b16 %v207
    %v275 = vunpack.c.l.b16 %v208
    %v276 = vunpack.c.l.b16 %v209
    %v277 = vunpack.c.h.b16 %v209
    %v278 = vunpack.c.l.b16 %v210
    %v279 = vunpack.c.l.b16 %v211
    %v280 = vunpack.c.h.b16 %v211
    %v281 = vunpack.c.l.b16 %v212
    %v282 = vunpack.c.l.b16 %v213
    %v283 = vunpack.c.h.b16 %v213
    %v284 = vunpack.c.l.b16 %v214
    %v285 = vunpack.c.l.b16 %v215
    %v286 = vunpack.c.h.b16 %v215
    %v287 = vunpack.c.l.b16 %v216
    %v288 = vunpack.c.l.b16 %v217
    %v289 = vunpack.c.h.b16 %v217
    %v290 = vunpack.c.l.b16 %v218
    %v291 = vunpack.c.l.b16 %v219
    %v292 = vunpack.c.h.b16 %v219
    %v293 = vunpack.c.l.b16 %v220
    %v294 = vunpack.c.l.b16 %v221
    %v295 = vunpack.c.h.b16 %v221
    %v296 = vunpack.c.l.b16 %v222
    %v297 = vunpack.c.l.b16 %v223
    %v298 = vunpack.c.h.b16 %v223
    %v299 = vunpack.c.l.b16 %v224
    %v300 = vunpack.c.l.b16 %v225
    %v301 = vunpack.c.h.b16 %v225
    %v302 = vunpack.c.l.b16 %v226
    %v303 = vunpack.c.l.b16 %v227
    %v304 = vunpack.c.h.b16 %v227
    %v305 = vunpack.c.l.b16 %v228
    %v306 = vunpack.c.l.b16 %v229
    %v307 = vunpack.c.h.b16 %v229
    %v308 = vunpack.c.l.b16 %v230
    %v309 = vunpack.c.l.b16 %v231
    %v310 = vunpack.c.h.b16 %v231
    %v311 = vunpack.c.l.b16 %v232
    %v312 = vunpack.c.l.b16 %v233
    %v313 = vunpack.c.h.b16 %v233
    %v314 = vunpack.c.l.b16 %v234
    %v315 = vpack.c.b16 %v270, %v267
    %v316 = vpack.c.b16 %v271, %v268
    %v317 = vpack.c.b16 %v272, %v269
    %v318 = vpack.c.b16 %v276, %v273
    %v319 = vpack.c.b16 %v277, %v274
    %v320 = vpack.c.b16 %v278, %v275
    %v321 = vpack.c.b16 %v282, %v279
    %v322 = vpack.c.b16 %v283, %v280
    %v323 = vpack.c.b16 %v284, %v281
    %v324 = vpack.c.b16 %v288, %v285
    %v325 = vpack.c.b16 %v289, %v286
    %v326 = vpack.c.b16 %v290, %v287
    %v327 = vpack.c.b16 %v294, %v291
    %v328 = vpack.c.b16 %v295, %v292
    %v329 = vpack.c.b16 %v296, %v293
    %v330 = vpack.c.b16 %v300, %v297
    %v331 = vpack.c.b16 %v301, %v298
    %v332 = vpack.c.b16 %v302, %v299
    %v333 = vpack.c.b16 %v306, %v303
    %v334 = vpack.c.b16 %v307, %v304
    %v335 = vpack.c.b16 %v308, %v305
    %v336 = vpack.c.b16 %v312, %v309
    %v337 = vpack.c.b16 %v313, %v310
    %v338 = vpack.c.b16 %v314, %v311
    %363 = vmatprep.subr.bf16.mxu0 %v337
    %364 = vmatpush1.bf16.msra.mxu0 %v336
    %365 = vmatprep.subr.bf16.mxu0 %v334
    %366 = vmatpush1.bf16.msra.mxu0 %v333
    %367 = vmatprep.subr.bf16.mxu0 %v331
    %368 = vmatpush1.bf16.msra.mxu0 %v330
    %369 = vmatprep.subr.bf16.mxu0 %v328
    %370 = vmatpush1.bf16.msra.mxu0 %v327
    %371 = vmatprep.subr.bf16.mxu0 %v325
    %372 = vmatpush1.bf16.msra.mxu0 %v324
    %373 = vmatprep.subr.bf16.mxu0 %v322
    %374 = vmatpush1.bf16.msra.mxu0 %v321
    %375 = vmatprep.subr.bf16.mxu0 %v319
    %376 = vmatpush1.bf16.msra.mxu0 %v318
    %377 = vmatprep.subr.bf16.mxu0 %v316
    %378 = vmatpush1.bf16.msra.mxu0 %v315
    %379 = vmatprep.subr.bf16.mxu0 0
    %380 = vmatpush2.bf16.msra.mxu0 0
    %381 = vmatprep.subr.bf16.mxu0 0
    %382 = vmatpush2.bf16.msra.mxu0 0
    %383 = vmatprep.subr.bf16.mxu0 0
    %384 = vmatpush2.bf16.msra.mxu0 0
    %385 = vmatprep.subr.bf16.mxu0 0
    %386 = vmatpush2.bf16.msra.mxu0 0
    %387 = vmatprep.subr.bf16.mxu0 0
    %388 = vmatpush2.bf16.msra.mxu0 0
    %389 = vmatprep.subr.bf16.mxu0 0
    %390 = vmatpush2.bf16.msra.mxu0 0
    %391 = vmatprep.subr.bf16.mxu0 0
    %392 = vmatpush2.bf16.msra.mxu0 0
    %393 = vmatprep.subr.bf16.mxu0 0
    %394 = vmatpush2.bf16.msra.mxu0 0
    %395 = vmatprep.mubr.bf16.mxu0 0
    %396 = vmatmul.mubr.bf16.gmra.mxu0 %v202
    %v397 = vpop.f32.mrf.mxu0
    %v398 = vadd.f32 0.0, %v397
    %v399 = vpop.f32.mrf.mxu0
    %v400 = vadd.f32 0.0, %v399
    %v401 = vpop.f32.mrf.mxu0
    %v402 = vadd.f32 0.0, %v401
    %v403 = vpop.f32.mrf.mxu0
    %v404 = vadd.f32 0.0, %v403
    %405 = vdwg.mxu0
    %406 = vmatprep.subr.bf16.mxu0 0
    %407 = vmatpush1.bf16.msra.mxu0 %v338
    %408 = vmatprep.subr.bf16.mxu0 0
    %409 = vmatpush1.bf16.msra.mxu0 %v335
    %410 = vmatprep.subr.bf16.mxu0 0
    %411 = vmatpush1.bf16.msra.mxu0 %v332
    %412 = vmatprep.subr.bf16.mxu0 0
    %413 = vmatpush1.bf16.msra.mxu0 %v329
    %414 = vmatprep.subr.bf16.mxu0 0
    %415 = vmatpush1.bf16.msra.mxu0 %v326
    %416 = vmatprep.subr.bf16.mxu0 0
    %417 = vmatpush1.bf16.msra.mxu0 %v323
    %418 = vmatprep.subr.bf16.mxu0 0
    %419 = vmatpush1.bf16.msra.mxu0 %v320
    %420 = vmatprep.subr.bf16.mxu0 0
    %421 = vmatpush1.bf16.msra.mxu0 %v317
    %422 = vmatprep.subr.bf16.mxu0 0
    %423 = vmatpush2.bf16.msra.mxu0 0
    %424 = vmatprep.subr.bf16.mxu0 0
    %425 = vmatpush2.bf16.msra.mxu0 0
    %426 = vmatprep.subr.bf16.mxu0 0
    %427 = vmatpush2.bf16.msra.mxu0 0
    %428 = vmatprep.subr.bf16.mxu0 0
    %429 = vmatpush2.bf16.msra.mxu0 0
    %430 = vmatprep.subr.bf16.mxu0 0
    %431 = vmatpush2.bf16.msra.mxu0 0
    %432 = vmatprep.subr.bf16.mxu0 0
    %433 = vmatpush2.bf16.msra.mxu0 0
    %434 = vmatprep.subr.bf16.mxu0 0
    %435 = vmatpush2.bf16.msra.mxu0 0
    %436 = vmatprep.subr.bf16.mxu0 0
    %437 = vmatpush2.bf16.msra.mxu0 0
    %438 = vmatprep.mubr.bf16.mxu0 0
    %439 = vmatmul.mubr.bf16.gmra.mxu0 %v202
    %v440 = vpop.f32.mrf.mxu0
    %v441 = vadd.f32 0.0, %v440
    %v442 = vpop.f32.mrf.mxu0
    %v443 = vpop.f32.mrf.mxu0
    %v444 = vadd.f32 0.0, %v443
    %v445 = vpop.f32.mrf.mxu0
    %446 = vdwg.mxu0
    %v447 = vlaneseq
    %v448 = vshrl.u32 %v447, 7
    %v449 = vsub.s32 0, %v448
    %v450 = vrot.slane %v134, %v449
    %v451 = vadd.f32 %v398, %v450
    %v452 = vadd.f32 %v402, %v450
    %v453 = vpack.c.bf16 %v451, %v451
    %v454 = vpack.c.bf16 %v452, %v452
    %v455 = vlaneseq
    %v456 = vshrl.u32 %v455, 7
    %v457 = vsub.s32 1, %v456
    %v458 = vrot.slane %v134, %v457
    %v459 = vadd.f32 %v400, %v458
    %v460 = vadd.f32 %v404, %v458
    %v461 = vpack.c.bf16 %v459, %v459
    %v462 = vpack.c.bf16 %v460, %v460
    %v463 = vlaneseq
    %v464 = vshrl.u32 %v463, 7
    %v465 = vsub.s32 2, %v464
    %v466 = vrot.slane %v134, %v465
    %v467 = vadd.f32 %v441, %v466
    %v468 = vadd.f32 %v444, %v466
    %v469 = vpack.c.bf16 %v467, %v467
    %v470 = vpack.c.bf16 %v468, %v468
    %v472 = vsel %vm155, %v453, 0
    %v475 = vsel %vm155, %v461, 0
    %477 = vmatprep.subr.bf16.mxu0 0
    %478 = vmatpush1.bf16.xpose.msra.mxu0 0
    %479 = vmatprep.subr.bf16.mxu0 0
    %480 = vmatpush1.bf16.xpose.msra.mxu0 0
    %481 = vmatprep.subr.bf16.mxu0 0
    %482 = vmatpush1.bf16.xpose.msra.mxu0 0
    %483 = vmatprep.subr.bf16.mxu0 0
    %484 = vmatpush1.bf16.xpose.msra.mxu0 0
    %485 = vmatprep.subr.bf16.mxu0 0
    %486 = vmatpush1.bf16.xpose.msra.mxu0 0
    %487 = vmatprep.subr.bf16.mxu0 0
    %488 = vmatpush1.bf16.xpose.msra.mxu0 0
    %489 = vmatprep.subr.bf16.mxu0 0
    %490 = vmatpush1.bf16.xpose.msra.mxu0 0
    %491 = vmatprep.subr.bf16.mxu0 0
    %492 = vmatpush1.bf16.xpose.msra.mxu0 %v475
    %493 = vmatprep.subr.bf16.mxu0 0
    %494 = vmatpush2.bf16.xpose.msra.mxu0 0
    %495 = vmatprep.subr.bf16.mxu0 0
    %496 = vmatpush2.bf16.xpose.msra.mxu0 0
    %497 = vmatprep.subr.bf16.mxu0 0
    %498 = vmatpush2.bf16.xpose.msra.mxu0 0
    %499 = vmatprep.subr.bf16.mxu0 0
    %500 = vmatpush2.bf16.xpose.msra.mxu0 0
    %501 = vmatprep.subr.bf16.mxu0 0
    %502 = vmatpush2.bf16.xpose.msra.mxu0 0
    %503 = vmatprep.subr.bf16.mxu0 0
    %504 = vmatpush2.bf16.xpose.msra.mxu0 0
    %505 = vmatprep.subr.bf16.mxu0 0
    %506 = vmatpush2.bf16.xpose.msra.mxu0 0
    %507 = vmatprep.subr.bf16.mxu0 0
    %508 = vmatpush2.bf16.xpose.msra.mxu0 0
    %509 = vmatprep.mubr.bf16.mxu0 0
    %510 = vmatmul.mubr.bf16.gmra.mxu0 %v472
    %v511 = vpop.f32.mrf.mxu0
    %v512 = vadd.f32 0.0, %v511
    %v513 = vpop.f32.mrf.mxu0
    %v514 = vpop.f32.mrf.mxu0
    %v515 = vpop.f32.mrf.mxu0
    %516 = vdwg.mxu0
    %v518 = vsel %vm155, %v454, 0
    %v521 = vsel %vm155, %v462, 0
    %523 = vmatprep.subr.bf16.mxu0 0
    %524 = vmatpush1.bf16.xpose.msra.mxu0 0
    %525 = vmatprep.subr.bf16.mxu0 0
    %526 = vmatpush1.bf16.xpose.msra.mxu0 0
    %527 = vmatprep.subr.bf16.mxu0 0
    %528 = vmatpush1.bf16.xpose.msra.mxu0 0
    %529 = vmatprep.subr.bf16.mxu0 0
    %530 = vmatpush1.bf16.xpose.msra.mxu0 0
    %531 = vmatprep.subr.bf16.mxu0 0
    %532 = vmatpush1.bf16.xpose.msra.mxu0 0
    %533 = vmatprep.subr.bf16.mxu0 0
    %534 = vmatpush1.bf16.xpose.msra.mxu0 0
    %535 = vmatprep.subr.bf16.mxu0 0
    %536 = vmatpush1.bf16.xpose.msra.mxu0 0
    %537 = vmatprep.subr.bf16.mxu0 0
    %538 = vmatpush1.bf16.xpose.msra.mxu0 %v521
    %539 = vmatprep.subr.bf16.mxu0 0
    %540 = vmatpush2.bf16.xpose.msra.mxu0 0
    %541 = vmatprep.subr.bf16.mxu0 0
    %542 = vmatpush2.bf16.xpose.msra.mxu0 0
    %543 = vmatprep.subr.bf16.mxu0 0
    %544 = vmatpush2.bf16.xpose.msra.mxu0 0
    %545 = vmatprep.subr.bf16.mxu0 0
    %546 = vmatpush2.bf16.xpose.msra.mxu0 0
    %547 = vmatprep.subr.bf16.mxu0 0
    %548 = vmatpush2.bf16.xpose.msra.mxu0 0
    %549 = vmatprep.subr.bf16.mxu0 0
    %550 = vmatpush2.bf16.xpose.msra.mxu0 0
    %551 = vmatprep.subr.bf16.mxu0 0
    %552 = vmatpush2.bf16.xpose.msra.mxu0 0
    %553 = vmatprep.subr.bf16.mxu0 0
    %554 = vmatpush2.bf16.xpose.msra.mxu0 0
    %555 = vmatprep.mubr.bf16.mxu0 0
    %556 = vmatmul.mubr.bf16.gmra.mxu0 %v518
    %v557 = vpop.f32.mrf.mxu0
    %v558 = vadd.f32 0.0, %v557
    %v559 = vpop.f32.mrf.mxu0
    %v560 = vpop.f32.mrf.mxu0
    %v561 = vpop.f32.mrf.mxu0
    %562 = vdwg.mxu0
    %v563 = vmul.f32 %v512, 0.17677669
    %v564 = vmul.f32 %v558, 0.17677669
    %vm565 = vcmask 64512
    %v566 = vsel %vm565, %v563, -inf
    %567 = vmax.xlane.f32.xlu0 %v566
    %v568 = vpop.xlane.xlu0 %567
    %v569 = vsel %vm565, %v564, -inf
    %570 = vmax.xlane.f32.xlu0 %v569
    %v571 = vpop.xlane.xlu0 %570
    %v572 = vsub.f32 %v563, %v568
    %v573 = vsub.f32 %v564, %v571
    %v574 = vmul.f32 %v572, 1.442695
    %v575 = vpow.pop %v574
    %v576 = vmul.f32 %v573, 1.442695
    %v577 = vpow.pop %v576
    %v578 = vsel %vm565, %v575, 0.0
    %579 = vadd.xlane.f32.xlu0 %v578
    %v580 = vpop.xlane.xlu0 %579
    %v581 = vsel %vm565, %v577, 0.0
    %582 = vadd.xlane.f32.xlu0 %v581
    %v583 = vpop.xlane.xlu0 %582
    %v584 = vrcp.pop %v580
    %v585 = vrcp.pop %v583
    %v586 = vmul.f32 %v575, %v584
    %v587 = vmul.f32 %v577, %v585
    %v588 = vpack.c.bf16 %v586, %v586
    %v589 = vpack.c.bf16 %v587, %v587
    %v591 = vsel %vm565, %v588, 0
    %vm593 = vcmask 1043456
    %v595 = vsel %vm593, %v469, 0
    %597 = vmatprep.subr.bf16.mxu0 0
    %598 = vmatpush1.bf16.msra.mxu0 0
    %599 = vmatprep.subr.bf16.mxu0 0
    %600 = vmatpush1.bf16.msra.mxu0 0
    %601 = vmatprep.subr.bf16.mxu0 0
    %602 = vmatpush1.bf16.msra.mxu0 0
    %603 = vmatprep.subr.bf16.mxu0 0
    %604 = vmatpush1.bf16.msra.mxu0 0
    %605 = vmatprep.subr.bf16.mxu0 0
    %606 = vmatpush1.bf16.msra.mxu0 0
    %607 = vmatprep.subr.bf16.mxu0 0
    %608 = vmatpush1.bf16.msra.mxu0 0
    %609 = vmatprep.subr.bf16.mxu0 0
    %610 = vmatpush1.bf16.msra.mxu0 0
    %611 = vmatprep.subr.bf16.mxu0 0
    %612 = vmatpush1.bf16.msra.mxu0 %v595
    %613 = vmatprep.subr.bf16.mxu0 0
    %614 = vmatpush2.bf16.msra.mxu0 0
    %615 = vmatprep.subr.bf16.mxu0 0
    %616 = vmatpush2.bf16.msra.mxu0 0
    %617 = vmatprep.subr.bf16.mxu0 0
    %618 = vmatpush2.bf16.msra.mxu0 0
    %619 = vmatprep.subr.bf16.mxu0 0
    %620 = vmatpush2.bf16.msra.mxu0 0
    %621 = vmatprep.subr.bf16.mxu0 0
    %622 = vmatpush2.bf16.msra.mxu0 0
    %623 = vmatprep.subr.bf16.mxu0 0
    %624 = vmatpush2.bf16.msra.mxu0 0
    %625 = vmatprep.subr.bf16.mxu0 0
    %626 = vmatpush2.bf16.msra.mxu0 0
    %627 = vmatprep.subr.bf16.mxu0 0
    %628 = vmatpush2.bf16.msra.mxu0 0
    %629 = vmatprep.mubr.bf16.mxu0 0
    %630 = vmatmul.mubr.bf16.gmra.mxu0 %v591
    %v631 = vpop.f32.mrf.mxu0
    %v632 = vadd.f32 0.0, %v631
    %v633 = vpop.f32.mrf.mxu0
    %v634 = vpop.f32.mrf.mxu0
    %v635 = vpop.f32.mrf.mxu0
    %636 = vdwg.mxu0
    %v638 = vsel %vm565, %v589, 0
    %v641 = vsel %vm593, %v470, 0
    %643 = vmatprep.subr.bf16.mxu0 0
    %644 = vmatpush1.bf16.msra.mxu0 0
    %645 = vmatprep.subr.bf16.mxu0 0
    %646 = vmatpush1.bf16.msra.mxu0 0
    %647 = vmatprep.subr.bf16.mxu0 0
    %648 = vmatpush1.bf16.msra.mxu0 0
    %649 = vmatprep.subr.bf16.mxu0 0
    %650 = vmatpush1.bf16.msra.mxu0 0
    %651 = vmatprep.subr.bf16.mxu0 0
    %652 = vmatpush1.bf16.msra.mxu0 0
    %653 = vmatprep.subr.bf16.mxu0 0
    %654 = vmatpush1.bf16.msra.mxu0 0
    %655 = vmatprep.subr.bf16.mxu0 0
    %656 = vmatpush1.bf16.msra.mxu0 0
    %657 = vmatprep.subr.bf16.mxu0 0
    %658 = vmatpush1.bf16.msra.mxu0 %v641
    %659 = vmatprep.subr.bf16.mxu0 0
    %660 = vmatpush2.bf16.msra.mxu0 0
    %661 = vmatprep.subr.bf16.mxu0 0
    %662 = vmatpush2.bf16.msra.mxu0 0
    %663 = vmatprep.subr.bf16.mxu0 0
    %664 = vmatpush2.bf16.msra.mxu0 0
    %665 = vmatprep.subr.bf16.mxu0 0
    %666 = vmatpush2.bf16.msra.mxu0 0
    %667 = vmatprep.subr.bf16.mxu0 0
    %668 = vmatpush2.bf16.msra.mxu0 0
    %669 = vmatprep.subr.bf16.mxu0 0
    %670 = vmatpush2.bf16.msra.mxu0 0
    %671 = vmatprep.subr.bf16.mxu0 0
    %672 = vmatpush2.bf16.msra.mxu0 0
    %673 = vmatprep.subr.bf16.mxu0 0
    %674 = vmatpush2.bf16.msra.mxu0 0
    %675 = vmatprep.mubr.bf16.mxu0 0
    %676 = vmatmul.mubr.bf16.gmra.mxu0 %v638
    %v677 = vpop.f32.mrf.mxu0
    %v678 = vadd.f32 0.0, %v677
    %v679 = vpop.f32.mrf.mxu0
    %v680 = vpop.f32.mrf.mxu0
    %v681 = vpop.f32.mrf.mxu0
    %682 = vdwg.mxu0
    %684 = vrot.lane.b32.xlu0 %v453, 96
    %v685 = vpop.permute.xlu0 %684
    %687 = vrot.lane.b32.xlu0 %v461, 96
    %v688 = vpop.permute.xlu0 %687
    %v690 = vsel %vm155, %v685, 0
    %v693 = vsel %vm155, %v688, 0
    %695 = vmatprep.subr.bf16.mxu0 0
    %696 = vmatpush1.bf16.xpose.msra.mxu0 0
    %697 = vmatprep.subr.bf16.mxu0 0
    %698 = vmatpush1.bf16.xpose.msra.mxu0 0
    %699 = vmatprep.subr.bf16.mxu0 0
    %700 = vmatpush1.bf16.xpose.msra.mxu0 0
    %701 = vmatprep.subr.bf16.mxu0 0
    %702 = vmatpush1.bf16.xpose.msra.mxu0 0
    %703 = vmatprep.subr.bf16.mxu0 0
    %704 = vmatpush1.bf16.xpose.msra.mxu0 0
    %705 = vmatprep.subr.bf16.mxu0 0
    %706 = vmatpush1.bf16.xpose.msra.mxu0 0
    %707 = vmatprep.subr.bf16.mxu0 0
    %708 = vmatpush1.bf16.xpose.msra.mxu0 0
    %709 = vmatprep.subr.bf16.mxu0 0
    %710 = vmatpush1.bf16.xpose.msra.mxu0 %v693
    %711 = vmatprep.subr.bf16.mxu0 0
    %712 = vmatpush2.bf16.xpose.msra.mxu0 0
    %713 = vmatprep.subr.bf16.mxu0 0
    %714 = vmatpush2.bf16.xpose.msra.mxu0 0
    %715 = vmatprep.subr.bf16.mxu0 0
    %716 = vmatpush2.bf16.xpose.msra.mxu0 0
    %717 = vmatprep.subr.bf16.mxu0 0
    %718 = vmatpush2.bf16.xpose.msra.mxu0 0
    %719 = vmatprep.subr.bf16.mxu0 0
    %720 = vmatpush2.bf16.xpose.msra.mxu0 0
    %721 = vmatprep.subr.bf16.mxu0 0
    %722 = vmatpush2.bf16.xpose.msra.mxu0 0
    %723 = vmatprep.subr.bf16.mxu0 0
    %724 = vmatpush2.bf16.xpose.msra.mxu0 0
    %725 = vmatprep.subr.bf16.mxu0 0
    %726 = vmatpush2.bf16.xpose.msra.mxu0 0
    %727 = vmatprep.mubr.bf16.mxu0 0
    %728 = vmatmul.mubr.bf16.gmra.mxu0 %v690
    %v729 = vpop.f32.mrf.mxu0
    %v730 = vadd.f32 0.0, %v729
    %v731 = vpop.f32.mrf.mxu0
    %v732 = vpop.f32.mrf.mxu0
    %v733 = vpop.f32.mrf.mxu0
    %734 = vdwg.mxu0
    %736 = vrot.lane.b32.xlu0 %v454, 96
    %v737 = vpop.permute.xlu0 %736
    %739 = vrot.lane.b32.xlu0 %v462, 96
    %v740 = vpop.permute.xlu0 %739
    %v742 = vsel %vm155, %v737, 0
    %v745 = vsel %vm155, %v740, 0
    %747 = vmatprep.subr.bf16.mxu0 0
    %748 = vmatpush1.bf16.xpose.msra.mxu0 0
    %749 = vmatprep.subr.bf16.mxu0 0
    %750 = vmatpush1.bf16.xpose.msra.mxu0 0
    %751 = vmatprep.subr.bf16.mxu0 0
    %752 = vmatpush1.bf16.xpose.msra.mxu0 0
    %753 = vmatprep.subr.bf16.mxu0 0
    %754 = vmatpush1.bf16.xpose.msra.mxu0 0
    %755 = vmatprep.subr.bf16.mxu0 0
    %756 = vmatpush1.bf16.xpose.msra.mxu0 0
    %757 = vmatprep.subr.bf16.mxu0 0
    %758 = vmatpush1.bf16.xpose.msra.mxu0 0
    %759 = vmatprep.subr.bf16.mxu0 0
    %760 = vmatpush1.bf16.xpose.msra.mxu0 0
    %761 = vmatprep.subr.bf16.mxu0 0
    %762 = vmatpush1.bf16.xpose.msra.mxu0 %v745
    %763 = vmatprep.subr.bf16.mxu0 0
    %764 = vmatpush2.bf16.xpose.msra.mxu0 0
    %765 = vmatprep.subr.bf16.mxu0 0
    %766 = vmatpush2.bf16.xpose.msra.mxu0 0
    %767 = vmatprep.subr.bf16.mxu0 0
    %768 = vmatpush2.bf16.xpose.msra.mxu0 0
    %769 = vmatprep.subr.bf16.mxu0 0
    %770 = vmatpush2.bf16.xpose.msra.mxu0 0
    %771 = vmatprep.subr.bf16.mxu0 0
    %772 = vmatpush2.bf16.xpose.msra.mxu0 0
    %773 = vmatprep.subr.bf16.mxu0 0
    %774 = vmatpush2.bf16.xpose.msra.mxu0 0
    %775 = vmatprep.subr.bf16.mxu0 0
    %776 = vmatpush2.bf16.xpose.msra.mxu0 0
    %777 = vmatprep.subr.bf16.mxu0 0
    %778 = vmatpush2.bf16.xpose.msra.mxu0 0
    %779 = vmatprep.mubr.bf16.mxu0 0
    %780 = vmatmul.mubr.bf16.gmra.mxu0 %v742
    %v781 = vpop.f32.mrf.mxu0
    %v782 = vadd.f32 0.0, %v781
    %v783 = vpop.f32.mrf.mxu0
    %v784 = vpop.f32.mrf.mxu0
    %v785 = vpop.f32.mrf.mxu0
    %786 = vdwg.mxu0
    %v787 = vmul.f32 %v730, 0.17677669
    %v788 = vmul.f32 %v782, 0.17677669
    %v789 = vsel %vm565, %v787, -inf
    %790 = vmax.xlane.f32.xlu0 %v789
    %v791 = vpop.xlane.xlu0 %790
    %v792 = vsel %vm565, %v788, -inf
    %793 = vmax.xlane.f32.xlu0 %v792
    %v794 = vpop.xlane.xlu0 %793
    %v795 = vsub.f32 %v787, %v791
    %v796 = vsub.f32 %v788, %v794
    %v797 = vmul.f32 %v795, 1.442695
    %v798 = vpow.pop %v797
    %v799 = vmul.f32 %v796, 1.442695
    %v800 = vpow.pop %v799
    %v801 = vsel %vm565, %v798, 0.0
    %802 = vadd.xlane.f32.xlu0 %v801
    %v803 = vpop.xlane.xlu0 %802
    %v804 = vsel %vm565, %v800, 0.0
    %805 = vadd.xlane.f32.xlu0 %v804
    %v806 = vpop.xlane.xlu0 %805
    %v807 = vrcp.pop %v803
    %v808 = vrcp.pop %v806
    %v809 = vmul.f32 %v798, %v807
    %v810 = vmul.f32 %v800, %v808
    %v811 = vpack.c.bf16 %v809, %v809
    %v812 = vpack.c.bf16 %v810, %v810
    %814 = vrot.lane.b32.xlu0 %v469, 96
    %v815 = vpop.permute.xlu0 %814
    %v817 = vsel %vm565, %v811, 0
    %v820 = vsel %vm593, %v815, 0
    %822 = vmatprep.subr.bf16.mxu0 0
    %823 = vmatpush1.bf16.msra.mxu0 0
    %824 = vmatprep.subr.bf16.mxu0 0
    %825 = vmatpush1.bf16.msra.mxu0 0
    %826 = vmatprep.subr.bf16.mxu0 0
    %827 = vmatpush1.bf16.msra.mxu0 0
    %828 = vmatprep.subr.bf16.mxu0 0
    %829 = vmatpush1.bf16.msra.mxu0 0
    %830 = vmatprep.subr.bf16.mxu0 0
    %831 = vmatpush1.bf16.msra.mxu0 0
    %832 = vmatprep.subr.bf16.mxu0 0
    %833 = vmatpush1.bf16.msra.mxu0 0
    %834 = vmatprep.subr.bf16.mxu0 0
    %835 = vmatpush1.bf16.msra.mxu0 0
    %836 = vmatprep.subr.bf16.mxu0 0
    %837 = vmatpush1.bf16.msra.mxu0 %v820
    %838 = vmatprep.subr.bf16.mxu0 0
    %839 = vmatpush2.bf16.msra.mxu0 0
    %840 = vmatprep.subr.bf16.mxu0 0
    %841 = vmatpush2.bf16.msra.mxu0 0
    %842 = vmatprep.subr.bf16.mxu0 0
    %843 = vmatpush2.bf16.msra.mxu0 0
    %844 = vmatprep.subr.bf16.mxu0 0
    %845 = vmatpush2.bf16.msra.mxu0 0
    %846 = vmatprep.subr.bf16.mxu0 0
    %847 = vmatpush2.bf16.msra.mxu0 0
    %848 = vmatprep.subr.bf16.mxu0 0
    %849 = vmatpush2.bf16.msra.mxu0 0
    %850 = vmatprep.subr.bf16.mxu0 0
    %851 = vmatpush2.bf16.msra.mxu0 0
    %852 = vmatprep.subr.bf16.mxu0 0
    %853 = vmatpush2.bf16.msra.mxu0 0
    %854 = vmatprep.mubr.bf16.mxu0 0
    %855 = vmatmul.mubr.bf16.gmra.mxu0 %v817
    %v856 = vpop.f32.mrf.mxu0
    %v857 = vadd.f32 0.0, %v856
    %v858 = vpop.f32.mrf.mxu0
    %v859 = vpop.f32.mrf.mxu0
    %v860 = vpop.f32.mrf.mxu0
    %861 = vdwg.mxu0
    %863 = vrot.lane.b32.xlu0 %v470, 96
    %v864 = vpop.permute.xlu0 %863
    %v866 = vsel %vm565, %v812, 0
    %v869 = vsel %vm593, %v864, 0
    %871 = vmatprep.subr.bf16.mxu0 0
    %872 = vmatpush1.bf16.msra.mxu0 0
    %873 = vmatprep.subr.bf16.mxu0 0
    %874 = vmatpush1.bf16.msra.mxu0 0
    %875 = vmatprep.subr.bf16.mxu0 0
    %876 = vmatpush1.bf16.msra.mxu0 0
    %877 = vmatprep.subr.bf16.mxu0 0
    %878 = vmatpush1.bf16.msra.mxu0 0
    %879 = vmatprep.subr.bf16.mxu0 0
    %880 = vmatpush1.bf16.msra.mxu0 0
    %881 = vmatprep.subr.bf16.mxu0 0
    %882 = vmatpush1.bf16.msra.mxu0 0
    %883 = vmatprep.subr.bf16.mxu0 0
    %884 = vmatpush1.bf16.msra.mxu0 0
    %885 = vmatprep.subr.bf16.mxu0 0
    %886 = vmatpush1.bf16.msra.mxu0 %v869
    %887 = vmatprep.subr.bf16.mxu0 0
    %888 = vmatpush2.bf16.msra.mxu0 0
    %889 = vmatprep.subr.bf16.mxu0 0
    %890 = vmatpush2.bf16.msra.mxu0 0
    %891 = vmatprep.subr.bf16.mxu0 0
    %892 = vmatpush2.bf16.msra.mxu0 0
    %893 = vmatprep.subr.bf16.mxu0 0
    %894 = vmatpush2.bf16.msra.mxu0 0
    %895 = vmatprep.subr.bf16.mxu0 0
    %896 = vmatpush2.bf16.msra.mxu0 0
    %897 = vmatprep.subr.bf16.mxu0 0
    %898 = vmatpush2.bf16.msra.mxu0 0
    %899 = vmatprep.subr.bf16.mxu0 0
    %900 = vmatpush2.bf16.msra.mxu0 0
    %901 = vmatprep.subr.bf16.mxu0 0
    %902 = vmatpush2.bf16.msra.mxu0 0
    %903 = vmatprep.mubr.bf16.mxu0 0
    %904 = vmatmul.mubr.bf16.gmra.mxu0 %v866
    %v905 = vpop.f32.mrf.mxu0
    %v906 = vadd.f32 0.0, %v905
    %v907 = vpop.f32.mrf.mxu0
    %v908 = vpop.f32.mrf.mxu0
    %v909 = vpop.f32.mrf.mxu0
    %910 = vdwg.mxu0
    %911 = vrot.lane.b32.xlu0 %v453, 64
    %v912 = vpop.permute.xlu0 %911
    %913 = vrot.lane.b32.xlu0 %v461, 64
    %v914 = vpop.permute.xlu0 %913
    %v916 = vsel %vm155, %v912, 0
    %v919 = vsel %vm155, %v914, 0
    %921 = vmatprep.subr.bf16.mxu0 0
    %922 = vmatpush1.bf16.xpose.msra.mxu0 0
    %923 = vmatprep.subr.bf16.mxu0 0
    %924 = vmatpush1.bf16.xpose.msra.mxu0 0
    %925 = vmatprep.subr.bf16.mxu0 0
    %926 = vmatpush1.bf16.xpose.msra.mxu0 0
    %927 = vmatprep.subr.bf16.mxu0 0
    %928 = vmatpush1.bf16.xpose.msra.mxu0 0
    %929 = vmatprep.subr.bf16.mxu0 0
    %930 = vmatpush1.bf16.xpose.msra.mxu0 0
    %931 = vmatprep.subr.bf16.mxu0 0
    %932 = vmatpush1.bf16.xpose.msra.mxu0 0
    %933 = vmatprep.subr.bf16.mxu0 0
    %934 = vmatpush1.bf16.xpose.msra.mxu0 0
    %935 = vmatprep.subr.bf16.mxu0 0
    %936 = vmatpush1.bf16.xpose.msra.mxu0 %v919
    %937 = vmatprep.subr.bf16.mxu0 0
    %938 = vmatpush2.bf16.xpose.msra.mxu0 0
    %939 = vmatprep.subr.bf16.mxu0 0
    %940 = vmatpush2.bf16.xpose.msra.mxu0 0
    %941 = vmatprep.subr.bf16.mxu0 0
    %942 = vmatpush2.bf16.xpose.msra.mxu0 0
    %943 = vmatprep.subr.bf16.mxu0 0
    %944 = vmatpush2.bf16.xpose.msra.mxu0 0
    %945 = vmatprep.subr.bf16.mxu0 0
    %946 = vmatpush2.bf16.xpose.msra.mxu0 0
    %947 = vmatprep.subr.bf16.mxu0 0
    %948 = vmatpush2.bf16.xpose.msra.mxu0 0
    %949 = vmatprep.subr.bf16.mxu0 0
    %950 = vmatpush2.bf16.xpose.msra.mxu0 0
    %951 = vmatprep.subr.bf16.mxu0 0
    %952 = vmatpush2.bf16.xpose.msra.mxu0 0
    %953 = vmatprep.mubr.bf16.mxu0 0
    %954 = vmatmul.mubr.bf16.gmra.mxu0 %v916
    %v955 = vpop.f32.mrf.mxu0
    %v956 = vadd.f32 0.0, %v955
    %v957 = vpop.f32.mrf.mxu0
    %v958 = vpop.f32.mrf.mxu0
    %v959 = vpop.f32.mrf.mxu0
    %960 = vdwg.mxu0
    %961 = vrot.lane.b32.xlu0 %v454, 64
    %v962 = vpop.permute.xlu0 %961
    %963 = vrot.lane.b32.xlu0 %v462, 64
    %v964 = vpop.permute.xlu0 %963
    %v966 = vsel %vm155, %v962, 0
    %v969 = vsel %vm155, %v964, 0
    %971 = vmatprep.subr.bf16.mxu0 0
    %972 = vmatpush1.bf16.xpose.msra.mxu0 0
    %973 = vmatprep.subr.bf16.mxu0 0
    %974 = vmatpush1.bf16.xpose.msra.mxu0 0
    %975 = vmatprep.subr.bf16.mxu0 0
    %976 = vmatpush1.bf16.xpose.msra.mxu0 0
    %977 = vmatprep.subr.bf16.mxu0 0
    %978 = vmatpush1.bf16.xpose.msra.mxu0 0
    %979 = vmatprep.subr.bf16.mxu0 0
    %980 = vmatpush1.bf16.xpose.msra.mxu0 0
    %981 = vmatprep.subr.bf16.mxu0 0
    %982 = vmatpush1.bf16.xpose.msra.mxu0 0
    %983 = vmatprep.subr.bf16.mxu0 0
    %984 = vmatpush1.bf16.xpose.msra.mxu0 0
    %985 = vmatprep.subr.bf16.mxu0 0
    %986 = vmatpush1.bf16.xpose.msra.mxu0 %v969
    %987 = vmatprep.subr.bf16.mxu0 0
    %988 = vmatpush2.bf16.xpose.msra.mxu0 0
    %989 = vmatprep.subr.bf16.mxu0 0
    %990 = vmatpush2.bf16.xpose.msra.mxu0 0
    %991 = vmatprep.subr.bf16.mxu0 0
    %992 = vmatpush2.bf16.xpose.msra.mxu0 0
    %993 = vmatprep.subr.bf16.mxu0 0
    %994 = vmatpush2.bf16.xpose.msra.mxu0 0
    %995 = vmatprep.subr.bf16.mxu0 0
    %996 = vmatpush2.bf16.xpose.msra.mxu0 0
    %997 = vmatprep.subr.bf16.mxu0 0
    %998 = vmatpush2.bf16.xpose.msra.mxu0 0
    %999 = vmatprep.subr.bf16.mxu0 0
    %1000 = vmatpush2.bf16.xpose.msra.mxu0 0
    %1001 = vmatprep.subr.bf16.mxu0 0
    %1002 = vmatpush2.bf16.xpose.msra.mxu0 0
    %1003 = vmatprep.mubr.bf16.mxu0 0
    %1004 = vmatmul.mubr.bf16.gmra.mxu0 %v966
    %v1005 = vpop.f32.mrf.mxu0
    %v1006 = vadd.f32 0.0, %v1005
    %v1007 = vpop.f32.mrf.mxu0
    %v1008 = vpop.f32.mrf.mxu0
    %v1009 = vpop.f32.mrf.mxu0
    %1010 = vdwg.mxu0
    %v1011 = vmul.f32 %v956, 0.17677669
    %v1012 = vmul.f32 %v1006, 0.17677669
    %v1013 = vsel %vm565, %v1011, -inf
    %1014 = vmax.xlane.f32.xlu0 %v1013
    %v1015 = vpop.xlane.xlu0 %1014
    %v1016 = vsel %vm565, %v1012, -inf
    %1017 = vmax.xlane.f32.xlu0 %v1016
    %v1018 = vpop.xlane.xlu0 %1017
    %v1019 = vsub.f32 %v1011, %v1015
    %v1020 = vsub.f32 %v1012, %v1018
    %v1021 = vmul.f32 %v1019, 1.442695
    %v1022 = vpow.pop %v1021
    %v1023 = vmul.f32 %v1020, 1.442695
    %v1024 = vpow.pop %v1023
    %v1025 = vsel %vm565, %v1022, 0.0
    %1026 = vadd.xlane.f32.xlu0 %v1025
    %v1027 = vpop.xlane.xlu0 %1026
    %v1028 = vsel %vm565, %v1024, 0.0
    %1029 = vadd.xlane.f32.xlu0 %v1028
    %v1030 = vpop.xlane.xlu0 %1029
    %v1031 = vrcp.pop %v1027
    %v1032 = vrcp.pop %v1030
    %v1033 = vmul.f32 %v1022, %v1031
    %v1034 = vmul.f32 %v1024, %v1032
    %v1035 = vpack.c.bf16 %v1033, %v1033
    %v1036 = vpack.c.bf16 %v1034, %v1034
    %1037 = vrot.lane.b32.xlu0 %v469, 64
    %v1038 = vpop.permute.xlu0 %1037
    %v1040 = vsel %vm565, %v1035, 0
    %v1043 = vsel %vm593, %v1038, 0
    %1045 = vmatprep.subr.bf16.mxu0 0
    %1046 = vmatpush1.bf16.msra.mxu0 0
    %1047 = vmatprep.subr.bf16.mxu0 0
    %1048 = vmatpush1.bf16.msra.mxu0 0
    %1049 = vmatprep.subr.bf16.mxu0 0
    %1050 = vmatpush1.bf16.msra.mxu0 0
    %1051 = vmatprep.subr.bf16.mxu0 0
    %1052 = vmatpush1.bf16.msra.mxu0 0
    %1053 = vmatprep.subr.bf16.mxu0 0
    %1054 = vmatpush1.bf16.msra.mxu0 0
    %1055 = vmatprep.subr.bf16.mxu0 0
    %1056 = vmatpush1.bf16.msra.mxu0 0
    %1057 = vmatprep.subr.bf16.mxu0 0
    %1058 = vmatpush1.bf16.msra.mxu0 0
    %1059 = vmatprep.subr.bf16.mxu0 0
    %1060 = vmatpush1.bf16.msra.mxu0 %v1043
    %1061 = vmatprep.subr.bf16.mxu0 0
    %1062 = vmatpush2.bf16.msra.mxu0 0
    %1063 = vmatprep.subr.bf16.mxu0 0
    %1064 = vmatpush2.bf16.msra.mxu0 0
    %1065 = vmatprep.subr.bf16.mxu0 0
    %1066 = vmatpush2.bf16.msra.mxu0 0
    %1067 = vmatprep.subr.bf16.mxu0 0
    %1068 = vmatpush2.bf16.msra.mxu0 0
    %1069 = vmatprep.subr.bf16.mxu0 0
    %1070 = vmatpush2.bf16.msra.mxu0 0
    %1071 = vmatprep.subr.bf16.mxu0 0
    %1072 = vmatpush2.bf16.msra.mxu0 0
    %1073 = vmatprep.subr.bf16.mxu0 0
    %1074 = vmatpush2.bf16.msra.mxu0 0
    %1075 = vmatprep.subr.bf16.mxu0 0
    %1076 = vmatpush2.bf16.msra.mxu0 0
    %1077 = vmatprep.mubr.bf16.mxu0 0
    %1078 = vmatmul.mubr.bf16.gmra.mxu0 %v1040
    %v1079 = vpop.f32.mrf.mxu0
    %v1080 = vadd.f32 0.0, %v1079
    %v1081 = vpop.f32.mrf.mxu0
    %v1082 = vpop.f32.mrf.mxu0
    %v1083 = vpop.f32.mrf.mxu0
    %1084 = vdwg.mxu0
    %1085 = vrot.lane.b32.xlu0 %v470, 64
    %v1086 = vpop.permute.xlu0 %1085
    %v1088 = vsel %vm565, %v1036, 0
    %v1091 = vsel %vm593, %v1086, 0
    %1093 = vmatprep.subr.bf16.mxu0 0
    %1094 = vmatpush1.bf16.msra.mxu0 0
    %1095 = vmatprep.subr.bf16.mxu0 0
    %1096 = vmatpush1.bf16.msra.mxu0 0
    %1097 = vmatprep.subr.bf16.mxu0 0
    %1098 = vmatpush1.bf16.msra.mxu0 0
    %1099 = vmatprep.subr.bf16.mxu0 0
    %1100 = vmatpush1.bf16.msra.mxu0 0
    %1101 = vmatprep.subr.bf16.mxu0 0
    %1102 = vmatpush1.bf16.msra.mxu0 0
    %1103 = vmatprep.subr.bf16.mxu0 0
    %1104 = vmatpush1.bf16.msra.mxu0 0
    %1105 = vmatprep.subr.bf16.mxu0 0
    %1106 = vmatpush1.bf16.msra.mxu0 0
    %1107 = vmatprep.subr.bf16.mxu0 0
    %1108 = vmatpush1.bf16.msra.mxu0 %v1091
    %1109 = vmatprep.subr.bf16.mxu0 0
    %1110 = vmatpush2.bf16.msra.mxu0 0
    %1111 = vmatprep.subr.bf16.mxu0 0
    %1112 = vmatpush2.bf16.msra.mxu0 0
    %1113 = vmatprep.subr.bf16.mxu0 0
    %1114 = vmatpush2.bf16.msra.mxu0 0
    %1115 = vmatprep.subr.bf16.mxu0 0
    %1116 = vmatpush2.bf16.msra.mxu0 0
    %1117 = vmatprep.subr.bf16.mxu0 0
    %1118 = vmatpush2.bf16.msra.mxu0 0
    %1119 = vmatprep.subr.bf16.mxu0 0
    %1120 = vmatpush2.bf16.msra.mxu0 0
    %1121 = vmatprep.subr.bf16.mxu0 0
    %1122 = vmatpush2.bf16.msra.mxu0 0
    %1123 = vmatprep.subr.bf16.mxu0 0
    %1124 = vmatpush2.bf16.msra.mxu0 0
    %1125 = vmatprep.mubr.bf16.mxu0 0
    %1126 = vmatmul.mubr.bf16.gmra.mxu0 %v1088
    %v1127 = vpop.f32.mrf.mxu0
    %v1128 = vadd.f32 0.0, %v1127
    %v1129 = vpop.f32.mrf.mxu0
    %v1130 = vpop.f32.mrf.mxu0
    %v1131 = vpop.f32.mrf.mxu0
    %1132 = vdwg.mxu0
    %1133 = vrot.lane.b32.xlu0 %v453, 32
    %v1134 = vpop.permute.xlu0 %1133
    %1135 = vrot.lane.b32.xlu0 %v461, 32
    %v1136 = vpop.permute.xlu0 %1135
    %v1138 = vsel %vm155, %v1134, 0
    %v1141 = vsel %vm155, %v1136, 0
    %1143 = vmatprep.subr.bf16.mxu0 0
    %1144 = vmatpush1.bf16.xpose.msra.mxu0 0
    %1145 = vmatprep.subr.bf16.mxu0 0
    %1146 = vmatpush1.bf16.xpose.msra.mxu0 0
    %1147 = vmatprep.subr.bf16.mxu0 0
    %1148 = vmatpush1.bf16.xpose.msra.mxu0 0
    %1149 = vmatprep.subr.bf16.mxu0 0
    %1150 = vmatpush1.bf16.xpose.msra.mxu0 0
    %1151 = vmatprep.subr.bf16.mxu0 0
    %1152 = vmatpush1.bf16.xpose.msra.mxu0 0
    %1153 = vmatprep.subr.bf16.mxu0 0
    %1154 = vmatpush1.bf16.xpose.msra.mxu0 0
    %1155 = vmatprep.subr.bf16.mxu0 0
    %1156 = vmatpush1.bf16.xpose.msra.mxu0 0
    %1157 = vmatprep.subr.bf16.mxu0 0
    %1158 = vmatpush1.bf16.xpose.msra.mxu0 %v1141
    %1159 = vmatprep.subr.bf16.mxu0 0
    %1160 = vmatpush2.bf16.xpose.msra.mxu0 0
    %1161 = vmatprep.subr.bf16.mxu0 0
    %1162 = vmatpush2.bf16.xpose.msra.mxu0 0
    %1163 = vmatprep.subr.bf16.mxu0 0
    %1164 = vmatpush2.bf16.xpose.msra.mxu0 0
    %1165 = vmatprep.subr.bf16.mxu0 0
    %1166 = vmatpush2.bf16.xpose.msra.mxu0 0
    %1167 = vmatprep.subr.bf16.mxu0 0
    %1168 = vmatpush2.bf16.xpose.msra.mxu0 0
    %1169 = vmatprep.subr.bf16.mxu0 0
    %1170 = vmatpush2.bf16.xpose.msra.mxu0 0
    %1171 = vmatprep.subr.bf16.mxu0 0
    %1172 = vmatpush2.bf16.xpose.msra.mxu0 0
    %1173 = vmatprep.subr.bf16.mxu0 0
    %1174 = vmatpush2.bf16.xpose.msra.mxu0 0
    %1175 = vmatprep.mubr.bf16.mxu0 0
    %1176 = vmatmul.mubr.bf16.gmra.mxu0 %v1138
    %v1177 = vpop.f32.mrf.mxu0
    %v1178 = vadd.f32 0.0, %v1177
    %v1179 = vpop.f32.mrf.mxu0
    %v1180 = vpop.f32.mrf.mxu0
    %v1181 = vpop.f32.mrf.mxu0
    %1182 = vdwg.mxu0
    %1183 = vrot.lane.b32.xlu0 %v454, 32
    %v1184 = vpop.permute.xlu0 %1183
    %1185 = vrot.lane.b32.xlu0 %v462, 32
    %v1186 = vpop.permute.xlu0 %1185
    %v1188 = vsel %vm155, %v1184, 0
    %v1191 = vsel %vm155, %v1186, 0
    %1193 = vmatprep.subr.bf16.mxu0 0
    %1194 = vmatpush1.bf16.xpose.msra.mxu0 0
    %1195 = vmatprep.subr.bf16.mxu0 0
    %1196 = vmatpush1.bf16.xpose.msra.mxu0 0
    %1197 = vmatprep.subr.bf16.mxu0 0
    %1198 = vmatpush1.bf16.xpose.msra.mxu0 0
    %1199 = vmatprep.subr.bf16.mxu0 0
    %1200 = vmatpush1.bf16.xpose.msra.mxu0 0
    %1201 = vmatprep.subr.bf16.mxu0 0
    %1202 = vmatpush1.bf16.xpose.msra.mxu0 0
    %1203 = vmatprep.subr.bf16.mxu0 0
    %1204 = vmatpush1.bf16.xpose.msra.mxu0 0
    %1205 = vmatprep.subr.bf16.mxu0 0
    %1206 = vmatpush1.bf16.xpose.msra.mxu0 0
    %1207 = vmatprep.subr.bf16.mxu0 0
    %1208 = vmatpush1.bf16.xpose.msra.mxu0 %v1191
    %1209 = vmatprep.subr.bf16.mxu0 0
    %1210 = vmatpush2.bf16.xpose.msra.mxu0 0
    %1211 = vmatprep.subr.bf16.mxu0 0
    %1212 = vmatpush2.bf16.xpose.msra.mxu0 0
    %1213 = vmatprep.subr.bf16.mxu0 0
    %1214 = vmatpush2.bf16.xpose.msra.mxu0 0
    %1215 = vmatprep.subr.bf16.mxu0 0
    %1216 = vmatpush2.bf16.xpose.msra.mxu0 0
    %1217 = vmatprep.subr.bf16.mxu0 0
    %1218 = vmatpush2.bf16.xpose.msra.mxu0 0
    %1219 = vmatprep.subr.bf16.mxu0 0
    %1220 = vmatpush2.bf16.xpose.msra.mxu0 0
    %1221 = vmatprep.subr.bf16.mxu0 0
    %1222 = vmatpush2.bf16.xpose.msra.mxu0 0
    %1223 = vmatprep.subr.bf16.mxu0 0
    %1224 = vmatpush2.bf16.xpose.msra.mxu0 0
    %1225 = vmatprep.mubr.bf16.mxu0 0
    %1226 = vmatmul.mubr.bf16.gmra.mxu0 %v1188
    %v1227 = vpop.f32.mrf.mxu0
    %v1228 = vadd.f32 0.0, %v1227
    %v1229 = vpop.f32.mrf.mxu0
    %v1230 = vpop.f32.mrf.mxu0
    %v1231 = vpop.f32.mrf.mxu0
    %1232 = vdwg.mxu0
    %v1233 = vmul.f32 %v1178, 0.17677669
    %v1234 = vmul.f32 %v1228, 0.17677669
    %v1235 = vsel %vm565, %v1233, -inf
    %1236 = vmax.xlane.f32.xlu0 %v1235
    %v1237 = vpop.xlane.xlu0 %1236
    %v1238 = vsel %vm565, %v1234, -inf
    %1239 = vmax.xlane.f32.xlu0 %v1238
    %v1240 = vpop.xlane.xlu0 %1239
    %v1241 = vsub.f32 %v1233, %v1237
    %v1242 = vsub.f32 %v1234, %v1240
    %v1243 = vmul.f32 %v1241, 1.442695
    %v1244 = vpow.pop %v1243
    %v1245 = vmul.f32 %v1242, 1.442695
    %v1246 = vpow.pop %v1245
    %v1247 = vsel %vm565, %v1244, 0.0
    %1248 = vadd.xlane.f32.xlu0 %v1247
    %v1249 = vpop.xlane.xlu0 %1248
    %v1250 = vsel %vm565, %v1246, 0.0
    %1251 = vadd.xlane.f32.xlu0 %v1250
    %v1252 = vpop.xlane.xlu0 %1251
    %v1253 = vrcp.pop %v1249
    %v1254 = vrcp.pop %v1252
    %v1255 = vmul.f32 %v1244, %v1253
    %v1256 = vmul.f32 %v1246, %v1254
    %v1257 = vpack.c.bf16 %v1255, %v1255
    %v1258 = vpack.c.bf16 %v1256, %v1256
    %1259 = vrot.lane.b32.xlu0 %v469, 32
    %v1260 = vpop.permute.xlu0 %1259
    %v1262 = vsel %vm565, %v1257, 0
    %v1265 = vsel %vm593, %v1260, 0
    %1267 = vmatprep.subr.bf16.mxu0 0
    %1268 = vmatpush1.bf16.msra.mxu0 0
    %1269 = vmatprep.subr.bf16.mxu0 0
    %1270 = vmatpush1.bf16.msra.mxu0 0
    %1271 = vmatprep.subr.bf16.mxu0 0
    %1272 = vmatpush1.bf16.msra.mxu0 0
    %1273 = vmatprep.subr.bf16.mxu0 0
    %1274 = vmatpush1.bf16.msra.mxu0 0
    %1275 = vmatprep.subr.bf16.mxu0 0
    %1276 = vmatpush1.bf16.msra.mxu0 0
    %1277 = vmatprep.subr.bf16.mxu0 0
    %1278 = vmatpush1.bf16.msra.mxu0 0
    %1279 = vmatprep.subr.bf16.mxu0 0
    %1280 = vmatpush1.bf16.msra.mxu0 0
    %1281 = vmatprep.subr.bf16.mxu0 0
    %1282 = vmatpush1.bf16.msra.mxu0 %v1265
    %1283 = vmatprep.subr.bf16.mxu0 0
    %1284 = vmatpush2.bf16.msra.mxu0 0
    %1285 = vmatprep.subr.bf16.mxu0 0
    %1286 = vmatpush2.bf16.msra.mxu0 0
    %1287 = vmatprep.subr.bf16.mxu0 0
    %1288 = vmatpush2.bf16.msra.mxu0 0
    %1289 = vmatprep.subr.bf16.mxu0 0
    %1290 = vmatpush2.bf16.msra.mxu0 0
    %1291 = vmatprep.subr.bf16.mxu0 0
    %1292 = vmatpush2.bf16.msra.mxu0 0
    %1293 = vmatprep.subr.bf16.mxu0 0
    %1294 = vmatpush2.bf16.msra.mxu0 0
    %1295 = vmatprep.subr.bf16.mxu0 0
    %1296 = vmatpush2.bf16.msra.mxu0 0
    %1297 = vmatprep.subr.bf16.mxu0 0
    %1298 = vmatpush2.bf16.msra.mxu0 0
    %1299 = vmatprep.mubr.bf16.mxu0 0
    %1300 = vmatmul.mubr.bf16.gmra.mxu0 %v1262
    %v1301 = vpop.f32.mrf.mxu0
    %v1302 = vadd.f32 0.0, %v1301
    %v1303 = vpop.f32.mrf.mxu0
    %v1304 = vpop.f32.mrf.mxu0
    %v1305 = vpop.f32.mrf.mxu0
    %1306 = vdwg.mxu0
    %1307 = vrot.lane.b32.xlu0 %v470, 32
    %v1308 = vpop.permute.xlu0 %1307
    %v1310 = vsel %vm565, %v1258, 0
    %v1313 = vsel %vm593, %v1308, 0
    %1315 = vmatprep.subr.bf16.mxu0 0
    %1316 = vmatpush1.bf16.msra.mxu0 0
    %1317 = vmatprep.subr.bf16.mxu0 0
    %1318 = vmatpush1.bf16.msra.mxu0 0
    %1319 = vmatprep.subr.bf16.mxu0 0
    %1320 = vmatpush1.bf16.msra.mxu0 0
    %1321 = vmatprep.subr.bf16.mxu0 0
    %1322 = vmatpush1.bf16.msra.mxu0 0
    %1323 = vmatprep.subr.bf16.mxu0 0
    %1324 = vmatpush1.bf16.msra.mxu0 0
    %1325 = vmatprep.subr.bf16.mxu0 0
    %1326 = vmatpush1.bf16.msra.mxu0 0
    %1327 = vmatprep.subr.bf16.mxu0 0
    %1328 = vmatpush1.bf16.msra.mxu0 0
    %1329 = vmatprep.subr.bf16.mxu0 0
    %1330 = vmatpush1.bf16.msra.mxu0 %v1313
    %1331 = vmatprep.subr.bf16.mxu0 0
    %1332 = vmatpush2.bf16.msra.mxu0 0
    %1333 = vmatprep.subr.bf16.mxu0 0
    %1334 = vmatpush2.bf16.msra.mxu0 0
    %1335 = vmatprep.subr.bf16.mxu0 0
    %1336 = vmatpush2.bf16.msra.mxu0 0
    %1337 = vmatprep.subr.bf16.mxu0 0
    %1338 = vmatpush2.bf16.msra.mxu0 0
    %1339 = vmatprep.subr.bf16.mxu0 0
    %1340 = vmatpush2.bf16.msra.mxu0 0
    %1341 = vmatprep.subr.bf16.mxu0 0
    %1342 = vmatpush2.bf16.msra.mxu0 0
    %1343 = vmatprep.subr.bf16.mxu0 0
    %1344 = vmatpush2.bf16.msra.mxu0 0
    %1345 = vmatprep.subr.bf16.mxu0 0
    %1346 = vmatpush2.bf16.msra.mxu0 0
    %1347 = vmatprep.mubr.bf16.mxu0 0
    %1348 = vmatmul.mubr.bf16.gmra.mxu0 %v1310
    %v1349 = vpop.f32.mrf.mxu0
    %v1350 = vadd.f32 0.0, %v1349
    %v1351 = vpop.f32.mrf.mxu0
    %v1352 = vpop.f32.mrf.mxu0
    %v1353 = vpop.f32.mrf.mxu0
    %1354 = vdwg.mxu0
    %1357 = vrot.lane.b32.xlu0 %v857, 32
    %v1358 = vpop.permute.xlu0 %1357
    %1359 = vrot.lane.b32.xlu0 %v906, 32
    %v1360 = vpop.permute.xlu0 %1359
    %1365 = vrot.lane.b32.xlu0 %v1080, 64
    %v1366 = vpop.permute.xlu0 %1365
    %1367 = vrot.lane.b32.xlu0 %v1128, 64
    %v1368 = vpop.permute.xlu0 %1367
    %1373 = vrot.lane.b32.xlu0 %v1302, 96
    %v1374 = vpop.permute.xlu0 %1373
    %1375 = vrot.lane.b32.xlu0 %v1350, 96
    %v1376 = vpop.permute.xlu0 %1375
    %v1379 = vsel %vm155, %v632, %v1358
    %v1380 = vsel %vm155, %v678, %v1360
    %vm1381 = vcmask 523264
    %v1382 = vsel %vm1381, %v1379, %v1366
    %v1383 = vsel %vm1381, %v1380, %v1368
    %vm1384 = vcmask 785408
    %v1385 = vsel %vm1384, %v1382, %v1374
    %v1386 = vsel %vm1384, %v1383, %v1376
    %v1387 = vpack.c.bf16 %v1386, %v1385
    %v1388 = vld [vmem:[#allocation13] sm:$0xf]
    %v1389 = vld [vmem:[#allocation13 + $0x4] sm:$0xf]
    %v1390 = vld [vmem:[#allocation13 + $0x8] sm:$0xf]
    %v1391 = vld [vmem:[#allocation13 + $0xc] sm:$0xf]
    %v1392 = vld [vmem:[#allocation13 + $0x10] sm:$0xf]
    %v1393 = vld [vmem:[#allocation13 + $0x14] sm:$0xf]
    %v1394 = vld [vmem:[#allocation13 + $0x18] sm:$0xf]
    %v1395 = vld [vmem:[#allocation13 + $0x1c] sm:$0xf]
    %v1396 = vld [vmem:[#allocation13 + $0x20] sm:$0xf]
    %v1397 = vld [vmem:[#allocation13 + $0x24] sm:$0xf]
    %v1398 = vld [vmem:[#allocation13 + $0x28] sm:$0xf]
    %v1399 = vld [vmem:[#allocation13 + $0x2c] sm:$0xf]
    %v1400 = vld [vmem:[#allocation13 + $0x30] sm:$0xf]
    %v1401 = vld [vmem:[#allocation13 + $0x34] sm:$0xf]
    %v1402 = vld [vmem:[#allocation13 + $0x38] sm:$0xf]
    %v1403 = vld [vmem:[#allocation13 + $0x3c] sm:$0xf]
    %v1404 = vlaneseq
    %v1405 = vshrl.u32 %v1404, 7
    %v1406 = vsub.s32 3, %v1405
    %v1407 = vrot.slane %v134, %v1406
    %v1424 = vunpack.c.l.b16 %v1388
    %v1425 = vunpack.c.l.b16 %v1389
    %v1426 = vunpack.c.l.b16 %v1390
    %v1427 = vunpack.c.l.b16 %v1391
    %v1428 = vunpack.c.l.b16 %v1392
    %v1429 = vunpack.c.l.b16 %v1393
    %v1430 = vunpack.c.l.b16 %v1394
    %v1431 = vunpack.c.l.b16 %v1395
    %v1432 = vunpack.c.l.b16 %v1396
    %v1433 = vunpack.c.l.b16 %v1397
    %v1434 = vunpack.c.l.b16 %v1398
    %v1435 = vunpack.c.l.b16 %v1399
    %v1436 = vunpack.c.l.b16 %v1400
    %v1437 = vunpack.c.l.b16 %v1401
    %v1438 = vunpack.c.l.b16 %v1402
    %v1439 = vunpack.c.l.b16 %v1403
    %v1440 = vpack.c.b16 %v1425, %v1424
    %v1441 = vpack.c.b16 %v1427, %v1426
    %v1442 = vpack.c.b16 %v1429, %v1428
    %v1443 = vpack.c.b16 %v1431, %v1430
    %v1444 = vpack.c.b16 %v1433, %v1432
    %v1445 = vpack.c.b16 %v1435, %v1434
    %v1446 = vpack.c.b16 %v1437, %v1436
    %v1447 = vpack.c.b16 %v1439, %v1438
    %1456 = vmatprep.subr.bf16.mxu0 0
    %1457 = vmatpush1.bf16.msra.mxu0 %v1447
    %1458 = vmatprep.subr.bf16.mxu0 0
    %1459 = vmatpush1.bf16.msra.mxu0 %v1446
    %1460 = vmatprep.subr.bf16.mxu0 0
    %1461 = vmatpush1.bf16.msra.mxu0 %v1445
    %1462 = vmatprep.subr.bf16.mxu0 0
    %1463 = vmatpush1.bf16.msra.mxu0 %v1444
    %1464 = vmatprep.subr.bf16.mxu0 0
    %1465 = vmatpush1.bf16.msra.mxu0 %v1443
    %1466 = vmatprep.subr.bf16.mxu0 0
    %1467 = vmatpush1.bf16.msra.mxu0 %v1442
    %1468 = vmatprep.subr.bf16.mxu0 0
    %1469 = vmatpush1.bf16.msra.mxu0 %v1441
    %1470 = vmatprep.subr.bf16.mxu0 0
    %1471 = vmatpush1.bf16.msra.mxu0 %v1440
    %1472 = vmatprep.subr.bf16.mxu0 0
    %1473 = vmatpush2.bf16.msra.mxu0 0
    %1474 = vmatprep.subr.bf16.mxu0 0
    %1475 = vmatpush2.bf16.msra.mxu0 0
    %1476 = vmatprep.subr.bf16.mxu0 0
    %1477 = vmatpush2.bf16.msra.mxu0 0
    %1478 = vmatprep.subr.bf16.mxu0 0
    %1479 = vmatpush2.bf16.msra.mxu0 0
    %1480 = vmatprep.subr.bf16.mxu0 0
    %1481 = vmatpush2.bf16.msra.mxu0 0
    %1482 = vmatprep.subr.bf16.mxu0 0
    %1483 = vmatpush2.bf16.msra.mxu0 0
    %1484 = vmatprep.subr.bf16.mxu0 0
    %1485 = vmatpush2.bf16.msra.mxu0 0
    %1486 = vmatprep.subr.bf16.mxu0 0
    %1487 = vmatpush2.bf16.msra.mxu0 0
    %1488 = vmatprep.mubr.bf16.mxu0 0
    %1489 = vmatmul.mubr.bf16.gmra.mxu0 %v1387
    %v1490 = vpop.f32.mrf.mxu0
    %v1491 = vadd.f32 %v1407, %v1490
    %v1492 = vpop.f32.mrf.mxu0
    %v1493 = vpop.f32.mrf.mxu0
    %v1494 = vadd.f32 %v1407, %v1493
    %v1495 = vpop.f32.mrf.mxu0
    %1496 = vdwg.mxu0
    %v1497 = vadd.f32 %v200, %v1491
    %v1498 = vadd.f32 %v201, %v1494
    %1499 = vadd.xlane.f32.xlu0 %v1497
    %v1500 = vpop.xlane.xlu0 %1499
    %1501 = vadd.xlane.f32.xlu0 %v1498
    %v1502 = vpop.xlane.xlu0 %1501
    %v1503 = vrcp.pop 128.0
    %v1504 = vmul.f32 %v1500, %v1503
    %v1505 = vmul.f32 %v1502, %v1503
    %v1506 = vsub.f32 %v1497, %v1504
    %v1507 = vsub.f32 %v1498, %v1505
    %v1508 = vmul.f32 %v1506, %v1506
    %v1509 = vmul.f32 %v1507, %v1507
    %1510 = vadd.xlane.f32.xlu0 %v1508
    %v1511 = vpop.xlane.xlu0 %1510
    %1512 = vadd.xlane.f32.xlu0 %v1509
    %v1513 = vpop.xlane.xlu0 %1512
    %v1514 = vmul.f32 %v1511, %v1503
    %v1515 = vmul.f32 %v1513, %v1503
    %v1516 = vadd.f32 %v1514, 1e-05
    %v1517 = vadd.f32 %v1515, 1e-05
    %v1518 = vrsqrt.pop %v1516
    %v1519 = vrsqrt.pop %v1517
    %v1520 = vmul.f32 %v1506, %v1518
    %v1521 = vmul.f32 %v1507, %v1519
    %v1522 = vlaneseq
    %v1523 = vshrl.u32 %v1522, 7
    %v1524 = vsub.s32 4, %v1523
    %v1525 = vrot.slane %v134, %v1524
    %v1526 = vmul.f32 %v1520, %v1525
    %v1527 = vmul.f32 %v1521, %v1525
    %v1528 = vlaneseq
    %v1529 = vshrl.u32 %v1528, 7
    %v1530 = vsub.s32 5, %v1529
    %v1531 = vrot.slane %v134, %v1530
    %v1532 = vadd.f32 %v1526, %v1531
    %v1533 = vadd.f32 %v1527, %v1531
    %s1534 = smul.u32 4, 16
    %s1535 = smul.u32 %s1534, 16
    %s1536 = sshll.u32 %s1535, 4
    %1537 = dma.done [#allocation4], %s1536
    %s1538 = smul.u32 4, 256
    %s1539 = smul.u32 %s1538, 1
    %s1540 = sshll.u32 %s1539, 4
    %1541 = dma.done %s121, %s1540
    %v1542 = vpack.c.bf16 %v1533, %v1532
    %v1543 = vld [vmem:[#allocation2] sm:$0xff]
    %v1544 = vld [vmem:[#allocation2 + $0x8] sm:$0xff]
    %v1545 = vld [vmem:[#allocation2 + $0x40] sm:$0xff]
    %v1546 = vld [vmem:[#allocation2 + $0x48] sm:$0xff]
    %v1547 = vld [vmem:[#allocation2 + $0x80] sm:$0xff]
    %v1548 = vld [vmem:[#allocation2 + $0x88] sm:$0xff]
    %v1549 = vld [vmem:[#allocation2 + $0xc0] sm:$0xff]
    %v1550 = vld [vmem:[#allocation2 + $0xc8] sm:$0xff]
    %v1551 = vld [vmem:[#allocation2 + $0x100] sm:$0xff]
    %v1552 = vld [vmem:[#allocation2 + $0x108] sm:$0xff]
    %v1553 = vld [vmem:[#allocation2 + $0x140] sm:$0xff]
    %v1554 = vld [vmem:[#allocation2 + $0x148] sm:$0xff]
    %v1555 = vld [vmem:[#allocation2 + $0x180] sm:$0xff]
    %v1556 = vld [vmem:[#allocation2 + $0x188] sm:$0xff]
    %v1557 = vld [vmem:[#allocation2 + $0x1c0] sm:$0xff]
    %v1558 = vld [vmem:[#allocation2 + $0x1c8] sm:$0xff]
    %v1559 = vld [vmem:[#allocation2 + $0x200] sm:$0xff]
    %v1560 = vld [vmem:[#allocation2 + $0x208] sm:$0xff]
    %v1561 = vld [vmem:[#allocation2 + $0x240] sm:$0xff]
    %v1562 = vld [vmem:[#allocation2 + $0x248] sm:$0xff]
    %v1563 = vld [vmem:[#allocation2 + $0x280] sm:$0xff]
    %v1564 = vld [vmem:[#allocation2 + $0x288] sm:$0xff]
    %v1565 = vld [vmem:[#allocation2 + $0x2c0] sm:$0xff]
    %v1566 = vld [vmem:[#allocation2 + $0x2c8] sm:$0xff]
    %v1567 = vld [vmem:[#allocation2 + $0x300] sm:$0xff]
    %v1568 = vld [vmem:[#allocation2 + $0x308] sm:$0xff]
    %v1569 = vld [vmem:[#allocation2 + $0x340] sm:$0xff]
    %v1570 = vld [vmem:[#allocation2 + $0x348] sm:$0xff]
    %v1571 = vld [vmem:[#allocation2 + $0x380] sm:$0xff]
    %v1572 = vld [vmem:[#allocation2 + $0x388] sm:$0xff]
    %v1573 = vld [vmem:[#allocation2 + $0x3c0] sm:$0xff]
    %v1574 = vld [vmem:[#allocation2 + $0x3c8] sm:$0xff]
    %v1575 = vld [vmem:[#allocation14] sm:$0xf]
    %v1577 = vlaneseq
    %v1578 = vshrl.u32 %v1577, 7
    %v1579 = vsub.s32 0, %v1578
    %v1580 = vrot.slane %v1575, %v1579
    %v1581 = vlaneseq
    %v1582 = vshrl.u32 %v1581, 7
    %v1583 = vsub.s32 1, %v1582
    %v1584 = vrot.slane %v1575, %v1583
    %v1585 = vlaneseq
    %v1586 = vshrl.u32 %v1585, 7
    %v1587 = vsub.s32 2, %v1586
    %v1588 = vrot.slane %v1575, %v1587
    %v1589 = vlaneseq
    %v1590 = vshrl.u32 %v1589, 7
    %v1591 = vsub.s32 3, %v1590
    %v1592 = vrot.slane %v1575, %v1591
    %v1629 = vunpack.c.l.b16 %v1543
    %v1630 = vunpack.c.h.b16 %v1543
    %v1631 = vunpack.c.l.b16 %v1544
    %v1632 = vunpack.c.h.b16 %v1544
    %v1633 = vunpack.c.l.b16 %v1545
    %v1634 = vunpack.c.h.b16 %v1545
    %v1635 = vunpack.c.l.b16 %v1546
    %v1636 = vunpack.c.h.b16 %v1546
    %v1637 = vunpack.c.l.b16 %v1547
    %v1638 = vunpack.c.h.b16 %v1547
    %v1639 = vunpack.c.l.b16 %v1548
    %v1640 = vunpack.c.h.b16 %v1548
    %v1641 = vunpack.c.l.b16 %v1549
    %v1642 = vunpack.c.h.b16 %v1549
    %v1643 = vunpack.c.l.b16 %v1550
    %v1644 = vunpack.c.h.b16 %v1550
    %v1645 = vunpack.c.l.b16 %v1551
    %v1646 = vunpack.c.h.b16 %v1551
    %v1647 = vunpack.c.l.b16 %v1552
    %v1648 = vunpack.c.h.b16 %v1552
    %v1649 = vunpack.c.l.b16 %v1553
    %v1650 = vunpack.c.h.b16 %v1553
    %v1651 = vunpack.c.l.b16 %v1554
    %v1652 = vunpack.c.h.b16 %v1554
    %v1653 = vunpack.c.l.b16 %v1555
    %v1654 = vunpack.c.h.b16 %v1555
    %v1655 = vunpack.c.l.b16 %v1556
    %v1656 = vunpack.c.h.b16 %v1556
    %v1657 = vunpack.c.l.b16 %v1557
    %v1658 = vunpack.c.h.b16 %v1557
    %v1659 = vunpack.c.l.b16 %v1558
    %v1660 = vunpack.c.h.b16 %v1558
    %v1661 = vunpack.c.l.b16 %v1559
    %v1662 = vunpack.c.h.b16 %v1559
    %v1663 = vunpack.c.l.b16 %v1560
    %v1664 = vunpack.c.h.b16 %v1560
    %v1665 = vunpack.c.l.b16 %v1561
    %v1666 = vunpack.c.h.b16 %v1561
    %v1667 = vunpack.c.l.b16 %v1562
    %v1668 = vunpack.c.h.b16 %v1562
    %v1669 = vunpack.c.l.b16 %v1563
    %v1670 = vunpack.c.h.b16 %v1563
    %v1671 = vunpack.c.l.b16 %v1564
    %v1672 = vunpack.c.h.b16 %v1564
    %v1673 = vunpack.c.l.b16 %v1565
    %v1674 = vunpack.c.h.b16 %v1565
    %v1675 = vunpack.c.l.b16 %v1566
    %v1676 = vunpack.c.h.b16 %v1566
    %v1677 = vunpack.c.l.b16 %v1567
    %v1678 = vunpack.c.h.b16 %v1567
    %v1679 = vunpack.c.l.b16 %v1568
    %v1680 = vunpack.c.h.b16 %v1568
    %v1681 = vunpack.c.l.b16 %v1569
    %v1682 = vunpack.c.h.b16 %v1569
    %v1683 = vunpack.c.l.b16 %v1570
    %v1684 = vunpack.c.h.b16 %v1570
    %v1685 = vunpack.c.l.b16 %v1571
    %v1686 = vunpack.c.h.b16 %v1571
    %v1687 = vunpack.c.l.b16 %v1572
    %v1688 = vunpack.c.h.b16 %v1572
    %v1689 = vunpack.c.l.b16 %v1573
    %v1690 = vunpack.c.h.b16 %v1573
    %v1691 = vunpack.c.l.b16 %v1574
    %v1692 = vunpack.c.h.b16 %v1574
    %v1693 = vpack.c.b16 %v1633, %v1629
    %v1694 = vpack.c.b16 %v1634, %v1630
    %v1695 = vpack.c.b16 %v1635, %v1631
    %v1696 = vpack.c.b16 %v1636, %v1632
    %v1697 = vpack.c.b16 %v1641, %v1637
    %v1698 = vpack.c.b16 %v1642, %v1638
    %v1699 = vpack.c.b16 %v1643, %v1639
    %v1700 = vpack.c.b16 %v1644, %v1640
    %v1701 = vpack.c.b16 %v1649, %v1645
    %v1702 = vpack.c.b16 %v1650, %v1646
    %v1703 = vpack.c.b16 %v1651, %v1647
    %v1704 = vpack.c.b16 %v1652, %v1648
    %v1705 = vpack.c.b16 %v1657, %v1653
    %v1706 = vpack.c.b16 %v1658, %v1654
    %v1707 = vpack.c.b16 %v1659, %v1655
    %v1708 = vpack.c.b16 %v1660, %v1656
    %v1709 = vpack.c.b16 %v1665, %v1661
    %v1710 = vpack.c.b16 %v1666, %v1662
    %v1711 = vpack.c.b16 %v1667, %v1663
    %v1712 = vpack.c.b16 %v1668, %v1664
    %v1713 = vpack.c.b16 %v1673, %v1669
    %v1714 = vpack.c.b16 %v1674, %v1670
    %v1715 = vpack.c.b16 %v1675, %v1671
    %v1716 = vpack.c.b16 %v1676, %v1672
    %v1717 = vpack.c.b16 %v1681, %v1677
    %v1718 = vpack.c.b16 %v1682, %v1678
    %v1719 = vpack.c.b16 %v1683, %v1679
    %v1720 = vpack.c.b16 %v1684, %v1680
    %v1721 = vpack.c.b16 %v1689, %v1685
    %v1722 = vpack.c.b16 %v1690, %v1686
    %v1723 = vpack.c.b16 %v1691, %v1687
    %v1724 = vpack.c.b16 %v1692, %v1688
    %1757 = vmatprep.subr.bf16.mxu0 %v1722
    %1758 = vmatpush1.bf16.msra.mxu0 %v1721
    %1759 = vmatprep.subr.bf16.mxu0 %v1718
    %1760 = vmatpush1.bf16.msra.mxu0 %v1717
    %1761 = vmatprep.subr.bf16.mxu0 %v1714
    %1762 = vmatpush1.bf16.msra.mxu0 %v1713
    %1763 = vmatprep.subr.bf16.mxu0 %v1710
    %1764 = vmatpush1.bf16.msra.mxu0 %v1709
    %1765 = vmatprep.subr.bf16.mxu0 %v1706
    %1766 = vmatpush1.bf16.msra.mxu0 %v1705
    %1767 = vmatprep.subr.bf16.mxu0 %v1702
    %1768 = vmatpush1.bf16.msra.mxu0 %v1701
    %1769 = vmatprep.subr.bf16.mxu0 %v1698
    %1770 = vmatpush1.bf16.msra.mxu0 %v1697
    %1771 = vmatprep.subr.bf16.mxu0 %v1694
    %1772 = vmatpush1.bf16.msra.mxu0 %v1693
    %1773 = vmatprep.subr.bf16.mxu0 0
    %1774 = vmatpush2.bf16.msra.mxu0 0
    %1775 = vmatprep.subr.bf16.mxu0 0
    %1776 = vmatpush2.bf16.msra.mxu0 0
    %1777 = vmatprep.subr.bf16.mxu0 0
    %1778 = vmatpush2.bf16.msra.mxu0 0
    %1779 = vmatprep.subr.bf16.mxu0 0
    %1780 = vmatpush2.bf16.msra.mxu0 0
    %1781 = vmatprep.subr.bf16.mxu0 0
    %1782 = vmatpush2.bf16.msra.mxu0 0
    %1783 = vmatprep.subr.bf16.mxu0 0
    %1784 = vmatpush2.bf16.msra.mxu0 0
    %1785 = vmatprep.subr.bf16.mxu0 0
    %1786 = vmatpush2.bf16.msra.mxu0 0
    %1787 = vmatprep.subr.bf16.mxu0 0
    %1788 = vmatpush2.bf16.msra.mxu0 0
    %1789 = vmatprep.mubr.bf16.mxu0 0
    %1790 = vmatmul.mubr.bf16.gmra.mxu0 %v1542
    %v1791 = vpop.f32.mrf.mxu0
    %v1792 = vadd.f32 %v1580, %v1791
    %v1793 = vpop.f32.mrf.mxu0
    %v1794 = vadd.f32 %v1584, %v1793
    %v1795 = vpop.f32.mrf.mxu0
    %v1796 = vadd.f32 %v1580, %v1795
    %v1797 = vpop.f32.mrf.mxu0
    %v1798 = vadd.f32 %v1584, %v1797
    %1799 = vdwg.mxu0
    %1800 = vmatprep.subr.bf16.mxu0 %v1724
    %1801 = vmatpush1.bf16.msra.mxu0 %v1723
    %1802 = vmatprep.subr.bf16.mxu0 %v1720
    %1803 = vmatpush1.bf16.msra.mxu0 %v1719
    %1804 = vmatprep.subr.bf16.mxu0 %v1716
    %1805 = vmatpush1.bf16.msra.mxu0 %v1715
    %1806 = vmatprep.subr.bf16.mxu0 %v1712
    %1807 = vmatpush1.bf16.msra.mxu0 %v1711
    %1808 = vmatprep.subr.bf16.mxu0 %v1708
    %1809 = vmatpush1.bf16.msra.mxu0 %v1707
    %1810 = vmatprep.subr.bf16.mxu0 %v1704
    %1811 = vmatpush1.bf16.msra.mxu0 %v1703
    %1812 = vmatprep.subr.bf16.mxu0 %v1700
    %1813 = vmatpush1.bf16.msra.mxu0 %v1699
    %1814 = vmatprep.subr.bf16.mxu0 %v1696
    %1815 = vmatpush1.bf16.msra.mxu0 %v1695
    %1816 = vmatprep.subr.bf16.mxu0 0
    %1817 = vmatpush2.bf16.msra.mxu0 0
    %1818 = vmatprep.subr.bf16.mxu0 0
    %1819 = vmatpush2.bf16.msra.mxu0 0
    %1820 = vmatprep.subr.bf16.mxu0 0
    %1821 = vmatpush2.bf16.msra.mxu0 0
    %1822 = vmatprep.subr.bf16.mxu0 0
    %1823 = vmatpush2.bf16.msra.mxu0 0
    %1824 = vmatprep.subr.bf16.mxu0 0
    %1825 = vmatpush2.bf16.msra.mxu0 0
    %1826 = vmatprep.subr.bf16.mxu0 0
    %1827 = vmatpush2.bf16.msra.mxu0 0
    %1828 = vmatprep.subr.bf16.mxu0 0
    %1829 = vmatpush2.bf16.msra.mxu0 0
    %1830 = vmatprep.subr.bf16.mxu0 0
    %1831 = vmatpush2.bf16.msra.mxu0 0
    %1832 = vmatprep.mubr.bf16.mxu0 0
    %1833 = vmatmul.mubr.bf16.gmra.mxu0 %v1542
    %v1834 = vpop.f32.mrf.mxu0
    %v1835 = vadd.f32 %v1588, %v1834
    %v1836 = vpop.f32.mrf.mxu0
    %v1837 = vadd.f32 %v1592, %v1836
    %v1838 = vpop.f32.mrf.mxu0
    %v1839 = vadd.f32 %v1588, %v1838
    %v1840 = vpop.f32.mrf.mxu0
    %v1841 = vadd.f32 %v1592, %v1840
    %1842 = vdwg.mxu0
    %v1843 = vmax.f32 %v1792, 0.0
    %v1844 = vmax.f32 %v1794, 0.0
    %v1845 = vmax.f32 %v1835, 0.0
    %v1846 = vmax.f32 %v1837, 0.0
    %v1847 = vmax.f32 %v1796, 0.0
    %v1848 = vmax.f32 %v1798, 0.0
    %v1849 = vmax.f32 %v1839, 0.0
    %v1850 = vmax.f32 %v1841, 0.0
    %v1851 = vpack.c.bf16 %v1847, %v1843
    %v1852 = vpack.c.bf16 %v1848, %v1844
    %v1853 = vpack.c.bf16 %v1849, %v1845
    %v1854 = vpack.c.bf16 %v1850, %v1846
    %v1855 = vld [vmem:[#allocation3] sm:$0xf]
    %v1856 = vld [vmem:[#allocation3 + $0x4] sm:$0xf]
    %v1857 = vld [vmem:[#allocation3 + $0x8] sm:$0xf]
    %v1858 = vld [vmem:[#allocation3 + $0xc] sm:$0xf]
    %v1859 = vld [vmem:[#allocation3 + $0x10] sm:$0xf]
    %v1860 = vld [vmem:[#allocation3 + $0x14] sm:$0xf]
    %v1861 = vld [vmem:[#allocation3 + $0x18] sm:$0xf]
    %v1862 = vld [vmem:[#allocation3 + $0x1c] sm:$0xf]
    %v1863 = vld [vmem:[#allocation3 + $0x20] sm:$0xf]
    %v1864 = vld [vmem:[#allocation3 + $0x24] sm:$0xf]
    %v1865 = vld [vmem:[#allocation3 + $0x28] sm:$0xf]
    %v1866 = vld [vmem:[#allocation3 + $0x2c] sm:$0xf]
    %v1867 = vld [vmem:[#allocation3 + $0x30] sm:$0xf]
    %v1868 = vld [vmem:[#allocation3 + $0x34] sm:$0xf]
    %v1869 = vld [vmem:[#allocation3 + $0x38] sm:$0xf]
    %v1870 = vld [vmem:[#allocation3 + $0x3c] sm:$0xf]
    %v1871 = vld [vmem:[#allocation3 + $0x40] sm:$0xf]
    %v1872 = vld [vmem:[#allocation3 + $0x44] sm:$0xf]
    %v1873 = vld [vmem:[#allocation3 + $0x48] sm:$0xf]
    %v1874 = vld [vmem:[#allocation3 + $0x4c] sm:$0xf]
    %v1875 = vld [vmem:[#allocation3 + $0x50] sm:$0xf]
    %v1876 = vld [vmem:[#allocation3 + $0x54] sm:$0xf]
    %v1877 = vld [vmem:[#allocation3 + $0x58] sm:$0xf]
    %v1878 = vld [vmem:[#allocation3 + $0x5c] sm:$0xf]
    %v1879 = vld [vmem:[#allocation3 + $0x60] sm:$0xf]
    %v1880 = vld [vmem:[#allocation3 + $0x64] sm:$0xf]
    %v1881 = vld [vmem:[#allocation3 + $0x68] sm:$0xf]
    %v1882 = vld [vmem:[#allocation3 + $0x6c] sm:$0xf]
    %v1883 = vld [vmem:[#allocation3 + $0x70] sm:$0xf]
    %v1884 = vld [vmem:[#allocation3 + $0x74] sm:$0xf]
    %v1885 = vld [vmem:[#allocation3 + $0x78] sm:$0xf]
    %v1886 = vld [vmem:[#allocation3 + $0x7c] sm:$0xf]
    %v1887 = vld [vmem:[#allocation3 + $0x80] sm:$0xf]
    %v1888 = vld [vmem:[#allocation3 + $0x84] sm:$0xf]
    %v1889 = vld [vmem:[#allocation3 + $0x88] sm:$0xf]
    %v1890 = vld [vmem:[#allocation3 + $0x8c] sm:$0xf]
    %v1891 = vld [vmem:[#allocation3 + $0x90] sm:$0xf]
    %v1892 = vld [vmem:[#allocation3 + $0x94] sm:$0xf]
    %v1893 = vld [vmem:[#allocation3 + $0x98] sm:$0xf]
    %v1894 = vld [vmem:[#allocation3 + $0x9c] sm:$0xf]
    %v1895 = vld [vmem:[#allocation3 + $0xa0] sm:$0xf]
    %v1896 = vld [vmem:[#allocation3 + $0xa4] sm:$0xf]
    %v1897 = vld [vmem:[#allocation3 + $0xa8] sm:$0xf]
    %v1898 = vld [vmem:[#allocation3 + $0xac] sm:$0xf]
    %v1899 = vld [vmem:[#allocation3 + $0xb0] sm:$0xf]
    %v1900 = vld [vmem:[#allocation3 + $0xb4] sm:$0xf]
    %v1901 = vld [vmem:[#allocation3 + $0xb8] sm:$0xf]
    %v1902 = vld [vmem:[#allocation3 + $0xbc] sm:$0xf]
    %v1903 = vld [vmem:[#allocation3 + $0xc0] sm:$0xf]
    %v1904 = vld [vmem:[#allocation3 + $0xc4] sm:$0xf]
    %v1905 = vld [vmem:[#allocation3 + $0xc8] sm:$0xf]
    %v1906 = vld [vmem:[#allocation3 + $0xcc] sm:$0xf]
    %v1907 = vld [vmem:[#allocation3 + $0xd0] sm:$0xf]
    %v1908 = vld [vmem:[#allocation3 + $0xd4] sm:$0xf]
    %v1909 = vld [vmem:[#allocation3 + $0xd8] sm:$0xf]
    %v1910 = vld [vmem:[#allocation3 + $0xdc] sm:$0xf]
    %v1911 = vld [vmem:[#allocation3 + $0xe0] sm:$0xf]
    %v1912 = vld [vmem:[#allocation3 + $0xe4] sm:$0xf]
    %v1913 = vld [vmem:[#allocation3 + $0xe8] sm:$0xf]
    %v1914 = vld [vmem:[#allocation3 + $0xec] sm:$0xf]
    %v1915 = vld [vmem:[#allocation3 + $0xf0] sm:$0xf]
    %v1916 = vld [vmem:[#allocation3 + $0xf4] sm:$0xf]
    %v1917 = vld [vmem:[#allocation3 + $0xf8] sm:$0xf]
    %v1918 = vld [vmem:[#allocation3 + $0xfc] sm:$0xf]
    %v1919 = vld [vmem:[#allocation2 + $0x10] sm:$0xff]
    %v1920 = vld [vmem:[#allocation2 + $0x18] sm:$0xff]
    %v1921 = vld [vmem:[#allocation2 + $0x50] sm:$0xff]
    %v1922 = vld [vmem:[#allocation2 + $0x58] sm:$0xff]
    %v1923 = vld [vmem:[#allocation2 + $0x90] sm:$0xff]
    %v1924 = vld [vmem:[#allocation2 + $0x98] sm:$0xff]
    %v1925 = vld [vmem:[#allocation2 + $0xd0] sm:$0xff]
    %v1926 = vld [vmem:[#allocation2 + $0xd8] sm:$0xff]
    %v1927 = vld [vmem:[#allocation2 + $0x110] sm:$0xff]
    %v1928 = vld [vmem:[#allocation2 + $0x118] sm:$0xff]
    %v1929 = vld [vmem:[#allocation2 + $0x150] sm:$0xff]
    %v1930 = vld [vmem:[#allocation2 + $0x158] sm:$0xff]
    %v1931 = vld [vmem:[#allocation2 + $0x190] sm:$0xff]
    %v1932 = vld [vmem:[#allocation2 + $0x198] sm:$0xff]
    %v1933 = vld [vmem:[#allocation2 + $0x1d0] sm:$0xff]
    %v1934 = vld [vmem:[#allocation2 + $0x1d8] sm:$0xff]
    %v1935 = vld [vmem:[#allocation2 + $0x210] sm:$0xff]
    %v1936 = vld [vmem:[#allocation2 + $0x218] sm:$0xff]
    %v1937 = vld [vmem:[#allocation2 + $0x250] sm:$0xff]
    %v1938 = vld [vmem:[#allocation2 + $0x258] sm:$0xff]
    %v1939 = vld [vmem:[#allocation2 + $0x290] sm:$0xff]
    %v1940 = vld [vmem:[#allocation2 + $0x298] sm:$0xff]
    %v1941 = vld [vmem:[#allocation2 + $0x2d0] sm:$0xff]
    %v1942 = vld [vmem:[#allocation2 + $0x2d8] sm:$0xff]
    %v1943 = vld [vmem:[#allocation2 + $0x310] sm:$0xff]
    %v1944 = vld [vmem:[#allocation2 + $0x318] sm:$0xff]
    %v1945 = vld [vmem:[#allocation2 + $0x350] sm:$0xff]
    %v1946 = vld [vmem:[#allocation2 + $0x358] sm:$0xff]
    %v1947 = vld [vmem:[#allocation2 + $0x390] sm:$0xff]
    %v1948 = vld [vmem:[#allocation2 + $0x398] sm:$0xff]
    %v1949 = vld [vmem:[#allocation2 + $0x3d0] sm:$0xff]
    %v1950 = vld [vmem:[#allocation2 + $0x3d8] sm:$0xff]
    %v1951 = vld [vmem:[#allocation14 + $0x4] sm:$0xf]
    %v1953 = vlaneseq
    %v1954 = vshrl.u32 %v1953, 7
    %v1955 = vsub.s32 0, %v1954
    %v1956 = vrot.slane %v1951, %v1955
    %v1957 = vlaneseq
    %v1958 = vshrl.u32 %v1957, 7
    %v1959 = vsub.s32 1, %v1958
    %v1960 = vrot.slane %v1951, %v1959
    %v1961 = vlaneseq
    %v1962 = vshrl.u32 %v1961, 7
    %v1963 = vsub.s32 2, %v1962
    %v1964 = vrot.slane %v1951, %v1963
    %v1965 = vlaneseq
    %v1966 = vshrl.u32 %v1965, 7
    %v1967 = vsub.s32 3, %v1966
    %v1968 = vrot.slane %v1951, %v1967
    %v2005 = vunpack.c.l.b16 %v1919
    %v2006 = vunpack.c.h.b16 %v1919
    %v2007 = vunpack.c.l.b16 %v1920
    %v2008 = vunpack.c.h.b16 %v1920
    %v2009 = vunpack.c.l.b16 %v1921
    %v2010 = vunpack.c.h.b16 %v1921
    %v2011 = vunpack.c.l.b16 %v1922
    %v2012 = vunpack.c.h.b16 %v1922
    %v2013 = vunpack.c.l.b16 %v1923
    %v2014 = vunpack.c.h.b16 %v1923
    %v2015 = vunpack.c.l.b16 %v1924
    %v2016 = vunpack.c.h.b16 %v1924
    %v2017 = vunpack.c.l.b16 %v1925
    %v2018 = vunpack.c.h.b16 %v1925
    %v2019 = vunpack.c.l.b16 %v1926
    %v2020 = vunpack.c.h.b16 %v1926
    %v2021 = vunpack.c.l.b16 %v1927
    %v2022 = vunpack.c.h.b16 %v1927
    %v2023 = vunpack.c.l.b16 %v1928
    %v2024 = vunpack.c.h.b16 %v1928
    %v2025 = vunpack.c.l.b16 %v1929
    %v2026 = vunpack.c.h.b16 %v1929
    %v2027 = vunpack.c.l.b16 %v1930
    %v2028 = vunpack.c.h.b16 %v1930
    %v2029 = vunpack.c.l.b16 %v1931
    %v2030 = vunpack.c.h.b16 %v1931
    %v2031 = vunpack.c.l.b16 %v1932
    %v2032 = vunpack.c.h.b16 %v1932
    %v2033 = vunpack.c.l.b16 %v1933
    %v2034 = vunpack.c.h.b16 %v1933
    %v2035 = vunpack.c.l.b16 %v1934
    %v2036 = vunpack.c.h.b16 %v1934
    %v2037 = vunpack.c.l.b16 %v1935
    %v2038 = vunpack.c.h.b16 %v1935
    %v2039 = vunpack.c.l.b16 %v1936
    %v2040 = vunpack.c.h.b16 %v1936
    %v2041 = vunpack.c.l.b16 %v1937
    %v2042 = vunpack.c.h.b16 %v1937
    %v2043 = vunpack.c.l.b16 %v1938
    %v2044 = vunpack.c.h.b16 %v1938
    %v2045 = vunpack.c.l.b16 %v1939
    %v2046 = vunpack.c.h.b16 %v1939
    %v2047 = vunpack.c.l.b16 %v1940
    %v2048 = vunpack.c.h.b16 %v1940
    %v2049 = vunpack.c.l.b16 %v1941
    %v2050 = vunpack.c.h.b16 %v1941
    %v2051 = vunpack.c.l.b16 %v1942
    %v2052 = vunpack.c.h.b16 %v1942
    %v2053 = vunpack.c.l.b16 %v1943
    %v2054 = vunpack.c.h.b16 %v1943
    %v2055 = vunpack.c.l.b16 %v1944
    %v2056 = vunpack.c.h.b16 %v1944
    %v2057 = vunpack.c.l.b16 %v1945
    %v2058 = vunpack.c.h.b16 %v1945
    %v2059 = vunpack.c.l.b16 %v1946
    %v2060 = vunpack.c.h.b16 %v1946
    %v2061 = vunpack.c.l.b16 %v1947
    %v2062 = vunpack.c.h.b16 %v1947
    %v2063 = vunpack.c.l.b16 %v1948
    %v2064 = vunpack.c.h.b16 %v1948
    %v2065 = vunpack.c.l.b16 %v1949
    %v2066 = vunpack.c.h.b16 %v1949
    %v2067 = vunpack.c.l.b16 %v1950
    %v2068 = vunpack.c.h.b16 %v1950
    %v2069 = vpack.c.b16 %v2009, %v2005
    %v2070 = vpack.c.b16 %v2010, %v2006
    %v2071 = vpack.c.b16 %v2011, %v2007
    %v2072 = vpack.c.b16 %v2012, %v2008
    %v2073 = vpack.c.b16 %v2017, %v2013
    %v2074 = vpack.c.b16 %v2018, %v2014
    %v2075 = vpack.c.b16 %v2019, %v2015
    %v2076 = vpack.c.b16 %v2020, %v2016
    %v2077 = vpack.c.b16 %v2025, %v2021
    %v2078 = vpack.c.b16 %v2026, %v2022
    %v2079 = vpack.c.b16 %v2027, %v2023
    %v2080 = vpack.c.b16 %v2028, %v2024
    %v2081 = vpack.c.b16 %v2033, %v2029
    %v2082 = vpack.c.b16 %v2034, %v2030
    %v2083 = vpack.c.b16 %v2035, %v2031
    %v2084 = vpack.c.b16 %v2036, %v2032
    %v2085 = vpack.c.b16 %v2041, %v2037
    %v2086 = vpack.c.b16 %v2042, %v2038
    %v2087 = vpack.c.b16 %v2043, %v2039
    %v2088 = vpack.c.b16 %v2044, %v2040
    %v2089 = vpack.c.b16 %v2049, %v2045
    %v2090 = vpack.c.b16 %v2050, %v2046
    %v2091 = vpack.c.b16 %v2051, %v2047
    %v2092 = vpack.c.b16 %v2052, %v2048
    %v2093 = vpack.c.b16 %v2057, %v2053
    %v2094 = vpack.c.b16 %v2058, %v2054
    %v2095 = vpack.c.b16 %v2059, %v2055
    %v2096 = vpack.c.b16 %v2060, %v2056
    %v2097 = vpack.c.b16 %v2065, %v2061
    %v2098 = vpack.c.b16 %v2066, %v2062
    %v2099 = vpack.c.b16 %v2067, %v2063
    %v2100 = vpack.c.b16 %v2068, %v2064
    %2133 = vmatprep.subr.bf16.mxu0 %v2098
    %2134 = vmatpush1.bf16.msra.mxu0 %v2097
    %2135 = vmatprep.subr.bf16.mxu0 %v2094
    %2136 = vmatpush1.bf16.msra.mxu0 %v2093
    %2137 = vmatprep.subr.bf16.mxu0 %v2090
    %2138 = vmatpush1.bf16.msra.mxu0 %v2089
    %2139 = vmatprep.subr.bf16.mxu0 %v2086
    %2140 = vmatpush1.bf16.msra.mxu0 %v2085
    %2141 = vmatprep.subr.bf16.mxu0 %v2082
    %2142 = vmatpush1.bf16.msra.mxu0 %v2081
    %2143 = vmatprep.subr.bf16.mxu0 %v2078
    %2144 = vmatpush1.bf16.msra.mxu0 %v2077
    %2145 = vmatprep.subr.bf16.mxu0 %v2074
    %2146 = vmatpush1.bf16.msra.mxu0 %v2073
    %2147 = vmatprep.subr.bf16.mxu0 %v2070
    %2148 = vmatpush1.bf16.msra.mxu0 %v2069
    %2149 = vmatprep.subr.bf16.mxu0 0
    %2150 = vmatpush2.bf16.msra.mxu0 0
    %2151 = vmatprep.subr.bf16.mxu0 0
    %2152 = vmatpush2.bf16.msra.mxu0 0
    %2153 = vmatprep.subr.bf16.mxu0 0
    %2154 = vmatpush2.bf16.msra.mxu0 0
    %2155 = vmatprep.subr.bf16.mxu0 0
    %2156 = vmatpush2.bf16.msra.mxu0 0
    %2157 = vmatprep.subr.bf16.mxu0 0
    %2158 = vmatpush2.bf16.msra.mxu0 0
    %2159 = vmatprep.subr.bf16.mxu0 0
    %2160 = vmatpush2.bf16.msra.mxu0 0
    %2161 = vmatprep.subr.bf16.mxu0 0
    %2162 = vmatpush2.bf16.msra.mxu0 0
    %2163 = vmatprep.subr.bf16.mxu0 0
    %2164 = vmatpush2.bf16.msra.mxu0 0
    %2165 = vmatprep.mubr.bf16.mxu0 0
    %2166 = vmatmul.mubr.bf16.gmra.mxu0 %v1542
    %v2167 = vpop.f32.mrf.mxu0
    %v2168 = vadd.f32 %v1956, %v2167
    %v2169 = vpop.f32.mrf.mxu0
    %v2170 = vadd.f32 %v1960, %v2169
    %v2171 = vpop.f32.mrf.mxu0
    %v2172 = vadd.f32 %v1956, %v2171
    %v2173 = vpop.f32.mrf.mxu0
    %v2174 = vadd.f32 %v1960, %v2173
    %2175 = vdwg.mxu0
    %2176 = vmatprep.subr.bf16.mxu0 %v2100
    %2177 = vmatpush1.bf16.msra.mxu0 %v2099
    %2178 = vmatprep.subr.bf16.mxu0 %v2096
    %2179 = vmatpush1.bf16.msra.mxu0 %v2095
    %2180 = vmatprep.subr.bf16.mxu0 %v2092
    %2181 = vmatpush1.bf16.msra.mxu0 %v2091
    %2182 = vmatprep.subr.bf16.mxu0 %v2088
    %2183 = vmatpush1.bf16.msra.mxu0 %v2087
    %2184 = vmatprep.subr.bf16.mxu0 %v2084
    %2185 = vmatpush1.bf16.msra.mxu0 %v2083
    %2186 = vmatprep.subr.bf16.mxu0 %v2080
    %2187 = vmatpush1.bf16.msra.mxu0 %v2079
    %2188 = vmatprep.subr.bf16.mxu0 %v2076
    %2189 = vmatpush1.bf16.msra.mxu0 %v2075
    %2190 = vmatprep.subr.bf16.mxu0 %v2072
    %2191 = vmatpush1.bf16.msra.mxu0 %v2071
    %2192 = vmatprep.subr.bf16.mxu0 0
    %2193 = vmatpush2.bf16.msra.mxu0 0
    %2194 = vmatprep.subr.bf16.mxu0 0
    %2195 = vmatpush2.bf16.msra.mxu0 0
    %2196 = vmatprep.subr.bf16.mxu0 0
    %2197 = vmatpush2.bf16.msra.mxu0 0
    %2198 = vmatprep.subr.bf16.mxu0 0
    %2199 = vmatpush2.bf16.msra.mxu0 0
    %2200 = vmatprep.subr.bf16.mxu0 0
    %2201 = vmatpush2.bf16.msra.mxu0 0
    %2202 = vmatprep.subr.bf16.mxu0 0
    %2203 = vmatpush2.bf16.msra.mxu0 0
    %2204 = vmatprep.subr.bf16.mxu0 0
    %2205 = vmatpush2.bf16.msra.mxu0 0
    %2206 = vmatprep.subr.bf16.mxu0 0
    %2207 = vmatpush2.bf16.msra.mxu0 0
    %2208 = vmatprep.mubr.bf16.mxu0 0
    %2209 = vmatmul.mubr.bf16.gmra.mxu0 %v1542
    %v2210 = vpop.f32.mrf.mxu0
    %v2211 = vadd.f32 %v1964, %v2210
    %v2212 = vpop.f32.mrf.mxu0
    %v2213 = vadd.f32 %v1968, %v2212
    %v2214 = vpop.f32.mrf.mxu0
    %v2215 = vadd.f32 %v1964, %v2214
    %v2216 = vpop.f32.mrf.mxu0
    %v2217 = vadd.f32 %v1968, %v2216
    %2218 = vdwg.mxu0
    %v2219 = vmax.f32 %v2168, 0.0
    %v2220 = vmax.f32 %v2170, 0.0
    %v2221 = vmax.f32 %v2211, 0.0
    %v2222 = vmax.f32 %v2213, 0.0
    %v2223 = vmax.f32 %v2172, 0.0
    %v2224 = vmax.f32 %v2174, 0.0
    %v2225 = vmax.f32 %v2215, 0.0
    %v2226 = vmax.f32 %v2217, 0.0
    %v2227 = vpack.c.bf16 %v2223, %v2219
    %v2228 = vpack.c.bf16 %v2224, %v2220
    %v2229 = vpack.c.bf16 %v2225, %v2221
    %v2230 = vpack.c.bf16 %v2226, %v2222
    %v2231 = vld [vmem:[#allocation3 + $0x100] sm:$0xf]
    %v2232 = vld [vmem:[#allocation3 + $0x104] sm:$0xf]
    %v2233 = vld [vmem:[#allocation3 + $0x108] sm:$0xf]
    %v2234 = vld [vmem:[#allocation3 + $0x10c] sm:$0xf]
    %v2235 = vld [vmem:[#allocation3 + $0x110] sm:$0xf]
    %v2236 = vld [vmem:[#allocation3 + $0x114] sm:$0xf]
    %v2237 = vld [vmem:[#allocation3 + $0x118] sm:$0xf]
    %v2238 = vld [vmem:[#allocation3 + $0x11c] sm:$0xf]
    %v2239 = vld [vmem:[#allocation3 + $0x120] sm:$0xf]
    %v2240 = vld [vmem:[#allocation3 + $0x124] sm:$0xf]
    %v2241 = vld [vmem:[#allocation3 + $0x128] sm:$0xf]
    %v2242 = vld [vmem:[#allocation3 + $0x12c] sm:$0xf]
    %v2243 = vld [vmem:[#allocation3 + $0x130] sm:$0xf]
    %v2244 = vld [vmem:[#allocation3 + $0x134] sm:$0xf]
    %v2245 = vld [vmem:[#allocation3 + $0x138] sm:$0xf]
    %v2246 = vld [vmem:[#allocation3 + $0x13c] sm:$0xf]
    %v2247 = vld [vmem:[#allocation3 + $0x140] sm:$0xf]
    %v2248 = vld [vmem:[#allocation3 + $0x144] sm:$0xf]
    %v2249 = vld [vmem:[#allocation3 + $0x148] sm:$0xf]
    %v2250 = vld [vmem:[#allocation3 + $0x14c] sm:$0xf]
    %v2251 = vld [vmem:[#allocation3 + $0x150] sm:$0xf]
    %v2252 = vld [vmem:[#allocation3 + $0x154] sm:$0xf]
    %v2253 = vld [vmem:[#allocation3 + $0x158] sm:$0xf]
    %v2254 = vld [vmem:[#allocation3 + $0x15c] sm:$0xf]
    %v2255 = vld [vmem:[#allocation3 + $0x160] sm:$0xf]
    %v2256 = vld [vmem:[#allocation3 + $0x164] sm:$0xf]
    %v2257 = vld [vmem:[#allocation3 + $0x168] sm:$0xf]
    %v2258 = vld [vmem:[#allocation3 + $0x16c] sm:$0xf]
    %v2259 = vld [vmem:[#allocation3 + $0x170] sm:$0xf]
    %v2260 = vld [vmem:[#allocation3 + $0x174] sm:$0xf]
    %v2261 = vld [vmem:[#allocation3 + $0x178] sm:$0xf]
    %v2262 = vld [vmem:[#allocation3 + $0x17c] sm:$0xf]
    %v2263 = vld [vmem:[#allocation3 + $0x180] sm:$0xf]
    %v2264 = vld [vmem:[#allocation3 + $0x184] sm:$0xf]
    %v2265 = vld [vmem:[#allocation3 + $0x188] sm:$0xf]
    %v2266 = vld [vmem:[#allocation3 + $0x18c] sm:$0xf]
    %v2267 = vld [vmem:[#allocation3 + $0x190] sm:$0xf]
    %v2268 = vld [vmem:[#allocation3 + $0x194] sm:$0xf]
    %v2269 = vld [vmem:[#allocation3 + $0x198] sm:$0xf]
    %v2270 = vld [vmem:[#allocation3 + $0x19c] sm:$0xf]
    %v2271 = vld [vmem:[#allocation3 + $0x1a0] sm:$0xf]
    %v2272 = vld [vmem:[#allocation3 + $0x1a4] sm:$0xf]
    %v2273 = vld [vmem:[#allocation3 + $0x1a8] sm:$0xf]
    %v2274 = vld [vmem:[#allocation3 + $0x1ac] sm:$0xf]
    %v2275 = vld [vmem:[#allocation3 + $0x1b0] sm:$0xf]
    %v2276 = vld [vmem:[#allocation3 + $0x1b4] sm:$0xf]
    %v2277 = vld [vmem:[#allocation3 + $0x1b8] sm:$0xf]
    %v2278 = vld [vmem:[#allocation3 + $0x1bc] sm:$0xf]
    %v2279 = vld [vmem:[#allocation3 + $0x1c0] sm:$0xf]
    %v2280 = vld [vmem:[#allocation3 + $0x1c4] sm:$0xf]
    %v2281 = vld [vmem:[#allocation3 + $0x1c8] sm:$0xf]
    %v2282 = vld [vmem:[#allocation3 + $0x1cc] sm:$0xf]
    %v2283 = vld [vmem:[#allocation3 + $0x1d0] sm:$0xf]
    %v2284 = vld [vmem:[#allocation3 + $0x1d4] sm:$0xf]
    %v2285 = vld [vmem:[#allocation3 + $0x1d8] sm:$0xf]
    %v2286 = vld [vmem:[#allocation3 + $0x1dc] sm:$0xf]
    %v2287 = vld [vmem:[#allocation3 + $0x1e0] sm:$0xf]
    %v2288 = vld [vmem:[#allocation3 + $0x1e4] sm:$0xf]
    %v2289 = vld [vmem:[#allocation3 + $0x1e8] sm:$0xf]
    %v2290 = vld [vmem:[#allocation3 + $0x1ec] sm:$0xf]
    %v2291 = vld [vmem:[#allocation3 + $0x1f0] sm:$0xf]
    %v2292 = vld [vmem:[#allocation3 + $0x1f4] sm:$0xf]
    %v2293 = vld [vmem:[#allocation3 + $0x1f8] sm:$0xf]
    %v2294 = vld [vmem:[#allocation3 + $0x1fc] sm:$0xf]
    %v2359 = vunpack.c.l.b16 %v2231
    %v2360 = vunpack.c.l.b16 %v2232
    %v2361 = vunpack.c.l.b16 %v2233
    %v2362 = vunpack.c.l.b16 %v2234
    %v2363 = vunpack.c.l.b16 %v2235
    %v2364 = vunpack.c.l.b16 %v2236
    %v2365 = vunpack.c.l.b16 %v2237
    %v2366 = vunpack.c.l.b16 %v2238
    %v2367 = vunpack.c.l.b16 %v2239
    %v2368 = vunpack.c.l.b16 %v2240
    %v2369 = vunpack.c.l.b16 %v2241
    %v2370 = vunpack.c.l.b16 %v2242
    %v2371 = vunpack.c.l.b16 %v2243
    %v2372 = vunpack.c.l.b16 %v2244
    %v2373 = vunpack.c.l.b16 %v2245
    %v2374 = vunpack.c.l.b16 %v2246
    %v2375 = vunpack.c.l.b16 %v2247
    %v2376 = vunpack.c.l.b16 %v2248
    %v2377 = vunpack.c.l.b16 %v2249
    %v2378 = vunpack.c.l.b16 %v2250
    %v2379 = vunpack.c.l.b16 %v2251
    %v2380 = vunpack.c.l.b16 %v2252
    %v2381 = vunpack.c.l.b16 %v2253
    %v2382 = vunpack.c.l.b16 %v2254
    %v2383 = vunpack.c.l.b16 %v2255
    %v2384 = vunpack.c.l.b16 %v2256
    %v2385 = vunpack.c.l.b16 %v2257
    %v2386 = vunpack.c.l.b16 %v2258
    %v2387 = vunpack.c.l.b16 %v2259
    %v2388 = vunpack.c.l.b16 %v2260
    %v2389 = vunpack.c.l.b16 %v2261
    %v2390 = vunpack.c.l.b16 %v2262
    %v2391 = vunpack.c.l.b16 %v2263
    %v2392 = vunpack.c.l.b16 %v2264
    %v2393 = vunpack.c.l.b16 %v2265
    %v2394 = vunpack.c.l.b16 %v2266
    %v2395 = vunpack.c.l.b16 %v2267
    %v2396 = vunpack.c.l.b16 %v2268
    %v2397 = vunpack.c.l.b16 %v2269
    %v2398 = vunpack.c.l.b16 %v2270
    %v2399 = vunpack.c.l.b16 %v2271
    %v2400 = vunpack.c.l.b16 %v2272
    %v2401 = vunpack.c.l.b16 %v2273
    %v2402 = vunpack.c.l.b16 %v2274
    %v2403 = vunpack.c.l.b16 %v2275
    %v2404 = vunpack.c.l.b16 %v2276
    %v2405 = vunpack.c.l.b16 %v2277
    %v2406 = vunpack.c.l.b16 %v2278
    %v2407 = vunpack.c.l.b16 %v2279
    %v2408 = vunpack.c.l.b16 %v2280
    %v2409 = vunpack.c.l.b16 %v2281
    %v2410 = vunpack.c.l.b16 %v2282
    %v2411 = vunpack.c.l.b16 %v2283
    %v2412 = vunpack.c.l.b16 %v2284
    %v2413 = vunpack.c.l.b16 %v2285
    %v2414 = vunpack.c.l.b16 %v2286
    %v2415 = vunpack.c.l.b16 %v2287
    %v2416 = vunpack.c.l.b16 %v2288
    %v2417 = vunpack.c.l.b16 %v2289
    %v2418 = vunpack.c.l.b16 %v2290
    %v2419 = vunpack.c.l.b16 %v2291
    %v2420 = vunpack.c.l.b16 %v2292
    %v2421 = vunpack.c.l.b16 %v2293
    %v2422 = vunpack.c.l.b16 %v2294
    %v2423 = vpack.c.b16 %v2360, %v2359
    %v2424 = vpack.c.b16 %v2362, %v2361
    %v2425 = vpack.c.b16 %v2364, %v2363
    %v2426 = vpack.c.b16 %v2366, %v2365
    %v2427 = vpack.c.b16 %v2368, %v2367
    %v2428 = vpack.c.b16 %v2370, %v2369
    %v2429 = vpack.c.b16 %v2372, %v2371
    %v2430 = vpack.c.b16 %v2374, %v2373
    %v2431 = vpack.c.b16 %v2376, %v2375
    %v2432 = vpack.c.b16 %v2378, %v2377
    %v2433 = vpack.c.b16 %v2380, %v2379
    %v2434 = vpack.c.b16 %v2382, %v2381
    %v2435 = vpack.c.b16 %v2384, %v2383
    %v2436 = vpack.c.b16 %v2386, %v2385
    %v2437 = vpack.c.b16 %v2388, %v2387
    %v2438 = vpack.c.b16 %v2390, %v2389
    %v2439 = vpack.c.b16 %v2392, %v2391
    %v2440 = vpack.c.b16 %v2394, %v2393
    %v2441 = vpack.c.b16 %v2396, %v2395
    %v2442 = vpack.c.b16 %v2398, %v2397
    %v2443 = vpack.c.b16 %v2400, %v2399
    %v2444 = vpack.c.b16 %v2402, %v2401
    %v2445 = vpack.c.b16 %v2404, %v2403
    %v2446 = vpack.c.b16 %v2406, %v2405
    %v2447 = vpack.c.b16 %v2408, %v2407
    %v2448 = vpack.c.b16 %v2410, %v2409
    %v2449 = vpack.c.b16 %v2412, %v2411
    %v2450 = vpack.c.b16 %v2414, %v2413
    %v2451 = vpack.c.b16 %v2416, %v2415
    %v2452 = vpack.c.b16 %v2418, %v2417
    %v2453 = vpack.c.b16 %v2420, %v2419
    %v2454 = vpack.c.b16 %v2422, %v2421
    %2487 = vmatprep.subr.bf16.mxu0 0
    %2488 = vmatpush1.bf16.msra.mxu0 %v2430
    %2489 = vmatprep.subr.bf16.mxu0 0
    %2490 = vmatpush1.bf16.msra.mxu0 %v2429
    %2491 = vmatprep.subr.bf16.mxu0 0
    %2492 = vmatpush1.bf16.msra.mxu0 %v2428
    %2493 = vmatprep.subr.bf16.mxu0 0
    %2494 = vmatpush1.bf16.msra.mxu0 %v2427
    %2495 = vmatprep.subr.bf16.mxu0 0
    %2496 = vmatpush1.bf16.msra.mxu0 %v2426
    %2497 = vmatprep.subr.bf16.mxu0 0
    %2498 = vmatpush1.bf16.msra.mxu0 %v2425
    %2499 = vmatprep.subr.bf16.mxu0 0
    %2500 = vmatpush1.bf16.msra.mxu0 %v2424
    %2501 = vmatprep.subr.bf16.mxu0 0
    %2502 = vmatpush1.bf16.msra.mxu0 %v2423
    %2503 = vmatprep.subr.bf16.mxu0 0
    %2504 = vmatpush2.bf16.msra.mxu0 %v2438
    %2505 = vmatprep.subr.bf16.mxu0 0
    %2506 = vmatpush2.bf16.msra.mxu0 %v2437
    %2507 = vmatprep.subr.bf16.mxu0 0
    %2508 = vmatpush2.bf16.msra.mxu0 %v2436
    %2509 = vmatprep.subr.bf16.mxu0 0
    %2510 = vmatpush2.bf16.msra.mxu0 %v2435
    %2511 = vmatprep.subr.bf16.mxu0 0
    %2512 = vmatpush2.bf16.msra.mxu0 %v2434
    %2513 = vmatprep.subr.bf16.mxu0 0
    %2514 = vmatpush2.bf16.msra.mxu0 %v2433
    %2515 = vmatprep.subr.bf16.mxu0 0
    %2516 = vmatpush2.bf16.msra.mxu0 %v2432
    %2517 = vmatprep.subr.bf16.mxu0 0
    %2518 = vmatpush2.bf16.msra.mxu0 %v2431
    %2519 = vmatprep.mubr.bf16.mxu0 %v2228
    %2520 = vmatmul.mubr.bf16.gmra.mxu0 %v2227
    %v2521 = vpop.f32.mrf.mxu0
    %v2522 = vadd.f32 0.0, %v2521
    %v2523 = vpop.f32.mrf.mxu0
    %v2524 = vpop.f32.mrf.mxu0
    %v2525 = vadd.f32 0.0, %v2524
    %v2526 = vpop.f32.mrf.mxu0
    %2527 = vdwg.mxu0
    %2528 = vmatprep.subr.bf16.mxu0 0
    %2529 = vmatpush1.bf16.msra.mxu0 %v2446
    %2530 = vmatprep.subr.bf16.mxu0 0
    %2531 = vmatpush1.bf16.msra.mxu0 %v2445
    %2532 = vmatprep.subr.bf16.mxu0 0
    %2533 = vmatpush1.bf16.msra.mxu0 %v2444
    %2534 = vmatprep.subr.bf16.mxu0 0
    %2535 = vmatpush1.bf16.msra.mxu0 %v2443
    %2536 = vmatprep.subr.bf16.mxu0 0
    %2537 = vmatpush1.bf16.msra.mxu0 %v2442
    %2538 = vmatprep.subr.bf16.mxu0 0
    %2539 = vmatpush1.bf16.msra.mxu0 %v2441
    %2540 = vmatprep.subr.bf16.mxu0 0
    %2541 = vmatpush1.bf16.msra.mxu0 %v2440
    %2542 = vmatprep.subr.bf16.mxu0 0
    %2543 = vmatpush1.bf16.msra.mxu0 %v2439
    %2544 = vmatprep.subr.bf16.mxu0 0
    %2545 = vmatpush2.bf16.msra.mxu0 %v2454
    %2546 = vmatprep.subr.bf16.mxu0 0
    %2547 = vmatpush2.bf16.msra.mxu0 %v2453
    %2548 = vmatprep.subr.bf16.mxu0 0
    %2549 = vmatpush2.bf16.msra.mxu0 %v2452
    %2550 = vmatprep.subr.bf16.mxu0 0
    %2551 = vmatpush2.bf16.msra.mxu0 %v2451
    %2552 = vmatprep.subr.bf16.mxu0 0
    %2553 = vmatpush2.bf16.msra.mxu0 %v2450
    %2554 = vmatprep.subr.bf16.mxu0 0
    %2555 = vmatpush2.bf16.msra.mxu0 %v2449
    %2556 = vmatprep.subr.bf16.mxu0 0
    %2557 = vmatpush2.bf16.msra.mxu0 %v2448
    %2558 = vmatprep.subr.bf16.mxu0 0
    %2559 = vmatpush2.bf16.msra.mxu0 %v2447
    %2560 = vmatprep.mubr.bf16.mxu0 %v2230
    %2561 = vmatmul.mubr.bf16.gmra.mxu0 %v2229
    %v2562 = vpop.f32.mrf.mxu0
    %v2563 = vadd.f32 %v2522, %v2562
    %v2564 = vpop.f32.mrf.mxu0
    %v2565 = vpop.f32.mrf.mxu0
    %v2566 = vadd.f32 %v2525, %v2565
    %v2567 = vpop.f32.mrf.mxu0
    %2568 = vdwg.mxu0
    %v2633 = vunpack.c.l.b16 %v1855
    %v2634 = vunpack.c.l.b16 %v1856
    %v2635 = vunpack.c.l.b16 %v1857
    %v2636 = vunpack.c.l.b16 %v1858
    %v2637 = vunpack.c.l.b16 %v1859
    %v2638 = vunpack.c.l.b16 %v1860
    %v2639 = vunpack.c.l.b16 %v1861
    %v2640 = vunpack.c.l.b16 %v1862
    %v2641 = vunpack.c.l.b16 %v1863
    %v2642 = vunpack.c.l.b16 %v1864
    %v2643 = vunpack.c.l.b16 %v1865
    %v2644 = vunpack.c.l.b16 %v1866
    %v2645 = vunpack.c.l.b16 %v1867
    %v2646 = vunpack.c.l.b16 %v1868
    %v2647 = vunpack.c.l.b16 %v1869
    %v2648 = vunpack.c.l.b16 %v1870
    %v2649 = vunpack.c.l.b16 %v1871
    %v2650 = vunpack.c.l.b16 %v1872
    %v2651 = vunpack.c.l.b16 %v1873
    %v2652 = vunpack.c.l.b16 %v1874
    %v2653 = vunpack.c.l.b16 %v1875
    %v2654 = vunpack.c.l.b16 %v1876
    %v2655 = vunpack.c.l.b16 %v1877
    %v2656 = vunpack.c.l.b16 %v1878
    %v2657 = vunpack.c.l.b16 %v1879
    %v2658 = vunpack.c.l.b16 %v1880
    %v2659 = vunpack.c.l.b16 %v1881
    %v2660 = vunpack.c.l.b16 %v1882
    %v2661 = vunpack.c.l.b16 %v1883
    %v2662 = vunpack.c.l.b16 %v1884
    %v2663 = vunpack.c.l.b16 %v1885
    %v2664 = vunpack.c.l.b16 %v1886
    %v2665 = vunpack.c.l.b16 %v1887
    %v2666 = vunpack.c.l.b16 %v1888
    %v2667 = vunpack.c.l.b16 %v1889
    %v2668 = vunpack.c.l.b16 %v1890
    %v2669 = vunpack.c.l.b16 %v1891
    %v2670 = vunpack.c.l.b16 %v1892
    %v2671 = vunpack.c.l.b16 %v1893
    %v2672 = vunpack.c.l.b16 %v1894
    %v2673 = vunpack.c.l.b16 %v1895
    %v2674 = vunpack.c.l.b16 %v1896
    %v2675 = vunpack.c.l.b16 %v1897
    %v2676 = vunpack.c.l.b16 %v1898
    %v2677 = vunpack.c.l.b16 %v1899
    %v2678 = vunpack.c.l.b16 %v1900
    %v2679 = vunpack.c.l.b16 %v1901
    %v2680 = vunpack.c.l.b16 %v1902
    %v2681 = vunpack.c.l.b16 %v1903
    %v2682 = vunpack.c.l.b16 %v1904
    %v2683 = vunpack.c.l.b16 %v1905
    %v2684 = vunpack.c.l.b16 %v1906
    %v2685 = vunpack.c.l.b16 %v1907
    %v2686 = vunpack.c.l.b16 %v1908
    %v2687 = vunpack.c.l.b16 %v1909
    %v2688 = vunpack.c.l.b16 %v1910
    %v2689 = vunpack.c.l.b16 %v1911
    %v2690 = vunpack.c.l.b16 %v1912
    %v2691 = vunpack.c.l.b16 %v1913
    %v2692 = vunpack.c.l.b16 %v1914
    %v2693 = vunpack.c.l.b16 %v1915
    %v2694 = vunpack.c.l.b16 %v1916
    %v2695 = vunpack.c.l.b16 %v1917
    %v2696 = vunpack.c.l.b16 %v1918
    %v2697 = vpack.c.b16 %v2634, %v2633
    %v2698 = vpack.c.b16 %v2636, %v2635
    %v2699 = vpack.c.b16 %v2638, %v2637
    %v2700 = vpack.c.b16 %v2640, %v2639
    %v2701 = vpack.c.b16 %v2642, %v2641
    %v2702 = vpack.c.b16 %v2644, %v2643
    %v2703 = vpack.c.b16 %v2646, %v2645
    %v2704 = vpack.c.b16 %v2648, %v2647
    %v2705 = vpack.c.b16 %v2650, %v2649
    %v2706 = vpack.c.b16 %v2652, %v2651
    %v2707 = vpack.c.b16 %v2654, %v2653
    %v2708 = vpack.c.b16 %v2656, %v2655
    %v2709 = vpack.c.b16 %v2658, %v2657
    %v2710 = vpack.c.b16 %v2660, %v2659
    %v2711 = vpack.c.b16 %v2662, %v2661
    %v2712 = vpack.c.b16 %v2664, %v2663
    %v2713 = vpack.c.b16 %v2666, %v2665
    %v2714 = vpack.c.b16 %v2668, %v2667
    %v2715 = vpack.c.b16 %v2670, %v2669
    %v2716 = vpack.c.b16 %v2672, %v2671
    %v2717 = vpack.c.b16 %v2674, %v2673
    %v2718 = vpack.c.b16 %v2676, %v2675
    %v2719 = vpack.c.b16 %v2678, %v2677
    %v2720 = vpack.c.b16 %v2680, %v2679
    %v2721 = vpack.c.b16 %v2682, %v2681
    %v2722 = vpack.c.b16 %v2684, %v2683
    %v2723 = vpack.c.b16 %v2686, %v2685
    %v2724 = vpack.c.b16 %v2688, %v2687
    %v2725 = vpack.c.b16 %v2690, %v2689
    %v2726 = vpack.c.b16 %v2692, %v2691
    %v2727 = vpack.c.b16 %v2694, %v2693
    %v2728 = vpack.c.b16 %v2696, %v2695
    %2761 = vmatprep.subr.bf16.mxu0 0
    %2762 = vmatpush1.bf16.msra.mxu0 %v2704
    %2763 = vmatprep.subr.bf16.mxu0 0
    %2764 = vmatpush1.bf16.msra.mxu0 %v2703
    %2765 = vmatprep.subr.bf16.mxu0 0
    %2766 = vmatpush1.bf16.msra.mxu0 %v2702
    %2767 = vmatprep.subr.bf16.mxu0 0
    %2768 = vmatpush1.bf16.msra.mxu0 %v2701
    %2769 = vmatprep.subr.bf16.mxu0 0
    %2770 = vmatpush1.bf16.msra.mxu0 %v2700
    %2771 = vmatprep.subr.bf16.mxu0 0
    %2772 = vmatpush1.bf16.msra.mxu0 %v2699
    %2773 = vmatprep.subr.bf16.mxu0 0
    %2774 = vmatpush1.bf16.msra.mxu0 %v2698
    %2775 = vmatprep.subr.bf16.mxu0 0
    %2776 = vmatpush1.bf16.msra.mxu0 %v2697
    %2777 = vmatprep.subr.bf16.mxu0 0
    %2778 = vmatpush2.bf16.msra.mxu0 %v2712
    %2779 = vmatprep.subr.bf16.mxu0 0
    %2780 = vmatpush2.bf16.msra.mxu0 %v2711
    %2781 = vmatprep.subr.bf16.mxu0 0
    %2782 = vmatpush2.bf16.msra.mxu0 %v2710
    %2783 = vmatprep.subr.bf16.mxu0 0
    %2784 = vmatpush2.bf16.msra.mxu0 %v2709
    %2785 = vmatprep.subr.bf16.mxu0 0
    %2786 = vmatpush2.bf16.msra.mxu0 %v2708
    %2787 = vmatprep.subr.bf16.mxu0 0
    %2788 = vmatpush2.bf16.msra.mxu0 %v2707
    %2789 = vmatprep.subr.bf16.mxu0 0
    %2790 = vmatpush2.bf16.msra.mxu0 %v2706
    %2791 = vmatprep.subr.bf16.mxu0 0
    %2792 = vmatpush2.bf16.msra.mxu0 %v2705
    %2793 = vmatprep.mubr.bf16.mxu0 %v1852
    %2794 = vmatmul.mubr.bf16.gmra.mxu0 %v1851
    %v2795 = vpop.f32.mrf.mxu0
    %v2796 = vadd.f32 %v2563, %v2795
    %v2797 = vpop.f32.mrf.mxu0
    %v2798 = vpop.f32.mrf.mxu0
    %v2799 = vadd.f32 %v2566, %v2798
    %v2800 = vpop.f32.mrf.mxu0
    %2801 = vdwg.mxu0
    %2802 = vmatprep.subr.bf16.mxu0 0
    %2803 = vmatpush1.bf16.msra.mxu0 %v2720
    %2804 = vmatprep.subr.bf16.mxu0 0
    %2805 = vmatpush1.bf16.msra.mxu0 %v2719
    %2806 = vmatprep.subr.bf16.mxu0 0
    %2807 = vmatpush1.bf16.msra.mxu0 %v2718
    %2808 = vmatprep.subr.bf16.mxu0 0
    %2809 = vmatpush1.bf16.msra.mxu0 %v2717
    %2810 = vmatprep.subr.bf16.mxu0 0
    %2811 = vmatpush1.bf16.msra.mxu0 %v2716
    %2812 = vmatprep.subr.bf16.mxu0 0
    %2813 = vmatpush1.bf16.msra.mxu0 %v2715
    %2814 = vmatprep.subr.bf16.mxu0 0
    %2815 = vmatpush1.bf16.msra.mxu0 %v2714
    %2816 = vmatprep.subr.bf16.mxu0 0
    %2817 = vmatpush1.bf16.msra.mxu0 %v2713
    %2818 = vmatprep.subr.bf16.mxu0 0
    %2819 = vmatpush2.bf16.msra.mxu0 %v2728
    %2820 = vmatprep.subr.bf16.mxu0 0
    %2821 = vmatpush2.bf16.msra.mxu0 %v2727
    %2822 = vmatprep.subr.bf16.mxu0 0
    %2823 = vmatpush2.bf16.msra.mxu0 %v2726
    %2824 = vmatprep.subr.bf16.mxu0 0
    %2825 = vmatpush2.bf16.msra.mxu0 %v2725
    %2826 = vmatprep.subr.bf16.mxu0 0
    %2827 = vmatpush2.bf16.msra.mxu0 %v2724
    %2828 = vmatprep.subr.bf16.mxu0 0
    %2829 = vmatpush2.bf16.msra.mxu0 %v2723
    %2830 = vmatprep.subr.bf16.mxu0 0
    %2831 = vmatpush2.bf16.msra.mxu0 %v2722
    %2832 = vmatprep.subr.bf16.mxu0 0
    %2833 = vmatpush2.bf16.msra.mxu0 %v2721
    %2834 = vmatprep.mubr.bf16.mxu0 %v1854
    %2835 = vmatmul.mubr.bf16.gmra.mxu0 %v1853
    %v2836 = vpop.f32.mrf.mxu0
    %v2837 = vadd.f32 %v2796, %v2836
    %v2838 = vpop.f32.mrf.mxu0
    %v2839 = vpop.f32.mrf.mxu0
    %v2840 = vadd.f32 %v2799, %v2839
    %v2841 = vpop.f32.mrf.mxu0
    %2842 = vdwg.mxu0
    %v2843 = vld [vmem:[#allocation2 + $0x20] sm:$0xff]
    %v2844 = vld [vmem:[#allocation2 + $0x28] sm:$0xff]
    %v2845 = vld [vmem:[#allocation2 + $0x60] sm:$0xff]
    %v2846 = vld [vmem:[#allocation2 + $0x68] sm:$0xff]
    %v2847 = vld [vmem:[#allocation2 + $0xa0] sm:$0xff]
    %v2848 = vld [vmem:[#allocation2 + $0xa8] sm:$0xff]
    %v2849 = vld [vmem:[#allocation2 + $0xe0] sm:$0xff]
    %v2850 = vld [vmem:[#allocation2 + $0xe8] sm:$0xff]
    %v2851 = vld [vmem:[#allocation2 + $0x120] sm:$0xff]
    %v2852 = vld [vmem:[#allocation2 + $0x128] sm:$0xff]
    %v2853 = vld [vmem:[#allocation2 + $0x160] sm:$0xff]
    %v2854 = vld [vmem:[#allocation2 + $0x168] sm:$0xff]
    %v2855 = vld [vmem:[#allocation2 + $0x1a0] sm:$0xff]
    %v2856 = vld [vmem:[#allocation2 + $0x1a8] sm:$0xff]
    %v2857 = vld [vmem:[#allocation2 + $0x1e0] sm:$0xff]
    %v2858 = vld [vmem:[#allocation2 + $0x1e8] sm:$0xff]
    %v2859 = vld [vmem:[#allocation2 + $0x220] sm:$0xff]
    %v2860 = vld [vmem:[#allocation2 + $0x228] sm:$0xff]
    %v2861 = vld [vmem:[#allocation2 + $0x260] sm:$0xff]
    %v2862 = vld [vmem:[#allocation2 + $0x268] sm:$0xff]
    %v2863 = vld [vmem:[#allocation2 + $0x2a0] sm:$0xff]
    %v2864 = vld [vmem:[#allocation2 + $0x2a8] sm:$0xff]
    %v2865 = vld [vmem:[#allocation2 + $0x2e0] sm:$0xff]
    %v2866 = vld [vmem:[#allocation2 + $0x2e8] sm:$0xff]
    %v2867 = vld [vmem:[#allocation2 + $0x320] sm:$0xff]
    %v2868 = vld [vmem:[#allocation2 + $0x328] sm:$0xff]
    %v2869 = vld [vmem:[#allocation2 + $0x360] sm:$0xff]
    %v2870 = vld [vmem:[#allocation2 + $0x368] sm:$0xff]
    %v2871 = vld [vmem:[#allocation2 + $0x3a0] sm:$0xff]
    %v2872 = vld [vmem:[#allocation2 + $0x3a8] sm:$0xff]
    %v2873 = vld [vmem:[#allocation2 + $0x3e0] sm:$0xff]
    %v2874 = vld [vmem:[#allocation2 + $0x3e8] sm:$0xff]
    %v2875 = vld [vmem:[#allocation14 + $0x8] sm:$0xf]
    %v2877 = vlaneseq
    %v2878 = vshrl.u32 %v2877, 7
    %v2879 = vsub.s32 0, %v2878
    %v2880 = vrot.slane %v2875, %v2879
    %v2881 = vlaneseq
    %v2882 = vshrl.u32 %v2881, 7
    %v2883 = vsub.s32 1, %v2882
    %v2884 = vrot.slane %v2875, %v2883
    %v2885 = vlaneseq
    %v2886 = vshrl.u32 %v2885, 7
    %v2887 = vsub.s32 2, %v2886
    %v2888 = vrot.slane %v2875, %v2887
    %v2889 = vlaneseq
    %v2890 = vshrl.u32 %v2889, 7
    %v2891 = vsub.s32 3, %v2890
    %v2892 = vrot.slane %v2875, %v2891
    %v2929 = vunpack.c.l.b16 %v2843
    %v2930 = vunpack.c.h.b16 %v2843
    %v2931 = vunpack.c.l.b16 %v2844
    %v2932 = vunpack.c.h.b16 %v2844
    %v2933 = vunpack.c.l.b16 %v2845
    %v2934 = vunpack.c.h.b16 %v2845
    %v2935 = vunpack.c.l.b16 %v2846
    %v2936 = vunpack.c.h.b16 %v2846
    %v2937 = vunpack.c.l.b16 %v2847
    %v2938 = vunpack.c.h.b16 %v2847
    %v2939 = vunpack.c.l.b16 %v2848
    %v2940 = vunpack.c.h.b16 %v2848
    %v2941 = vunpack.c.l.b16 %v2849
    %v2942 = vunpack.c.h.b16 %v2849
    %v2943 = vunpack.c.l.b16 %v2850
    %v2944 = vunpack.c.h.b16 %v2850
    %v2945 = vunpack.c.l.b16 %v2851
    %v2946 = vunpack.c.h.b16 %v2851
    %v2947 = vunpack.c.l.b16 %v2852
    %v2948 = vunpack.c.h.b16 %v2852
    %v2949 = vunpack.c.l.b16 %v2853
    %v2950 = vunpack.c.h.b16 %v2853
    %v2951 = vunpack.c.l.b16 %v2854
    %v2952 = vunpack.c.h.b16 %v2854
    %v2953 = vunpack.c.l.b16 %v2855
    %v2954 = vunpack.c.h.b16 %v2855
    %v2955 = vunpack.c.l.b16 %v2856
    %v2956 = vunpack.c.h.b16 %v2856
    %v2957 = vunpack.c.l.b16 %v2857
    %v2958 = vunpack.c.h.b16 %v2857
    %v2959 = vunpack.c.l.b16 %v2858
    %v2960 = vunpack.c.h.b16 %v2858
    %v2961 = vunpack.c.l.b16 %v2859
    %v2962 = vunpack.c.h.b16 %v2859
    %v2963 = vunpack.c.l.b16 %v2860
    %v2964 = vunpack.c.h.b16 %v2860
    %v2965 = vunpack.c.l.b16 %v2861
    %v2966 = vunpack.c.h.b16 %v2861
    %v2967 = vunpack.c.l.b16 %v2862
    %v2968 = vunpack.c.h.b16 %v2862
    %v2969 = vunpack.c.l.b16 %v2863
    %v2970 = vunpack.c.h.b16 %v2863
    %v2971 = vunpack.c.l.b16 %v2864
    %v2972 = vunpack.c.h.b16 %v2864
    %v2973 = vunpack.c.l.b16 %v2865
    %v2974 = vunpack.c.h.b16 %v2865
    %v2975 = vunpack.c.l.b16 %v2866
    %v2976 = vunpack.c.h.b16 %v2866
    %v2977 = vunpack.c.l.b16 %v2867
    %v2978 = vunpack.c.h.b16 %v2867
    %v2979 = vunpack.c.l.b16 %v2868
    %v2980 = vunpack.c.h.b16 %v2868
    %v2981 = vunpack.c.l.b16 %v2869
    %v2982 = vunpack.c.h.b16 %v2869
    %v2983 = vunpack.c.l.b16 %v2870
    %v2984 = vunpack.c.h.b16 %v2870
    %v2985 = vunpack.c.l.b16 %v2871
    %v2986 = vunpack.c.h.b16 %v2871
    %v2987 = vunpack.c.l.b16 %v2872
    %v2988 = vunpack.c.h.b16 %v2872
    %v2989 = vunpack.c.l.b16 %v2873
    %v2990 = vunpack.c.h.b16 %v2873
    %v2991 = vunpack.c.l.b16 %v2874
    %v2992 = vunpack.c.h.b16 %v2874
    %v2993 = vpack.c.b16 %v2933, %v2929
    %v2994 = vpack.c.b16 %v2934, %v2930
    %v2995 = vpack.c.b16 %v2935, %v2931
    %v2996 = vpack.c.b16 %v2936, %v2932
    %v2997 = vpack.c.b16 %v2941, %v2937
    %v2998 = vpack.c.b16 %v2942, %v2938
    %v2999 = vpack.c.b16 %v2943, %v2939
    %v3000 = vpack.c.b16 %v2944, %v2940
    %v3001 = vpack.c.b16 %v2949, %v2945
    %v3002 = vpack.c.b16 %v2950, %v2946
    %v3003 = vpack.c.b16 %v2951, %v2947
    %v3004 = vpack.c.b16 %v2952, %v2948
    %v3005 = vpack.c.b16 %v2957, %v2953
    %v3006 = vpack.c.b16 %v2958, %v2954
    %v3007 = vpack.c.b16 %v2959, %v2955
    %v3008 = vpack.c.b16 %v2960, %v2956
    %v3009 = vpack.c.b16 %v2965, %v2961
    %v3010 = vpack.c.b16 %v2966, %v2962
    %v3011 = vpack.c.b16 %v2967, %v2963
    %v3012 = vpack.c.b16 %v2968, %v2964
    %v3013 = vpack.c.b16 %v2973, %v2969
    %v3014 = vpack.c.b16 %v2974, %v2970
    %v3015 = vpack.c.b16 %v2975, %v2971
    %v3016 = vpack.c.b16 %v2976, %v2972
    %v3017 = vpack.c.b16 %v2981, %v2977
    %v3018 = vpack.c.b16 %v2982, %v2978
    %v3019 = vpack.c.b16 %v2983, %v2979
    %v3020 = vpack.c.b16 %v2984, %v2980
    %v3021 = vpack.c.b16 %v2989, %v2985
    %v3022 = vpack.c.b16 %v2990, %v2986
    %v3023 = vpack.c.b16 %v2991, %v2987
    %v3024 = vpack.c.b16 %v2992, %v2988
    %3057 = vmatprep.subr.bf16.mxu0 %v3022
    %3058 = vmatpush1.bf16.msra.mxu0 %v3021
    %3059 = vmatprep.subr.bf16.mxu0 %v3018
    %3060 = vmatpush1.bf16.msra.mxu0 %v3017
    %3061 = vmatprep.subr.bf16.mxu0 %v3014
    %3062 = vmatpush1.bf16.msra.mxu0 %v3013
    %3063 = vmatprep.subr.bf16.mxu0 %v3010
    %3064 = vmatpush1.bf16.msra.mxu0 %v3009
    %3065 = vmatprep.subr.bf16.mxu0 %v3006
    %3066 = vmatpush1.bf16.msra.mxu0 %v3005
    %3067 = vmatprep.subr.bf16.mxu0 %v3002
    %3068 = vmatpush1.bf16.msra.mxu0 %v3001
    %3069 = vmatprep.subr.bf16.mxu0 %v2998
    %3070 = vmatpush1.bf16.msra.mxu0 %v2997
    %3071 = vmatprep.subr.bf16.mxu0 %v2994
    %3072 = vmatpush1.bf16.msra.mxu0 %v2993
    %3073 = vmatprep.subr.bf16.mxu0 0
    %3074 = vmatpush2.bf16.msra.mxu0 0
    %3075 = vmatprep.subr.bf16.mxu0 0
    %3076 = vmatpush2.bf16.msra.mxu0 0
    %3077 = vmatprep.subr.bf16.mxu0 0
    %3078 = vmatpush2.bf16.msra.mxu0 0
    %3079 = vmatprep.subr.bf16.mxu0 0
    %3080 = vmatpush2.bf16.msra.mxu0 0
    %3081 = vmatprep.subr.bf16.mxu0 0
    %3082 = vmatpush2.bf16.msra.mxu0 0
    %3083 = vmatprep.subr.bf16.mxu0 0
    %3084 = vmatpush2.bf16.msra.mxu0 0
    %3085 = vmatprep.subr.bf16.mxu0 0
    %3086 = vmatpush2.bf16.msra.mxu0 0
    %3087 = vmatprep.subr.bf16.mxu0 0
    %3088 = vmatpush2.bf16.msra.mxu0 0
    %3089 = vmatprep.mubr.bf16.mxu0 0
    %3090 = vmatmul.mubr.bf16.gmra.mxu0 %v1542
    %v3091 = vpop.f32.mrf.mxu0
    %v3092 = vadd.f32 %v2880, %v3091
    %v3093 = vpop.f32.mrf.mxu0
    %v3094 = vadd.f32 %v2884, %v3093
    %v3095 = vpop.f32.mrf.mxu0
    %v3096 = vadd.f32 %v2880, %v3095
    %v3097 = vpop.f32.mrf.mxu0
    %v3098 = vadd.f32 %v2884, %v3097
    %3099 = vdwg.mxu0
    %3100 = vmatprep.subr.bf16.mxu0 %v3024
    %3101 = vmatpush1.bf16.msra.mxu0 %v3023
    %3102 = vmatprep.subr.bf16.mxu0 %v3020
    %3103 = vmatpush1.bf16.msra.mxu0 %v3019
    %3104 = vmatprep.subr.bf16.mxu0 %v3016
    %3105 = vmatpush1.bf16.msra.mxu0 %v3015
    %3106 = vmatprep.subr.bf16.mxu0 %v3012
    %3107 = vmatpush1.bf16.msra.mxu0 %v3011
    %3108 = vmatprep.subr.bf16.mxu0 %v3008
    %3109 = vmatpush1.bf16.msra.mxu0 %v3007
    %3110 = vmatprep.subr.bf16.mxu0 %v3004
    %3111 = vmatpush1.bf16.msra.mxu0 %v3003
    %3112 = vmatprep.subr.bf16.mxu0 %v3000
    %3113 = vmatpush1.bf16.msra.mxu0 %v2999
    %3114 = vmatprep.subr.bf16.mxu0 %v2996
    %3115 = vmatpush1.bf16.msra.mxu0 %v2995
    %3116 = vmatprep.subr.bf16.mxu0 0
    %3117 = vmatpush2.bf16.msra.mxu0 0
    %3118 = vmatprep.subr.bf16.mxu0 0
    %3119 = vmatpush2.bf16.msra.mxu0 0
    %3120 = vmatprep.subr.bf16.mxu0 0
    %3121 = vmatpush2.bf16.msra.mxu0 0
    %3122 = vmatprep.subr.bf16.mxu0 0
    %3123 = vmatpush2.bf16.msra.mxu0 0
    %3124 = vmatprep.subr.bf16.mxu0 0
    %3125 = vmatpush2.bf16.msra.mxu0 0
    %3126 = vmatprep.subr.bf16.mxu0 0
    %3127 = vmatpush2.bf16.msra.mxu0 0
    %3128 = vmatprep.subr.bf16.mxu0 0
    %3129 = vmatpush2.bf16.msra.mxu0 0
    %3130 = vmatprep.subr.bf16.mxu0 0
    %3131 = vmatpush2.bf16.msra.mxu0 0
    %3132 = vmatprep.mubr.bf16.mxu0 0
    %3133 = vmatmul.mubr.bf16.gmra.mxu0 %v1542
    %v3134 = vpop.f32.mrf.mxu0
    %v3135 = vadd.f32 %v2888, %v3134
    %v3136 = vpop.f32.mrf.mxu0
    %v3137 = vadd.f32 %v2892, %v3136
    %v3138 = vpop.f32.mrf.mxu0
    %v3139 = vadd.f32 %v2888, %v3138
    %v3140 = vpop.f32.mrf.mxu0
    %v3141 = vadd.f32 %v2892, %v3140
    %3142 = vdwg.mxu0
    %v3143 = vmax.f32 %v3092, 0.0
    %v3144 = vmax.f32 %v3094, 0.0
    %v3145 = vmax.f32 %v3135, 0.0
    %v3146 = vmax.f32 %v3137, 0.0
    %v3147 = vmax.f32 %v3096, 0.0
    %v3148 = vmax.f32 %v3098, 0.0
    %v3149 = vmax.f32 %v3139, 0.0
    %v3150 = vmax.f32 %v3141, 0.0
    %v3151 = vpack.c.bf16 %v3147, %v3143
    %v3152 = vpack.c.bf16 %v3148, %v3144
    %v3153 = vpack.c.bf16 %v3149, %v3145
    %v3154 = vpack.c.bf16 %v3150, %v3146
    %v3155 = vld [vmem:[#allocation3 + $0x200] sm:$0xf]
    %v3156 = vld [vmem:[#allocation3 + $0x204] sm:$0xf]
    %v3157 = vld [vmem:[#allocation3 + $0x208] sm:$0xf]
    %v3158 = vld [vmem:[#allocation3 + $0x20c] sm:$0xf]
    %v3159 = vld [vmem:[#allocation3 + $0x210] sm:$0xf]
    %v3160 = vld [vmem:[#allocation3 + $0x214] sm:$0xf]
    %v3161 = vld [vmem:[#allocation3 + $0x218] sm:$0xf]
    %v3162 = vld [vmem:[#allocation3 + $0x21c] sm:$0xf]
    %v3163 = vld [vmem:[#allocation3 + $0x220] sm:$0xf]
    %v3164 = vld [vmem:[#allocation3 + $0x224] sm:$0xf]
    %v3165 = vld [vmem:[#allocation3 + $0x228] sm:$0xf]
    %v3166 = vld [vmem:[#allocation3 + $0x22c] sm:$0xf]
    %v3167 = vld [vmem:[#allocation3 + $0x230] sm:$0xf]
    %v3168 = vld [vmem:[#allocation3 + $0x234] sm:$0xf]
    %v3169 = vld [vmem:[#allocation3 + $0x238] sm:$0xf]
    %v3170 = vld [vmem:[#allocation3 + $0x23c] sm:$0xf]
    %v3171 = vld [vmem:[#allocation3 + $0x240] sm:$0xf]
    %v3172 = vld [vmem:[#allocation3 + $0x244] sm:$0xf]
    %v3173 = vld [vmem:[#allocation3 + $0x248] sm:$0xf]
    %v3174 = vld [vmem:[#allocation3 + $0x24c] sm:$0xf]
    %v3175 = vld [vmem:[#allocation3 + $0x250] sm:$0xf]
    %v3176 = vld [vmem:[#allocation3 + $0x254] sm:$0xf]
    %v3177 = vld [vmem:[#allocation3 + $0x258] sm:$0xf]
    %v3178 = vld [vmem:[#allocation3 + $0x25c] sm:$0xf]
    %v3179 = vld [vmem:[#allocation3 + $0x260] sm:$0xf]
    %v3180 = vld [vmem:[#allocation3 + $0x264] sm:$0xf]
    %v3181 = vld [vmem:[#allocation3 + $0x268] sm:$0xf]
    %v3182 = vld [vmem:[#allocation3 + $0x26c] sm:$0xf]
    %v3183 = vld [vmem:[#allocation3 + $0x270] sm:$0xf]
    %v3184 = vld [vmem:[#allocation3 + $0x274] sm:$0xf]
    %v3185 = vld [vmem:[#allocation3 + $0x278] sm:$0xf]
    %v3186 = vld [vmem:[#allocation3 + $0x27c] sm:$0xf]
    %v3187 = vld [vmem:[#allocation3 + $0x280] sm:$0xf]
    %v3188 = vld [vmem:[#allocation3 + $0x284] sm:$0xf]
    %v3189 = vld [vmem:[#allocation3 + $0x288] sm:$0xf]
    %v3190 = vld [vmem:[#allocation3 + $0x28c] sm:$0xf]
    %v3191 = vld [vmem:[#allocation3 + $0x290] sm:$0xf]
    %v3192 = vld [vmem:[#allocation3 + $0x294] sm:$0xf]
    %v3193 = vld [vmem:[#allocation3 + $0x298] sm:$0xf]
    %v3194 = vld [vmem:[#allocation3 + $0x29c] sm:$0xf]
    %v3195 = vld [vmem:[#allocation3 + $0x2a0] sm:$0xf]
    %v3196 = vld [vmem:[#allocation3 + $0x2a4] sm:$0xf]
    %v3197 = vld [vmem:[#allocation3 + $0x2a8] sm:$0xf]
    %v3198 = vld [vmem:[#allocation3 + $0x2ac] sm:$0xf]
    %v3199 = vld [vmem:[#allocation3 + $0x2b0] sm:$0xf]
    %v3200 = vld [vmem:[#allocation3 + $0x2b4] sm:$0xf]
    %v3201 = vld [vmem:[#allocation3 + $0x2b8] sm:$0xf]
    %v3202 = vld [vmem:[#allocation3 + $0x2bc] sm:$0xf]
    %v3203 = vld [vmem:[#allocation3 + $0x2c0] sm:$0xf]
    %v3204 = vld [vmem:[#allocation3 + $0x2c4] sm:$0xf]
    %v3205 = vld [vmem:[#allocation3 + $0x2c8] sm:$0xf]
    %v3206 = vld [vmem:[#allocation3 + $0x2cc] sm:$0xf]
    %v3207 = vld [vmem:[#allocation3 + $0x2d0] sm:$0xf]
    %v3208 = vld [vmem:[#allocation3 + $0x2d4] sm:$0xf]
    %v3209 = vld [vmem:[#allocation3 + $0x2d8] sm:$0xf]
    %v3210 = vld [vmem:[#allocation3 + $0x2dc] sm:$0xf]
    %v3211 = vld [vmem:[#allocation3 + $0x2e0] sm:$0xf]
    %v3212 = vld [vmem:[#allocation3 + $0x2e4] sm:$0xf]
    %v3213 = vld [vmem:[#allocation3 + $0x2e8] sm:$0xf]
    %v3214 = vld [vmem:[#allocation3 + $0x2ec] sm:$0xf]
    %v3215 = vld [vmem:[#allocation3 + $0x2f0] sm:$0xf]
    %v3216 = vld [vmem:[#allocation3 + $0x2f4] sm:$0xf]
    %v3217 = vld [vmem:[#allocation3 + $0x2f8] sm:$0xf]
    %v3218 = vld [vmem:[#allocation3 + $0x2fc] sm:$0xf]
    %v3283 = vunpack.c.l.b16 %v3155
    %v3284 = vunpack.c.l.b16 %v3156
    %v3285 = vunpack.c.l.b16 %v3157
    %v3286 = vunpack.c.l.b16 %v3158
    %v3287 = vunpack.c.l.b16 %v3159
    %v3288 = vunpack.c.l.b16 %v3160
    %v3289 = vunpack.c.l.b16 %v3161
    %v3290 = vunpack.c.l.b16 %v3162
    %v3291 = vunpack.c.l.b16 %v3163
    %v3292 = vunpack.c.l.b16 %v3164
    %v3293 = vunpack.c.l.b16 %v3165
    %v3294 = vunpack.c.l.b16 %v3166
    %v3295 = vunpack.c.l.b16 %v3167
    %v3296 = vunpack.c.l.b16 %v3168
    %v3297 = vunpack.c.l.b16 %v3169
    %v3298 = vunpack.c.l.b16 %v3170
    %v3299 = vunpack.c.l.b16 %v3171
    %v3300 = vunpack.c.l.b16 %v3172
    %v3301 = vunpack.c.l.b16 %v3173
    %v3302 = vunpack.c.l.b16 %v3174
    %v3303 = vunpack.c.l.b16 %v3175
    %v3304 = vunpack.c.l.b16 %v3176
    %v3305 = vunpack.c.l.b16 %v3177
    %v3306 = vunpack.c.l.b16 %v3178
    %v3307 = vunpack.c.l.b16 %v3179
    %v3308 = vunpack.c.l.b16 %v3180
    %v3309 = vunpack.c.l.b16 %v3181
    %v3310 = vunpack.c.l.b16 %v3182
    %v3311 = vunpack.c.l.b16 %v3183
    %v3312 = vunpack.c.l.b16 %v3184
    %v3313 = vunpack.c.l.b16 %v3185
    %v3314 = vunpack.c.l.b16 %v3186
    %v3315 = vunpack.c.l.b16 %v3187
    %v3316 = vunpack.c.l.b16 %v3188
    %v3317 = vunpack.c.l.b16 %v3189
    %v3318 = vunpack.c.l.b16 %v3190
    %v3319 = vunpack.c.l.b16 %v3191
    %v3320 = vunpack.c.l.b16 %v3192
    %v3321 = vunpack.c.l.b16 %v3193
    %v3322 = vunpack.c.l.b16 %v3194
    %v3323 = vunpack.c.l.b16 %v3195
    %v3324 = vunpack.c.l.b16 %v3196
    %v3325 = vunpack.c.l.b16 %v3197
    %v3326 = vunpack.c.l.b16 %v3198
    %v3327 = vunpack.c.l.b16 %v3199
    %v3328 = vunpack.c.l.b16 %v3200
    %v3329 = vunpack.c.l.b16 %v3201
    %v3330 = vunpack.c.l.b16 %v3202
    %v3331 = vunpack.c.l.b16 %v3203
    %v3332 = vunpack.c.l.b16 %v3204
    %v3333 = vunpack.c.l.b16 %v3205
    %v3334 = vunpack.c.l.b16 %v3206
    %v3335 = vunpack.c.l.b16 %v3207
    %v3336 = vunpack.c.l.b16 %v3208
    %v3337 = vunpack.c.l.b16 %v3209
    %v3338 = vunpack.c.l.b16 %v3210
    %v3339 = vunpack.c.l.b16 %v3211
    %v3340 = vunpack.c.l.b16 %v3212
    %v3341 = vunpack.c.l.b16 %v3213
    %v3342 = vunpack.c.l.b16 %v3214
    %v3343 = vunpack.c.l.b16 %v3215
    %v3344 = vunpack.c.l.b16 %v3216
    %v3345 = vunpack.c.l.b16 %v3217
    %v3346 = vunpack.c.l.b16 %v3218
    %v3347 = vpack.c.b16 %v3284, %v3283
    %v3348 = vpack.c.b16 %v3286, %v3285
    %v3349 = vpack.c.b16 %v3288, %v3287
    %v3350 = vpack.c.b16 %v3290, %v3289
    %v3351 = vpack.c.b16 %v3292, %v3291
    %v3352 = vpack.c.b16 %v3294, %v3293
    %v3353 = vpack.c.b16 %v3296, %v3295
    %v3354 = vpack.c.b16 %v3298, %v3297
    %v3355 = vpack.c.b16 %v3300, %v3299
    %v3356 = vpack.c.b16 %v3302, %v3301
    %v3357 = vpack.c.b16 %v3304, %v3303
    %v3358 = vpack.c.b16 %v3306, %v3305
    %v3359 = vpack.c.b16 %v3308, %v3307
    %v3360 = vpack.c.b16 %v3310, %v3309
    %v3361 = vpack.c.b16 %v3312, %v3311
    %v3362 = vpack.c.b16 %v3314, %v3313
    %v3363 = vpack.c.b16 %v3316, %v3315
    %v3364 = vpack.c.b16 %v3318, %v3317
    %v3365 = vpack.c.b16 %v3320, %v3319
    %v3366 = vpack.c.b16 %v3322, %v3321
    %v3367 = vpack.c.b16 %v3324, %v3323
    %v3368 = vpack.c.b16 %v3326, %v3325
    %v3369 = vpack.c.b16 %v3328, %v3327
    %v3370 = vpack.c.b16 %v3330, %v3329
    %v3371 = vpack.c.b16 %v3332, %v3331
    %v3372 = vpack.c.b16 %v3334, %v3333
    %v3373 = vpack.c.b16 %v3336, %v3335
    %v3374 = vpack.c.b16 %v3338, %v3337
    %v3375 = vpack.c.b16 %v3340, %v3339
    %v3376 = vpack.c.b16 %v3342, %v3341
    %v3377 = vpack.c.b16 %v3344, %v3343
    %v3378 = vpack.c.b16 %v3346, %v3345
    %3411 = vmatprep.subr.bf16.mxu0 0
    %3412 = vmatpush1.bf16.msra.mxu0 %v3354
    %3413 = vmatprep.subr.bf16.mxu0 0
    %3414 = vmatpush1.bf16.msra.mxu0 %v3353
    %3415 = vmatprep.subr.bf16.mxu0 0
    %3416 = vmatpush1.bf16.msra.mxu0 %v3352
    %3417 = vmatprep.subr.bf16.mxu0 0
    %3418 = vmatpush1.bf16.msra.mxu0 %v3351
    %3419 = vmatprep.subr.bf16.mxu0 0
    %3420 = vmatpush1.bf16.msra.mxu0 %v3350
    %3421 = vmatprep.subr.bf16.mxu0 0
    %3422 = vmatpush1.bf16.msra.mxu0 %v3349
    %3423 = vmatprep.subr.bf16.mxu0 0
    %3424 = vmatpush1.bf16.msra.mxu0 %v3348
    %3425 = vmatprep.subr.bf16.mxu0 0
    %3426 = vmatpush1.bf16.msra.mxu0 %v3347
    %3427 = vmatprep.subr.bf16.mxu0 0
    %3428 = vmatpush2.bf16.msra.mxu0 %v3362
    %3429 = vmatprep.subr.bf16.mxu0 0
    %3430 = vmatpush2.bf16.msra.mxu0 %v3361
    %3431 = vmatprep.subr.bf16.mxu0 0
    %3432 = vmatpush2.bf16.msra.mxu0 %v3360
    %3433 = vmatprep.subr.bf16.mxu0 0
    %3434 = vmatpush2.bf16.msra.mxu0 %v3359
    %3435 = vmatprep.subr.bf16.mxu0 0
    %3436 = vmatpush2.bf16.msra.mxu0 %v3358
    %3437 = vmatprep.subr.bf16.mxu0 0
    %3438 = vmatpush2.bf16.msra.mxu0 %v3357
    %3439 = vmatprep.subr.bf16.mxu0 0
    %3440 = vmatpush2.bf16.msra.mxu0 %v3356
    %3441 = vmatprep.subr.bf16.mxu0 0
    %3442 = vmatpush2.bf16.msra.mxu0 %v3355
    %3443 = vmatprep.mubr.bf16.mxu0 %v3152
    %3444 = vmatmul.mubr.bf16.gmra.mxu0 %v3151
    %v3445 = vpop.f32.mrf.mxu0
    %v3446 = vadd.f32 0.0, %v3445
    %v3447 = vpop.f32.mrf.mxu0
    %v3448 = vpop.f32.mrf.mxu0
    %v3449 = vadd.f32 0.0, %v3448
    %v3450 = vpop.f32.mrf.mxu0
    %3451 = vdwg.mxu0
    %3452 = vmatprep.subr.bf16.mxu0 0
    %3453 = vmatpush1.bf16.msra.mxu0 %v3370
    %3454 = vmatprep.subr.bf16.mxu0 0
    %3455 = vmatpush1.bf16.msra.mxu0 %v3369
    %3456 = vmatprep.subr.bf16.mxu0 0
    %3457 = vmatpush1.bf16.msra.mxu0 %v3368
    %3458 = vmatprep.subr.bf16.mxu0 0
    %3459 = vmatpush1.bf16.msra.mxu0 %v3367
    %3460 = vmatprep.subr.bf16.mxu0 0
    %3461 = vmatpush1.bf16.msra.mxu0 %v3366
    %3462 = vmatprep.subr.bf16.mxu0 0
    %3463 = vmatpush1.bf16.msra.mxu0 %v3365
    %3464 = vmatprep.subr.bf16.mxu0 0
    %3465 = vmatpush1.bf16.msra.mxu0 %v3364
    %3466 = vmatprep.subr.bf16.mxu0 0
    %3467 = vmatpush1.bf16.msra.mxu0 %v3363
    %3468 = vmatprep.subr.bf16.mxu0 0
    %3469 = vmatpush2.bf16.msra.mxu0 %v3378
    %3470 = vmatprep.subr.bf16.mxu0 0
    %3471 = vmatpush2.bf16.msra.mxu0 %v3377
    %3472 = vmatprep.subr.bf16.mxu0 0
    %3473 = vmatpush2.bf16.msra.mxu0 %v3376
    %3474 = vmatprep.subr.bf16.mxu0 0
    %3475 = vmatpush2.bf16.msra.mxu0 %v3375
    %3476 = vmatprep.subr.bf16.mxu0 0
    %3477 = vmatpush2.bf16.msra.mxu0 %v3374
    %3478 = vmatprep.subr.bf16.mxu0 0
    %3479 = vmatpush2.bf16.msra.mxu0 %v3373
    %3480 = vmatprep.subr.bf16.mxu0 0
    %3481 = vmatpush2.bf16.msra.mxu0 %v3372
    %3482 = vmatprep.subr.bf16.mxu0 0
    %3483 = vmatpush2.bf16.msra.mxu0 %v3371
    %3484 = vmatprep.mubr.bf16.mxu0 %v3154
    %3485 = vmatmul.mubr.bf16.gmra.mxu0 %v3153
    %v3486 = vpop.f32.mrf.mxu0
    %v3487 = vadd.f32 %v3446, %v3486
    %v3488 = vpop.f32.mrf.mxu0
    %v3489 = vpop.f32.mrf.mxu0
    %v3490 = vadd.f32 %v3449, %v3489
    %v3491 = vpop.f32.mrf.mxu0
    %3492 = vdwg.mxu0
    %v3493 = vadd.f32 %v2837, %v3487
    %v3494 = vadd.f32 %v2840, %v3490
    %v3495 = vld [vmem:[#allocation2 + $0x30] sm:$0xff]
    %v3496 = vld [vmem:[#allocation2 + $0x38] sm:$0xff]
    %v3497 = vld [vmem:[#allocation2 + $0x70] sm:$0xff]
    %v3498 = vld [vmem:[#allocation2 + $0x78] sm:$0xff]
    %v3499 = vld [vmem:[#allocation2 + $0xb0] sm:$0xff]
    %v3500 = vld [vmem:[#allocation2 + $0xb8] sm:$0xff]
    %v3501 = vld [vmem:[#allocation2 + $0xf0] sm:$0xff]
    %v3502 = vld [vmem:[#allocation2 + $0xf8] sm:$0xff]
    %v3503 = vld [vmem:[#allocation2 + $0x130] sm:$0xff]
    %v3504 = vld [vmem:[#allocation2 + $0x138] sm:$0xff]
    %v3505 = vld [vmem:[#allocation2 + $0x170] sm:$0xff]
    %v3506 = vld [vmem:[#allocation2 + $0x178] sm:$0xff]
    %v3507 = vld [vmem:[#allocation2 + $0x1b0] sm:$0xff]
    %v3508 = vld [vmem:[#allocation2 + $0x1b8] sm:$0xff]
    %v3509 = vld [vmem:[#allocation2 + $0x1f0] sm:$0xff]
    %v3510 = vld [vmem:[#allocation2 + $0x1f8] sm:$0xff]
    %v3511 = vld [vmem:[#allocation2 + $0x230] sm:$0xff]
    %v3512 = vld [vmem:[#allocation2 + $0x238] sm:$0xff]
    %v3513 = vld [vmem:[#allocation2 + $0x270] sm:$0xff]
    %v3514 = vld [vmem:[#allocation2 + $0x278] sm:$0xff]
    %v3515 = vld [vmem:[#allocation2 + $0x2b0] sm:$0xff]
    %v3516 = vld [vmem:[#allocation2 + $0x2b8] sm:$0xff]
    %v3517 = vld [vmem:[#allocation2 + $0x2f0] sm:$0xff]
    %v3518 = vld [vmem:[#allocation2 + $0x2f8] sm:$0xff]
    %v3519 = vld [vmem:[#allocation2 + $0x330] sm:$0xff]
    %v3520 = vld [vmem:[#allocation2 + $0x338] sm:$0xff]
    %v3521 = vld [vmem:[#allocation2 + $0x370] sm:$0xff]
    %v3522 = vld [vmem:[#allocation2 + $0x378] sm:$0xff]
    %v3523 = vld [vmem:[#allocation2 + $0x3b0] sm:$0xff]
    %v3524 = vld [vmem:[#allocation2 + $0x3b8] sm:$0xff]
    %v3525 = vld [vmem:[#allocation2 + $0x3f0] sm:$0xff]
    %v3526 = vld [vmem:[#allocation2 + $0x3f8] sm:$0xff]
    %v3527 = vld [vmem:[#allocation14 + $0xc] sm:$0xf]
    %v3529 = vlaneseq
    %v3530 = vshrl.u32 %v3529, 7
    %v3531 = vsub.s32 0, %v3530
    %v3532 = vrot.slane %v3527, %v3531
    %v3533 = vlaneseq
    %v3534 = vshrl.u32 %v3533, 7
    %v3535 = vsub.s32 1, %v3534
    %v3536 = vrot.slane %v3527, %v3535
    %v3537 = vlaneseq
    %v3538 = vshrl.u32 %v3537, 7
    %v3539 = vsub.s32 2, %v3538
    %v3540 = vrot.slane %v3527, %v3539
    %v3541 = vlaneseq
    %v3542 = vshrl.u32 %v3541, 7
    %v3543 = vsub.s32 3, %v3542
    %v3544 = vrot.slane %v3527, %v3543
    %v3581 = vunpack.c.l.b16 %v3495
    %v3582 = vunpack.c.h.b16 %v3495
    %v3583 = vunpack.c.l.b16 %v3496
    %v3584 = vunpack.c.h.b16 %v3496
    %v3585 = vunpack.c.l.b16 %v3497
    %v3586 = vunpack.c.h.b16 %v3497
    %v3587 = vunpack.c.l.b16 %v3498
    %v3588 = vunpack.c.h.b16 %v3498
    %v3589 = vunpack.c.l.b16 %v3499
    %v3590 = vunpack.c.h.b16 %v3499
    %v3591 = vunpack.c.l.b16 %v3500
    %v3592 = vunpack.c.h.b16 %v3500
    %v3593 = vunpack.c.l.b16 %v3501
    %v3594 = vunpack.c.h.b16 %v3501
    %v3595 = vunpack.c.l.b16 %v3502
    %v3596 = vunpack.c.h.b16 %v3502
    %v3597 = vunpack.c.l.b16 %v3503
    %v3598 = vunpack.c.h.b16 %v3503
    %v3599 = vunpack.c.l.b16 %v3504
    %v3600 = vunpack.c.h.b16 %v3504
    %v3601 = vunpack.c.l.b16 %v3505
    %v3602 = vunpack.c.h.b16 %v3505
    %v3603 = vunpack.c.l.b16 %v3506
    %v3604 = vunpack.c.h.b16 %v3506
    %v3605 = vunpack.c.l.b16 %v3507
    %v3606 = vunpack.c.h.b16 %v3507
    %v3607 = vunpack.c.l.b16 %v3508
    %v3608 = vunpack.c.h.b16 %v3508
    %v3609 = vunpack.c.l.b16 %v3509
    %v3610 = vunpack.c.h.b16 %v3509
    %v3611 = vunpack.c.l.b16 %v3510
    %v3612 = vunpack.c.h.b16 %v3510
    %v3613 = vunpack.c.l.b16 %v3511
    %v3614 = vunpack.c.h.b16 %v3511
    %v3615 = vunpack.c.l.b16 %v3512
    %v3616 = vunpack.c.h.b16 %v3512
    %v3617 = vunpack.c.l.b16 %v3513
    %v3618 = vunpack.c.h.b16 %v3513
    %v3619 = vunpack.c.l.b16 %v3514
    %v3620 = vunpack.c.h.b16 %v3514
    %v3621 = vunpack.c.l.b16 %v3515
    %v3622 = vunpack.c.h.b16 %v3515
    %v3623 = vunpack.c.l.b16 %v3516
    %v3624 = vunpack.c.h.b16 %v3516
    %v3625 = vunpack.c.l.b16 %v3517
    %v3626 = vunpack.c.h.b16 %v3517
    %v3627 = vunpack.c.l.b16 %v3518
    %v3628 = vunpack.c.h.b16 %v3518
    %v3629 = vunpack.c.l.b16 %v3519
    %v3630 = vunpack.c.h.b16 %v3519
    %v3631 = vunpack.c.l.b16 %v3520
    %v3632 = vunpack.c.h.b16 %v3520
    %v3633 = vunpack.c.l.b16 %v3521
    %v3634 = vunpack.c.h.b16 %v3521
    %v3635 = vunpack.c.l.b16 %v3522
    %v3636 = vunpack.c.h.b16 %v3522
    %v3637 = vunpack.c.l.b16 %v3523
    %v3638 = vunpack.c.h.b16 %v3523
    %v3639 = vunpack.c.l.b16 %v3524
    %v3640 = vunpack.c.h.b16 %v3524
    %v3641 = vunpack.c.l.b16 %v3525
    %v3642 = vunpack.c.h.b16 %v3525
    %v3643 = vunpack.c.l.b16 %v3526
    %v3644 = vunpack.c.h.b16 %v3526
    %v3645 = vpack.c.b16 %v3585, %v3581
    %v3646 = vpack.c.b16 %v3586, %v3582
    %v3647 = vpack.c.b16 %v3587, %v3583
    %v3648 = vpack.c.b16 %v3588, %v3584
    %v3649 = vpack.c.b16 %v3593, %v3589
    %v3650 = vpack.c.b16 %v3594, %v3590
    %v3651 = vpack.c.b16 %v3595, %v3591
    %v3652 = vpack.c.b16 %v3596, %v3592
    %v3653 = vpack.c.b16 %v3601, %v3597
    %v3654 = vpack.c.b16 %v3602, %v3598
    %v3655 = vpack.c.b16 %v3603, %v3599
    %v3656 = vpack.c.b16 %v3604, %v3600
    %v3657 = vpack.c.b16 %v3609, %v3605
    %v3658 = vpack.c.b16 %v3610, %v3606
    %v3659 = vpack.c.b16 %v3611, %v3607
    %v3660 = vpack.c.b16 %v3612, %v3608
    %v3661 = vpack.c.b16 %v3617, %v3613
    %v3662 = vpack.c.b16 %v3618, %v3614
    %v3663 = vpack.c.b16 %v3619, %v3615
    %v3664 = vpack.c.b16 %v3620, %v3616
    %v3665 = vpack.c.b16 %v3625, %v3621
    %v3666 = vpack.c.b16 %v3626, %v3622
    %v3667 = vpack.c.b16 %v3627, %v3623
    %v3668 = vpack.c.b16 %v3628, %v3624
    %v3669 = vpack.c.b16 %v3633, %v3629
    %v3670 = vpack.c.b16 %v3634, %v3630
    %v3671 = vpack.c.b16 %v3635, %v3631
    %v3672 = vpack.c.b16 %v3636, %v3632
    %v3673 = vpack.c.b16 %v3641, %v3637
    %v3674 = vpack.c.b16 %v3642, %v3638
    %v3675 = vpack.c.b16 %v3643, %v3639
    %v3676 = vpack.c.b16 %v3644, %v3640
    %3709 = vmatprep.subr.bf16.mxu0 %v3674
    %3710 = vmatpush1.bf16.msra.mxu0 %v3673
    %3711 = vmatprep.subr.bf16.mxu0 %v3670
    %3712 = vmatpush1.bf16.msra.mxu0 %v3669
    %3713 = vmatprep.subr.bf16.mxu0 %v3666
    %3714 = vmatpush1.bf16.msra.mxu0 %v3665
    %3715 = vmatprep.subr.bf16.mxu0 %v3662
    %3716 = vmatpush1.bf16.msra.mxu0 %v3661
    %3717 = vmatprep.subr.bf16.mxu0 %v3658
    %3718 = vmatpush1.bf16.msra.mxu0 %v3657
    %3719 = vmatprep.subr.bf16.mxu0 %v3654
    %3720 = vmatpush1.bf16.msra.mxu0 %v3653
    %3721 = vmatprep.subr.bf16.mxu0 %v3650
    %3722 = vmatpush1.bf16.msra.mxu0 %v3649
    %3723 = vmatprep.subr.bf16.mxu0 %v3646
    %3724 = vmatpush1.bf16.msra.mxu0 %v3645
    %3725 = vmatprep.subr.bf16.mxu0 0
    %3726 = vmatpush2.bf16.msra.mxu0 0
    %3727 = vmatprep.subr.bf16.mxu0 0
    %3728 = vmatpush2.bf16.msra.mxu0 0
    %3729 = vmatprep.subr.bf16.mxu0 0
    %3730 = vmatpush2.bf16.msra.mxu0 0
    %3731 = vmatprep.subr.bf16.mxu0 0
    %3732 = vmatpush2.bf16.msra.mxu0 0
    %3733 = vmatprep.subr.bf16.mxu0 0
    %3734 = vmatpush2.bf16.msra.mxu0 0
    %3735 = vmatprep.subr.bf16.mxu0 0
    %3736 = vmatpush2.bf16.msra.mxu0 0
    %3737 = vmatprep.subr.bf16.mxu0 0
    %3738 = vmatpush2.bf16.msra.mxu0 0
    %3739 = vmatprep.subr.bf16.mxu0 0
    %3740 = vmatpush2.bf16.msra.mxu0 0
    %3741 = vmatprep.mubr.bf16.mxu0 0
    %3742 = vmatmul.mubr.bf16.gmra.mxu0 %v1542
    %v3743 = vpop.f32.mrf.mxu0
    %v3744 = vadd.f32 %v3532, %v3743
    %v3745 = vpop.f32.mrf.mxu0
    %v3746 = vadd.f32 %v3536, %v3745
    %v3747 = vpop.f32.mrf.mxu0
    %v3748 = vadd.f32 %v3532, %v3747
    %v3749 = vpop.f32.mrf.mxu0
    %v3750 = vadd.f32 %v3536, %v3749
    %3751 = vdwg.mxu0
    %3752 = vmatprep.subr.bf16.mxu0 %v3676
    %3753 = vmatpush1.bf16.msra.mxu0 %v3675
    %3754 = vmatprep.subr.bf16.mxu0 %v3672
    %3755 = vmatpush1.bf16.msra.mxu0 %v3671
    %3756 = vmatprep.subr.bf16.mxu0 %v3668
    %3757 = vmatpush1.bf16.msra.mxu0 %v3667
    %3758 = vmatprep.subr.bf16.mxu0 %v3664
    %3759 = vmatpush1.bf16.msra.mxu0 %v3663
    %3760 = vmatprep.subr.bf16.mxu0 %v3660
    %3761 = vmatpush1.bf16.msra.mxu0 %v3659
    %3762 = vmatprep.subr.bf16.mxu0 %v3656
    %3763 = vmatpush1.bf16.msra.mxu0 %v3655
    %3764 = vmatprep.subr.bf16.mxu0 %v3652
    %3765 = vmatpush1.bf16.msra.mxu0 %v3651
    %3766 = vmatprep.subr.bf16.mxu0 %v3648
    %3767 = vmatpush1.bf16.msra.mxu0 %v3647
    %3768 = vmatprep.subr.bf16.mxu0 0
    %3769 = vmatpush2.bf16.msra.mxu0 0
    %3770 = vmatprep.subr.bf16.mxu0 0
    %3771 = vmatpush2.bf16.msra.mxu0 0
    %3772 = vmatprep.subr.bf16.mxu0 0
    %3773 = vmatpush2.bf16.msra.mxu0 0
    %3774 = vmatprep.subr.bf16.mxu0 0
    %3775 = vmatpush2.bf16.msra.mxu0 0
    %3776 = vmatprep.subr.bf16.mxu0 0
    %3777 = vmatpush2.bf16.msra.mxu0 0
    %3778 = vmatprep.subr.bf16.mxu0 0
    %3779 = vmatpush2.bf16.msra.mxu0 0
    %3780 = vmatprep.subr.bf16.mxu0 0
    %3781 = vmatpush2.bf16.msra.mxu0 0
    %3782 = vmatprep.subr.bf16.mxu0 0
    %3783 = vmatpush2.bf16.msra.mxu0 0
    %3784 = vmatprep.mubr.bf16.mxu0 0
    %3785 = vmatmul.mubr.bf16.gmra.mxu0 %v1542
    %v3786 = vpop.f32.mrf.mxu0
    %v3787 = vadd.f32 %v3540, %v3786
    %v3788 = vpop.f32.mrf.mxu0
    %v3789 = vadd.f32 %v3544, %v3788
    %v3790 = vpop.f32.mrf.mxu0
    %v3791 = vadd.f32 %v3540, %v3790
    %v3792 = vpop.f32.mrf.mxu0
    %v3793 = vadd.f32 %v3544, %v3792
    %3794 = vdwg.mxu0
    %v3795 = vmax.f32 %v3744, 0.0
    %v3796 = vmax.f32 %v3746, 0.0
    %v3797 = vmax.f32 %v3787, 0.0
    %v3798 = vmax.f32 %v3789, 0.0
    %v3799 = vmax.f32 %v3748, 0.0
    %v3800 = vmax.f32 %v3750, 0.0
    %v3801 = vmax.f32 %v3791, 0.0
    %v3802 = vmax.f32 %v3793, 0.0
    %v3803 = vpack.c.bf16 %v3799, %v3795
    %v3804 = vpack.c.bf16 %v3800, %v3796
    %v3805 = vpack.c.bf16 %v3801, %v3797
    %v3806 = vpack.c.bf16 %v3802, %v3798
    %v3807 = vld [vmem:[#allocation3 + $0x300] sm:$0xf]
    %v3808 = vld [vmem:[#allocation3 + $0x304] sm:$0xf]
    %v3809 = vld [vmem:[#allocation3 + $0x308] sm:$0xf]
    %v3810 = vld [vmem:[#allocation3 + $0x30c] sm:$0xf]
    %v3811 = vld [vmem:[#allocation3 + $0x310] sm:$0xf]
    %v3812 = vld [vmem:[#allocation3 + $0x314] sm:$0xf]
    %v3813 = vld [vmem:[#allocation3 + $0x318] sm:$0xf]
    %v3814 = vld [vmem:[#allocation3 + $0x31c] sm:$0xf]
    %v3815 = vld [vmem:[#allocation3 + $0x320] sm:$0xf]
    %v3816 = vld [vmem:[#allocation3 + $0x324] sm:$0xf]
    %v3817 = vld [vmem:[#allocation3 + $0x328] sm:$0xf]
    %v3818 = vld [vmem:[#allocation3 + $0x32c] sm:$0xf]
    %v3819 = vld [vmem:[#allocation3 + $0x330] sm:$0xf]
    %v3820 = vld [vmem:[#allocation3 + $0x334] sm:$0xf]
    %v3821 = vld [vmem:[#allocation3 + $0x338] sm:$0xf]
    %v3822 = vld [vmem:[#allocation3 + $0x33c] sm:$0xf]
    %v3823 = vld [vmem:[#allocation3 + $0x340] sm:$0xf]
    %v3824 = vld [vmem:[#allocation3 + $0x344] sm:$0xf]
    %v3825 = vld [vmem:[#allocation3 + $0x348] sm:$0xf]
    %v3826 = vld [vmem:[#allocation3 + $0x34c] sm:$0xf]
    %v3827 = vld [vmem:[#allocation3 + $0x350] sm:$0xf]
    %v3828 = vld [vmem:[#allocation3 + $0x354] sm:$0xf]
    %v3829 = vld [vmem:[#allocation3 + $0x358] sm:$0xf]
    %v3830 = vld [vmem:[#allocation3 + $0x35c] sm:$0xf]
    %v3831 = vld [vmem:[#allocation3 + $0x360] sm:$0xf]
    %v3832 = vld [vmem:[#allocation3 + $0x364] sm:$0xf]
    %v3833 = vld [vmem:[#allocation3 + $0x368] sm:$0xf]
    %v3834 = vld [vmem:[#allocation3 + $0x36c] sm:$0xf]
    %v3835 = vld [vmem:[#allocation3 + $0x370] sm:$0xf]
    %v3836 = vld [vmem:[#allocation3 + $0x374] sm:$0xf]
    %v3837 = vld [vmem:[#allocation3 + $0x378] sm:$0xf]
    %v3838 = vld [vmem:[#allocation3 + $0x37c] sm:$0xf]
    %v3839 = vld [vmem:[#allocation3 + $0x380] sm:$0xf]
    %v3840 = vld [vmem:[#allocation3 + $0x384] sm:$0xf]
    %v3841 = vld [vmem:[#allocation3 + $0x388] sm:$0xf]
    %v3842 = vld [vmem:[#allocation3 + $0x38c] sm:$0xf]
    %v3843 = vld [vmem:[#allocation3 + $0x390] sm:$0xf]
    %v3844 = vld [vmem:[#allocation3 + $0x394] sm:$0xf]
    %v3845 = vld [vmem:[#allocation3 + $0x398] sm:$0xf]
    %v3846 = vld [vmem:[#allocation3 + $0x39c] sm:$0xf]
    %v3847 = vld [vmem:[#allocation3 + $0x3a0] sm:$0xf]
    %v3848 = vld [vmem:[#allocation3 + $0x3a4] sm:$0xf]
    %v3849 = vld [vmem:[#allocation3 + $0x3a8] sm:$0xf]
    %v3850 = vld [vmem:[#allocation3 + $0x3ac] sm:$0xf]
    %v3851 = vld [vmem:[#allocation3 + $0x3b0] sm:$0xf]
    %v3852 = vld [vmem:[#allocation3 + $0x3b4] sm:$0xf]
    %v3853 = vld [vmem:[#allocation3 + $0x3b8] sm:$0xf]
    %v3854 = vld [vmem:[#allocation3 + $0x3bc] sm:$0xf]
    %v3855 = vld [vmem:[#allocation3 + $0x3c0] sm:$0xf]
    %v3856 = vld [vmem:[#allocation3 + $0x3c4] sm:$0xf]
    %v3857 = vld [vmem:[#allocation3 + $0x3c8] sm:$0xf]
    %v3858 = vld [vmem:[#allocation3 + $0x3cc] sm:$0xf]
    %v3859 = vld [vmem:[#allocation3 + $0x3d0] sm:$0xf]
    %v3860 = vld [vmem:[#allocation3 + $0x3d4] sm:$0xf]
    %v3861 = vld [vmem:[#allocation3 + $0x3d8] sm:$0xf]
    %v3862 = vld [vmem:[#allocation3 + $0x3dc] sm:$0xf]
    %v3863 = vld [vmem:[#allocation3 + $0x3e0] sm:$0xf]
    %v3864 = vld [vmem:[#allocation3 + $0x3e4] sm:$0xf]
    %v3865 = vld [vmem:[#allocation3 + $0x3e8] sm:$0xf]
    %v3866 = vld [vmem:[#allocation3 + $0x3ec] sm:$0xf]
    %v3867 = vld [vmem:[#allocation3 + $0x3f0] sm:$0xf]
    %v3868 = vld [vmem:[#allocation3 + $0x3f4] sm:$0xf]
    %v3869 = vld [vmem:[#allocation3 + $0x3f8] sm:$0xf]
    %v3870 = vld [vmem:[#allocation3 + $0x3fc] sm:$0xf]
    %v3935 = vunpack.c.l.b16 %v3807
    %v3936 = vunpack.c.l.b16 %v3808
    %v3937 = vunpack.c.l.b16 %v3809
    %v3938 = vunpack.c.l.b16 %v3810
    %v3939 = vunpack.c.l.b16 %v3811
    %v3940 = vunpack.c.l.b16 %v3812
    %v3941 = vunpack.c.l.b16 %v3813
    %v3942 = vunpack.c.l.b16 %v3814
    %v3943 = vunpack.c.l.b16 %v3815
    %v3944 = vunpack.c.l.b16 %v3816
    %v3945 = vunpack.c.l.b16 %v3817
    %v3946 = vunpack.c.l.b16 %v3818
    %v3947 = vunpack.c.l.b16 %v3819
    %v3948 = vunpack.c.l.b16 %v3820
    %v3949 = vunpack.c.l.b16 %v3821
    %v3950 = vunpack.c.l.b16 %v3822
    %v3951 = vunpack.c.l.b16 %v3823
    %v3952 = vunpack.c.l.b16 %v3824
    %v3953 = vunpack.c.l.b16 %v3825
    %v3954 = vunpack.c.l.b16 %v3826
    %v3955 = vunpack.c.l.b16 %v3827
    %v3956 = vunpack.c.l.b16 %v3828
    %v3957 = vunpack.c.l.b16 %v3829
    %v3958 = vunpack.c.l.b16 %v3830
    %v3959 = vunpack.c.l.b16 %v3831
    %v3960 = vunpack.c.l.b16 %v3832
    %v3961 = vunpack.c.l.b16 %v3833
    %v3962 = vunpack.c.l.b16 %v3834
    %v3963 = vunpack.c.l.b16 %v3835
    %v3964 = vunpack.c.l.b16 %v3836
    %v3965 = vunpack.c.l.b16 %v3837
    %v3966 = vunpack.c.l.b16 %v3838
    %v3967 = vunpack.c.l.b16 %v3839
    %v3968 = vunpack.c.l.b16 %v3840
    %v3969 = vunpack.c.l.b16 %v3841
    %v3970 = vunpack.c.l.b16 %v3842
    %v3971 = vunpack.c.l.b16 %v3843
    %v3972 = vunpack.c.l.b16 %v3844
    %v3973 = vunpack.c.l.b16 %v3845
    %v3974 = vunpack.c.l.b16 %v3846
    %v3975 = vunpack.c.l.b16 %v3847
    %v3976 = vunpack.c.l.b16 %v3848
    %v3977 = vunpack.c.l.b16 %v3849
    %v3978 = vunpack.c.l.b16 %v3850
    %v3979 = vunpack.c.l.b16 %v3851
    %v3980 = vunpack.c.l.b16 %v3852
    %v3981 = vunpack.c.l.b16 %v3853
    %v3982 = vunpack.c.l.b16 %v3854
    %v3983 = vunpack.c.l.b16 %v3855
    %v3984 = vunpack.c.l.b16 %v3856
    %v3985 = vunpack.c.l.b16 %v3857
    %v3986 = vunpack.c.l.b16 %v3858
    %v3987 = vunpack.c.l.b16 %v3859
    %v3988 = vunpack.c.l.b16 %v3860
    %v3989 = vunpack.c.l.b16 %v3861
    %v3990 = vunpack.c.l.b16 %v3862
    %v3991 = vunpack.c.l.b16 %v3863
    %v3992 = vunpack.c.l.b16 %v3864
    %v3993 = vunpack.c.l.b16 %v3865
    %v3994 = vunpack.c.l.b16 %v3866
    %v3995 = vunpack.c.l.b16 %v3867
    %v3996 = vunpack.c.l.b16 %v3868
    %v3997 = vunpack.c.l.b16 %v3869
    %v3998 = vunpack.c.l.b16 %v3870
    %v3999 = vpack.c.b16 %v3936, %v3935
    %v4000 = vpack.c.b16 %v3938, %v3937
    %v4001 = vpack.c.b16 %v3940, %v3939
    %v4002 = vpack.c.b16 %v3942, %v3941
    %v4003 = vpack.c.b16 %v3944, %v3943
    %v4004 = vpack.c.b16 %v3946, %v3945
    %v4005 = vpack.c.b16 %v3948, %v3947
    %v4006 = vpack.c.b16 %v3950, %v3949
    %v4007 = vpack.c.b16 %v3952, %v3951
    %v4008 = vpack.c.b16 %v3954, %v3953
    %v4009 = vpack.c.b16 %v3956, %v3955
    %v4010 = vpack.c.b16 %v3958, %v3957
    %v4011 = vpack.c.b16 %v3960, %v3959
    %v4012 = vpack.c.b16 %v3962, %v3961
    %v4013 = vpack.c.b16 %v3964, %v3963
    %v4014 = vpack.c.b16 %v3966, %v3965
    %v4015 = vpack.c.b16 %v3968, %v3967
    %v4016 = vpack.c.b16 %v3970, %v3969
    %v4017 = vpack.c.b16 %v3972, %v3971
    %v4018 = vpack.c.b16 %v3974, %v3973
    %v4019 = vpack.c.b16 %v3976, %v3975
    %v4020 = vpack.c.b16 %v3978, %v3977
    %v4021 = vpack.c.b16 %v3980, %v3979
    %v4022 = vpack.c.b16 %v3982, %v3981
    %v4023 = vpack.c.b16 %v3984, %v3983
    %v4024 = vpack.c.b16 %v3986, %v3985
    %v4025 = vpack.c.b16 %v3988, %v3987
    %v4026 = vpack.c.b16 %v3990, %v3989
    %v4027 = vpack.c.b16 %v3992, %v3991
    %v4028 = vpack.c.b16 %v3994, %v3993
    %v4029 = vpack.c.b16 %v3996, %v3995
    %v4030 = vpack.c.b16 %v3998, %v3997
    %4063 = vmatprep.subr.bf16.mxu0 0
    %4064 = vmatpush1.bf16.msra.mxu0 %v4006
    %4065 = vmatprep.subr.bf16.mxu0 0
    %4066 = vmatpush1.bf16.msra.mxu0 %v4005
    %4067 = vmatprep.subr.bf16.mxu0 0
    %4068 = vmatpush1.bf16.msra.mxu0 %v4004
    %4069 = vmatprep.subr.bf16.mxu0 0
    %4070 = vmatpush1.bf16.msra.mxu0 %v4003
    %4071 = vmatprep.subr.bf16.mxu0 0
    %4072 = vmatpush1.bf16.msra.mxu0 %v4002
    %4073 = vmatprep.subr.bf16.mxu0 0
    %4074 = vmatpush1.bf16.msra.mxu0 %v4001
    %4075 = vmatprep.subr.bf16.mxu0 0
    %4076 = vmatpush1.bf16.msra.mxu0 %v4000
    %4077 = vmatprep.subr.bf16.mxu0 0
    %4078 = vmatpush1.bf16.msra.mxu0 %v3999
    %4079 = vmatprep.subr.bf16.mxu0 0
    %4080 = vmatpush2.bf16.msra.mxu0 %v4014
    %4081 = vmatprep.subr.bf16.mxu0 0
    %4082 = vmatpush2.bf16.msra.mxu0 %v4013
    %4083 = vmatprep.subr.bf16.mxu0 0
    %4084 = vmatpush2.bf16.msra.mxu0 %v4012
    %4085 = vmatprep.subr.bf16.mxu0 0
    %4086 = vmatpush2.bf16.msra.mxu0 %v4011
    %4087 = vmatprep.subr.bf16.mxu0 0
    %4088 = vmatpush2.bf16.msra.mxu0 %v4010
    %4089 = vmatprep.subr.bf16.mxu0 0
    %4090 = vmatpush2.bf16.msra.mxu0 %v4009
    %4091 = vmatprep.subr.bf16.mxu0 0
    %4092 = vmatpush2.bf16.msra.mxu0 %v4008
    %4093 = vmatprep.subr.bf16.mxu0 0
    %4094 = vmatpush2.bf16.msra.mxu0 %v4007
    %4095 = vmatprep.mubr.bf16.mxu0 %v3804
    %4096 = vmatmul.mubr.bf16.gmra.mxu0 %v3803
    %v4097 = vpop.f32.mrf.mxu0
    %v4098 = vadd.f32 0.0, %v4097
    %v4099 = vpop.f32.mrf.mxu0
    %v4100 = vpop.f32.mrf.mxu0
    %v4101 = vadd.f32 0.0, %v4100
    %v4102 = vpop.f32.mrf.mxu0
    %4103 = vdwg.mxu0
    %4104 = vmatprep.subr.bf16.mxu0 0
    %4105 = vmatpush1.bf16.msra.mxu0 %v4022
    %4106 = vmatprep.subr.bf16.mxu0 0
    %4107 = vmatpush1.bf16.msra.mxu0 %v4021
    %4108 = vmatprep.subr.bf16.mxu0 0
    %4109 = vmatpush1.bf16.msra.mxu0 %v4020
    %4110 = vmatprep.subr.bf16.mxu0 0
    %4111 = vmatpush1.bf16.msra.mxu0 %v4019
    %4112 = vmatprep.subr.bf16.mxu0 0
    %4113 = vmatpush1.bf16.msra.mxu0 %v4018
    %4114 = vmatprep.subr.bf16.mxu0 0
    %4115 = vmatpush1.bf16.msra.mxu0 %v4017
    %4116 = vmatprep.subr.bf16.mxu0 0
    %4117 = vmatpush1.bf16.msra.mxu0 %v4016
    %4118 = vmatprep.subr.bf16.mxu0 0
    %4119 = vmatpush1.bf16.msra.mxu0 %v4015
    %4120 = vmatprep.subr.bf16.mxu0 0
    %4121 = vmatpush2.bf16.msra.mxu0 %v4030
    %4122 = vmatprep.subr.bf16.mxu0 0
    %4123 = vmatpush2.bf16.msra.mxu0 %v4029
    %4124 = vmatprep.subr.bf16.mxu0 0
    %4125 = vmatpush2.bf16.msra.mxu0 %v4028
    %4126 = vmatprep.subr.bf16.mxu0 0
    %4127 = vmatpush2.bf16.msra.mxu0 %v4027
    %4128 = vmatprep.subr.bf16.mxu0 0
    %4129 = vmatpush2.bf16.msra.mxu0 %v4026
    %4130 = vmatprep.subr.bf16.mxu0 0
    %4131 = vmatpush2.bf16.msra.mxu0 %v4025
    %4132 = vmatprep.subr.bf16.mxu0 0
    %4133 = vmatpush2.bf16.msra.mxu0 %v4024
    %4134 = vmatprep.subr.bf16.mxu0 0
    %4135 = vmatpush2.bf16.msra.mxu0 %v4023
    %4136 = vmatprep.mubr.bf16.mxu0 %v3806
    %4137 = vmatmul.mubr.bf16.gmra.mxu0 %v3805
    %v4138 = vpop.f32.mrf.mxu0
    %v4139 = vadd.f32 %v4098, %v4138
    %v4140 = vpop.f32.mrf.mxu0
    %v4141 = vpop.f32.mrf.mxu0
    %v4142 = vadd.f32 %v4101, %v4141
    %v4143 = vpop.f32.mrf.mxu0
    %4144 = vdwg.mxu0
    %v4145 = vadd.f32 %v3493, %v4139
    %v4146 = vadd.f32 %v3494, %v4142
    %v4147 = vlaneseq
    %v4148 = vshrl.u32 %v4147, 7
    %v4149 = vsub.s32 6, %v4148
    %v4150 = vrot.slane %v134, %v4149
    %v4151 = vadd.f32 %v4145, %v4150
    %v4152 = vadd.f32 %v4146, %v4150
    %v4153 = vadd.f32 %v1532, %v4151
    %v4154 = vadd.f32 %v1533, %v4152
    %4155 = vadd.xlane.f32.xlu0 %v4153
    %v4156 = vpop.xlane.xlu0 %4155
    %4157 = vadd.xlane.f32.xlu0 %v4154
    %v4158 = vpop.xlane.xlu0 %4157
    %v4159 = vmul.f32 %v4156, %v1503
    %v4160 = vmul.f32 %v4158, %v1503
    %v4161 = vsub.f32 %v4153, %v4159
    %v4162 = vsub.f32 %v4154, %v4160
    %v4163 = vmul.f32 %v4161, %v4161
    %v4164 = vmul.f32 %v4162, %v4162
    %4165 = vadd.xlane.f32.xlu0 %v4163
    %v4166 = vpop.xlane.xlu0 %4165
    %4167 = vadd.xlane.f32.xlu0 %v4164
    %v4168 = vpop.xlane.xlu0 %4167
    %v4169 = vmul.f32 %v4166, %v1503
    %v4170 = vmul.f32 %v4168, %v1503
    %v4171 = vadd.f32 %v4169, 1e-05
    %v4172 = vadd.f32 %v4170, 1e-05
    %v4173 = vrsqrt.pop %v4171
    %v4174 = vrsqrt.pop %v4172
    %v4175 = vmul.f32 %v4161, %v4173
    %v4176 = vmul.f32 %v4162, %v4174
    %v4177 = vlaneseq
    %v4178 = vshrl.u32 %v4177, 7
    %v4179 = vsub.s32 7, %v4178
    %v4180 = vrot.slane %v134, %v4179
    %v4181 = vmul.f32 %v4175, %v4180
    %v4182 = vmul.f32 %v4176, %v4180
    %v4183 = vlaneseq
    %v4184 = vshrl.u32 %v4183, 7
    %v4185 = vsub.s32 0, %v4184
    %v4186 = vrot.slane %v135, %v4185
    %v4187 = vadd.f32 %v4181, %v4186
    %v4188 = vadd.f32 %v4182, %v4186
    %4189 = vst [vmem:[#allocation16] sm:$0xff] %v4187
    %4190 = vst [vmem:[#allocation16 + $0x8] sm:$0xff] %v4188
    %v4191 = vlaneseq
    %v4192 = vshrl.u32 %v4191, 7
    %v4193 = vsub.s32 1, %v4192
    %v4194 = vrot.slane %v135, %v4193
    %v4195 = vmul.f32 %v4187, %v4194
    %v4196 = vmul.f32 %v4188, %v4194
    %4197 = vadd.xlane.f32.xlu0 %v4195
    %v4198 = vpop.xlane.xlu0 %4197
    %4199 = vadd.xlane.f32.xlu0 %v4196
    %v4200 = vpop.xlane.xlu0 %4199
    %4202 = vset.pattern.permute.xlu0 0
    %4203 = vperm.xlu0 %4202, %v135
    %v4204 = vpop.permute.xlu0 %4203
    %v4205 = vlaneseq
    %v4206 = vshrl.u32 %v4205, 7
    %v4207 = vsub.s32 2, %v4206
    %v4208 = vrot.slane %v4204, %v4207
    %v4210 = vadd.f32 %v4198, %v4208
    %v4211 = vadd.f32 %v4200, %v4208
    %4214 = vset.pattern.permute.xlu0 0
    %4215 = vperm.xlu0 %4214, %v4210
    %v4216 = vpop.permute.xlu0 %4215
    %4217 = vset.pattern.permute.xlu0 0
    %4218 = vperm.xlu0 %4217, %v4211
    %v4219 = vpop.permute.xlu0 %4218
    %v4220 = vlaneseq
    %v4221 = vand.u32 %v4220, 127
    %v4222 = vlaneseq
    %v4223 = vshrl.u32 %v4222, 7
    %v4224 = vsub.s32 %v4221, %v4223
    %v4225 = vrot.slane %v4216, %v4224
    %v4226 = vadd.s32 %v4221, 4294967288
    %v4227 = vlaneseq
    %v4228 = vshrl.u32 %v4227, 7
    %v4229 = vsub.s32 %v4226, %v4228
    %v4230 = vrot.slane %v4219, %v4229
    %vm4231 = vcmask 130112
    %v4232 = vsel %vm4231, %v4230, %v4225
    %vm4234 = vcmask 122880
    %4235 = vst.msk [vmem:[#allocation17] sm:$0x1] %vm4234, %v4232
    // Predicated region
    $region58: #{tpu_custom_call.1} parent=1 // pred_check
      _
    $region59: #{tpu_custom_call.1} parent=1 // pred_check_branch
      %4237 = sbr.rel (0) target = $region61
    $region60: #{tpu_custom_call.1} parent=1 // pred_region
      %s4239 = ssub.s32 256, 256
      %4240 = vsyncadd [#allocation7], %s4239
      %s4241 = sshll.u32 [#allocation16], 4
      %s4242 = int_to_ptr.vmem [resolvable:$true] %s4241
      %4247 = dma.vmem_to_hbm [thread:$0]  %s4242, 256, %s8, [#allocation7], 128, 128, 8
    $region61: #{tpu_custom_call.1} parent=1 // pred_fallthru
      _
    // Predicated region
    $region62: #{tpu_custom_call.1} parent=1 // pred_check
      _
    $region63: #{tpu_custom_call.1} parent=1 // pred_check_branch
      %4249 = sbr.rel (0) target = $region65
    $region64: #{tpu_custom_call.1} parent=1 // pred_region
      %s4251 = ssub.s32 16, 16
      %4252 = vsyncadd [#allocation18], %s4251
      %s4254 = sshll.u32 [#allocation17], 4
      %s4255 = int_to_ptr.vmem [resolvable:$true] %s4254
      %4257 = dma.vmem_to_hbm [thread:$0]  %s4255, 16, %s9, [#allocation18]
    $region65: #{tpu_custom_call.1} parent=1 // pred_fallthru
      _
    // Predicated region
    $region66: #{tpu_custom_call.1} parent=1 // pred_check
      _
    $region67: #{tpu_custom_call.1} parent=1 // pred_check_branch
      %4259 = sbr.rel (0) target = $region69
    $region68: #{tpu_custom_call.1} parent=1 // pred_region
      %4260 = dma.done [#allocation7], 256
    $region69: #{tpu_custom_call.1} parent=1 // pred_fallthru
      _
    // Predicated region
    $region70: #{tpu_custom_call.1} parent=1 // pred_check
      _
    $region71: #{tpu_custom_call.1} parent=1 // pred_check_branch
      %4262 = sbr.rel (0) target = $region73
    $region72: #{tpu_custom_call.1} parent=1 // pred_region
      %4263 = dma.done [#allocation18], 16
    $region73: #{tpu_custom_call.1} parent=1 // pred_fallthru
      _
    %4264 = vsyncpa [#allocation6], 1
    %4265 = vsyncpa [#allocation9], 1
    %4266 = vsyncpa [#allocation12], 1
    %4267 = vsyncpa [#allocation15], 1
    %4268 = vsyncpa [#allocation7], 1
    %4269 = vsyncpa [#allocation18], 1
  %4270 = vsyncmov [#allocation4]
  %s4271 = vpop.sfrf %4270
  %p4272 = scmp.eq.s32.totalorder %s4271, 0
  %p4273 = pneg %p4272
  %4275 = shalt.err (%p4273)
  %s4276 = scalar_lea.sflag [#allocation4], 1
  %4277 = vsyncmov %s4276
  %s4278 = vpop.sfrf %4277
  %p4279 = scmp.eq.s32.totalorder %s4278, 0
  %p4280 = pneg %p4279
  %4282 = shalt.err (%p4280)

</llo_original>
